<compile_context>
chip_gen: v6e
topology: v6e:2x2x1
jax: 0.10.0
libtpu: 0.0.40
codegen_flags: <defaults>
</compile_context>

<pallas_src>
import functools

import jax
import jax.numpy as jnp
from jax import lax
from jax.experimental import pallas as pl
from jax.experimental.pallas import tpu as pltpu


# ----------------------------------------------------------------------------
# Fused ViT forward + cross-entropy kernel (one grid step = Bt samples)
# ----------------------------------------------------------------------------

# Row layout of the packed "vec_d" (K, dim) parameter array.
_VD_B_PATCH, _VD_LN1_G, _VD_LN1_B = 0, 1, 2
_VD_B_O, _VD_LN2_G, _VD_LN2_B = 3, 4, 5
_VD_B_FC2, _VD_LN3_G, _VD_LN3_B = 6, 7, 8
_VD_ROWS = 9

# Row layout of the packed "vec_w" (3, W) parameter array (zero padded).
_VW_B_QKV, _VW_B_FC1, _VW_B_HEAD = 0, 1, 2


def _vit_batch_kernel(
    x_ref, y_ref, w_ref,                       # per-tile data
    posx_ref, vecd_ref, vecw_ref,              # packed small params
    wp_ref, wqkv_ref, wo_ref, w1_ref, w2_ref, wh_ref,   # weight matrices
    loss_ref,                                  # resident (1,1) accumulator
    *, num_heads, head_dim, bt, seq):

    f32 = jnp.float32
    D = wqkv_ref.shape[0]
    MLP = w1_ref.shape[1]
    C = wh_ref.shape[1]
    R = bt * seq

    def mm(a, b):
        # NOTE: cast operands to bfloat16 here for higher MXU throughput on
        # v6e/v7x if the model is scaled up; kept f32 for numerical parity.
        return jnp.dot(a, b, preferred_element_type=f32)

    def layer_norm(z, g, b):
        mu = jnp.mean(z, axis=-1, keepdims=True)
        var = jnp.mean(jnp.square(z - mu), axis=-1, keepdims=True)
        return (z - mu) * lax.rsqrt(var + 1e-5) * g + b

    vecd = vecd_ref[...]                       # (9, D) packed small vectors
    vecw = vecw_ref[...]                       # (3, W) packed wide vectors

    def vd(i):
        return vecd[i:i + 1, :]                # (1, D)

    # --- patch embedding (+ cls/pos); all Bt*S rows in one MXU push ----------
    x2d = x_ref[0].reshape(R, x_ref.shape[-1])             # (R, PDp)
    tok = mm(x2d, wp_ref[...]) + vd(_VD_B_PATCH)           # (R, D)
    tok3 = tok.reshape(bt, seq, D)
    sidx = lax.broadcasted_iota(jnp.int32, (bt, seq, D), 1)
    posx = posx_ref[...]                                   # (S, D); row0 = cls+pos0
    h3 = jnp.where(sidx == 0, posx, tok3 + posx)           # (Bt, S, D)
    h = h3.reshape(R, D)

    # --- multi-head self-attention (pre-LN, fused QKV matmul) -----------------
    hn = layer_norm(h, vd(_VD_LN1_G), vd(_VD_LN1_B))
    qkv = mm(hn, wqkv_ref[...]) + vecw[_VW_B_QKV:_VW_B_QKV + 1, :3 * D]   # (R, 3D)
    q = qkv[:, 0:D].reshape(bt, seq, D)
    k = qkv[:, D:2 * D].reshape(bt, seq, D)
    v = qkv[:, 2 * D:3 * D].reshape(bt, seq, D)

    scale = 1.0 / (head_dim ** 0.5)
    # Head lane masks hoisted out of the unrolled head loop (iota built once).
    lane = lax.broadcasted_iota(jnp.int32, (1, 1, D), 2)
    masks = [
        ((lane >= hh * head_dim) & (lane < (hh + 1) * head_dim)).astype(f32)
        for hh in range(num_heads)
    ]
    att = jnp.zeros((bt, seq, D), f32)
    for hh in range(num_heads):                # static unroll over heads
        m = masks[hh]
        kh = k * m                             # masking K alone suffices for q.k
        vh = v * m
        s = jnp.einsum('bqd,bkd->bqk', q, kh,
                       preferred_element_type=f32) * scale          # (Bt, S, S)
        s = s - jnp.max(s, axis=-1, keepdims=True)
        p = jnp.exp(s)
        p = p * pl.reciprocal(jnp.sum(p, axis=-1, keepdims=True), approx=True)
        att = att + jnp.einsum('bqk,bkd->bqd', p, vh,
                               preferred_element_type=f32)          # head lanes only
    h = h + mm(att.reshape(R, D), wo_ref[...]) + vd(_VD_B_O)

    # --- MLP (pre-LN) ---------------------------------------------------------
    hn = layer_norm(h, vd(_VD_LN2_G), vd(_VD_LN2_B))
    ff = mm(hn, w1_ref[...]) + vecw[_VW_B_FC1:_VW_B_FC1 + 1, :MLP]
    # TODO(synk): PyTorch nn.GELU default is the exact erf form; tanh approx used.
    ff = jax.nn.gelu(ff, approximate=True)
    h = h + mm(ff, w2_ref[...]) + vd(_VD_B_FC2)

    # --- classification head + cross-entropy, summed into resident output ----
    cls_tok = h.reshape(bt, seq, D)[:, 0, :]                         # (Bt, D)
    cls_n = layer_norm(cls_tok, vd(_VD_LN3_G), vd(_VD_LN3_B))
    logits = mm(cls_n, wh_ref[...]) + vecw[_VW_B_HEAD:_VW_B_HEAD + 1, :C]  # (Bt, C)
    zmax = jnp.max(logits, axis=-1, keepdims=True)
    lse = jnp.log(jnp.sum(jnp.exp(logits - zmax), axis=-1, keepdims=True)) + zmax
    tgt = jnp.sum(y_ref[0] * logits, axis=-1, keepdims=True)         # (Bt, 1)
    nll = (lse - tgt) * w_ref[0]               # padded samples carry weight 0

    @pl.when(pl.program_id(0) == 0)
    def _init():
        loss_ref[...] = jnp.zeros_like(loss_ref)

    loss_ref[...] += jnp.sum(nll, keepdims=True)        # (1, 1) VMEM-resident


_PARAM_ORDER = ("posx", "vec_d", "vec_w",
                "w_patch", "w_qkv", "w_o", "w_fc1", "w_fc2", "w_head")


def _const_spec(arr):
    nd = arr.ndim
    return pl.BlockSpec(arr.shape, lambda g, nd=nd: (0,) * nd)


def vit_nll_sum(params, meta, x_tiles, y_tiles, w_tiles):
    """x_tiles:(G,Bt,S,PDp), y_tiles:(G,Bt,C), w_tiles:(G,Bt,1) -> sum of nll."""
    G, Bt, S, PDp = x_tiles.shape
    C = y_tiles.shape[-1]
    kernel = functools.partial(
        _vit_batch_kernel,
        num_heads=meta["heads"],
        head_dim=meta["dim"] // meta["heads"],
        bt=Bt, seq=S)

    in_specs = [
        pl.BlockSpec((1, Bt, S, PDp), lambda g: (g, 0, 0, 0)),
        pl.BlockSpec((1, Bt, C), lambda g: (g, 0, 0)),
        pl.BlockSpec((1, Bt, 1), lambda g: (g, 0, 0)),
    ]
    args = [x_tiles, y_tiles, w_tiles]
    for name in _PARAM_ORDER:
        arr = params[name]
        in_specs.append(_const_spec(arr))
        args.append(arr)

    loss_sum = pl.pallas_call(
        kernel,
        out_shape=jax.ShapeDtypeStruct((1, 1), jnp.float32),
        grid=(G,),
        in_specs=in_specs,
        # Single resident output block, written to HBM once after the grid
        # (accumulator => the grid axis must be "arbitrary", not "parallel").
        out_specs=pl.BlockSpec((1, 1), lambda g: (0, 0)),
        compiler_params=pltpu.CompilerParams(
            dimension_semantics=("arbitrary",)),
    )(*args)
    return loss_sum[0, 0]


# ----------------------------------------------------------------------------
# Parameters / data prep / loss wrappers (all inside jit)
# ----------------------------------------------------------------------------

def init_vit_params(key, *, img=16, patch=8, in_ch=3, dim=32, heads=4,
                    mlp=64, num_classes=8):
    assert dim % heads == 0
    n_patches = (img // patch) ** 2
    seq = n_patches + 1
    patch_dim = in_ch * patch * patch
    pd_pad = ((patch_dim + 127) // 128) * 128        # 128-lane aligned patch rows
    vec_w_width = max(3 * dim, mlp, num_classes)

    ks = jax.random.split(key, 8)
    nrm = lambda k, s: (0.02 * jax.random.normal(k, s)).astype(jnp.float32)

    w_patch = jnp.zeros((pd_pad, dim), jnp.float32)
    w_patch = w_patch.at[:patch_dim].set(nrm(ks[0], (patch_dim, dim)))
    cls = nrm(ks[1], (1, dim))
    pos = nrm(ks[2], (seq, dim))
    posx = pos.at[0].add(cls[0])                     # fold cls token into pos row 0

    zeros_d = jnp.zeros((dim,), jnp.float32)
    ones_d = jnp.ones((dim,), jnp.float32)
    vec_d = jnp.stack([
        zeros_d, ones_d, zeros_d,     # b_patch, ln1_g, ln1_b
        zeros_d, ones_d, zeros_d,     # b_o,     ln2_g, ln2_b
        zeros_d, ones_d, zeros_d,     # b_fc2,   ln3_g, ln3_b
    ])                                # (9, dim)
    vec_w = jnp.zeros((3, vec_w_width), jnp.float32)  # b_qkv, b_fc1, b_head (all 0)

    params = {
        "posx": posx,
        "vec_d": vec_d,
        "vec_w": vec_w,
        "w_patch": w_patch,
        "w_qkv": nrm(ks[3], (dim, 3 * dim)),
        "w_o": nrm(ks[4], (dim, dim)),
        "w_fc1": nrm(ks[5], (dim, mlp)),
        "w_fc2": nrm(ks[6], (mlp, dim)),
        "w_head": nrm(ks[7], (dim, num_classes)),
    }
    meta = dict(img=img, patch=patch, in_ch=in_ch, dim=dim, heads=heads,
                mlp=mlp, num_classes=num_classes, seq=seq,
                n_patches=n_patches, patch_dim=patch_dim, pd_pad=pd_pad)
    return params, meta


def _prepare_tiles(inputs, targets, meta):
    """Patchify NCHW samples and tile them (G, Bt, S, PDp) for the grid."""
    N = inputs.shape[0]
    p, Cin = meta["patch"], meta["in_ch"]
    H = W = meta["img"]
    npatch, S = meta["n_patches"], meta["seq"]
    PD, PDp, C = meta["patch_dim"], meta["pd_pad"], meta["num_classes"]

    # Batch tile: Bt*S rows per grid step (>= 8 sublanes once Bt >= 2).
    if N >= 8:
        Bt = 8
        G = (N + Bt - 1) // Bt
    else:
        Bt, G = N, 1
    Npad = G * Bt

    xp = inputs.astype(jnp.float32).reshape(N, Cin, H // p, p, W // p, p)
    xp = xp.transpose(0, 2, 4, 1, 3, 5).reshape(N, npatch, PD)
    # Zero tensor carries: dummy cls row (row 0), 192->256 lane padding and
    # any padded samples (weighted out below), in one dynamic-update-slice.
    x_tok = jnp.zeros((Npad, S, PDp), jnp.float32).at[:N, 1:, :PD].set(xp)
    onehot = jnp.zeros((Npad, C), jnp.float32).at[:N].set(
        jax.nn.one_hot(targets, C, dtype=jnp.float32))
    wts = jnp.zeros((Npad, 1), jnp.float32).at[:N].set(1.0)
    return (x_tok.reshape(G, Bt, S, PDp),
            onehot.reshape(G, Bt, C),
            wts.reshape(G, Bt, 1)), N


def train_step_loss(params, inputs, targets, *, meta):
    """predictions = ViT(inputs); loss = CrossEntropyLoss(predictions, target)."""
    (xt, yt, wt), n = _prepare_tiles(inputs, targets, meta)
    return vit_nll_sum(params, meta, xt, yt, wt) / n      # 'mean' reduction


def total_training_loss(params, inputs_all, targets_all, *, meta, num_epochs):
    """Sum over batches of per-batch mean CE, accumulated over epochs.

    All samples of all batches run through ONE pallas_call.  Since parameters
    never update (forward-only port), the epoch loop is a scalar multiply —
    numerically equivalent (not bit-identical) to repeating the pass.
    """
    NB, B = targets_all.shape
    flat_in = inputs_all.reshape((NB * B,) + inputs_all.shape[2:])
    flat_tg = targets_all.reshape(NB * B)
    (xt, yt, wt), _ = _prepare_tiles(flat_in, flat_tg, meta)
    nll_sum = vit_nll_sum(params, meta, xt, yt, wt)
    per_epoch_total = nll_sum / B            # sum over batches of per-batch means
    return per_epoch_total * num_epochs


# ----------------------------------------------------------------------------
# Trainer
# ----------------------------------------------------------------------------

class Trainer:
    def __init__(self, config):
        self.config = config
        self.num_epochs = config["num_epochs"]
        self.params, self.meta = init_vit_params(
            jax.random.PRNGKey(0), **config["model_config"])
        self._step_fn = jax.jit(
            functools.partial(train_step_loss, meta=self.meta))
        self._total_fn = jax.jit(
            functools.partial(total_training_loss, meta=self.meta,
                              num_epochs=self.num_epochs))
        # TODO(synk): AdamW optimizer, loss.backward(), DataLoader and
        # checkpoint loading are not represented (forward loss only).

    def train_one_step(self, data):
        return self._step_fn(self.params, data["inputs"], data["target"])

    def forward(self, train_batches):
        inputs_all = jnp.stack([b["inputs"] for b in train_batches])
        targets_all = jnp.stack([b["target"] for b in train_batches])
        return self._total_fn(self.params, inputs_all, targets_all)


# ----------------------------------------------------------------------------
# Main
# ----------------------------------------------------------------------------

if __name__ == "__main__":
    B, C, HW = 2, 3, 16
    num_classes = 8
    config = {
        "num_epochs": 2,
        "model_config": dict(img=HW, patch=8, in_ch=C, dim=32, heads=4,
                             mlp=64, num_classes=num_classes),
    }
    trainer = Trainer(config)

    key = jax.random.PRNGKey(0)
    batches = []
    for _b in range(2):  # synthetic deterministic "train_loader"
        key, k1, k2 = jax.random.split(key, 3)
        batches.append({
            "inputs": jax.random.normal(k1, (B, C, HW, HW), dtype=jnp.float32),
            "target": jax.random.randint(k2, (B,), 0, num_classes, dtype=jnp.int32),
        })

    step_loss = trainer.train_one_step(batches[0])
    total_loss = trainer.forward(batches)
    step_loss, total_loss = jax.block_until_ready((step_loss, total_loss))
    assert jnp.isfinite(step_loss) and jnp.isfinite(total_loss)
    print("KERNEL_OK")
</pallas_src>

<mosaic_0001>
module attributes {stable_mosaic.version = 11 : i64} {
  func.func @_vit_batch_kernel(%arg0: i32, %arg1: memref<1x2x5x256xf32, #tpu.memory_space<vmem>>, %arg2: memref<1x2x8xf32, #tpu.memory_space<vmem>>, %arg3: memref<1x2x1xf32, #tpu.memory_space<vmem>>, %arg4: memref<5x32xf32, #tpu.memory_space<vmem>>, %arg5: memref<9x32xf32, #tpu.memory_space<vmem>>, %arg6: memref<3x96xf32, #tpu.memory_space<vmem>>, %arg7: memref<256x32xf32, #tpu.memory_space<vmem>>, %arg8: memref<32x96xf32, #tpu.memory_space<vmem>>, %arg9: memref<32x32xf32, #tpu.memory_space<vmem>>, %arg10: memref<32x64xf32, #tpu.memory_space<vmem>>, %arg11: memref<64x32xf32, #tpu.memory_space<vmem>>, %arg12: memref<32x8xf32, #tpu.memory_space<vmem>>, %arg13: memref<1x1xf32, #tpu.memory_space<vmem>>) attributes {dimension_semantics = [#tpu.dimension_semantics<arbitrary>], iteration_bounds = array<i64: 1>, scalar_prefetch = 0 : i64, scratch_operands = 0 : i64, tpu.core_type = #tpu.core_type<tc>, window_params = [{transform_indices = @transform_0, window_bounds = array<i64: 1, 2, 5, 256>}, {transform_indices = @transform_1, window_bounds = array<i64: 1, 2, 8>}, {transform_indices = @transform_2, window_bounds = array<i64: 1, 2, 1>}, {pipeline_mode = #tpu.pipeline_mode<synchronous>, transform_indices = @transform_3, window_bounds = array<i64: 5, 32>}, {pipeline_mode = #tpu.pipeline_mode<synchronous>, transform_indices = @transform_4, window_bounds = array<i64: 9, 32>}, {pipeline_mode = #tpu.pipeline_mode<synchronous>, transform_indices = @transform_5, window_bounds = array<i64: 3, 96>}, {pipeline_mode = #tpu.pipeline_mode<synchronous>, transform_indices = @transform_6, window_bounds = array<i64: 256, 32>}, {pipeline_mode = #tpu.pipeline_mode<synchronous>, transform_indices = @transform_7, window_bounds = array<i64: 32, 96>}, {pipeline_mode = #tpu.pipeline_mode<synchronous>, transform_indices = @transform_8, window_bounds = array<i64: 32, 32>}, {pipeline_mode = #tpu.pipeline_mode<synchronous>, transform_indices = @transform_9, window_bounds = array<i64: 32, 64>}, {pipeline_mode = #tpu.pipeline_mode<synchronous>, transform_indices = @transform_10, window_bounds = array<i64: 64, 32>}, {pipeline_mode = #tpu.pipeline_mode<synchronous>, transform_indices = @transform_11, window_bounds = array<i64: 32, 8>}, {pipeline_mode = #tpu.pipeline_mode<synchronous>, transform_indices = @transform_12, window_bounds = array<i64: 1, 1>}]} {
    %c0 = arith.constant 0 : index
    %c0_0 = arith.constant 0 : index
    %0 = vector.load %arg5[%c0, %c0_0] : memref<9x32xf32, #tpu.memory_space<vmem>>, vector<9x32xf32>
    %c0_1 = arith.constant 0 : index
    %c0_2 = arith.constant 0 : index
    %1 = vector.load %arg6[%c0_1, %c0_2] : memref<3x96xf32, #tpu.memory_space<vmem>>, vector<3x96xf32>
    %c0_3 = arith.constant 0 : index
    %c0_4 = arith.constant 0 : index
    %c0_5 = arith.constant 0 : index
    %c0_6 = arith.constant 0 : index
    %2 = vector.load %arg1[%c0_3, %c0_4, %c0_5, %c0_6] : memref<1x2x5x256xf32, #tpu.memory_space<vmem>>, vector<1x2x5x256xf32>
    %3 = vector.shape_cast %2 : vector<1x2x5x256xf32> to vector<2x5x256xf32>
    %4 = vector.shape_cast %3 : vector<2x5x256xf32> to vector<10x256xf32>
    %c0_7 = arith.constant 0 : index
    %c0_8 = arith.constant 0 : index
    %5 = vector.load %arg7[%c0_7, %c0_8] : memref<256x32xf32, #tpu.memory_space<vmem>>, vector<256x32xf32>
    %cst = arith.constant dense<0.000000e+00> : vector<10x32xf32>
    %6 = tpu.matmul %4, %5, %cst {dimension_numbers = #tpu.dot_dimension_numbers<[1], [0], [0], [1], [0, 0, 1, 1], [], []>} : vector<10x256xf32>, vector<256x32xf32>, vector<10x32xf32> -> vector<10x32xf32>
    %7 = vector.extract_strided_slice %0 {offsets = [0, 0], sizes = [1, 32], strides = [1, 1]} : vector<9x32xf32> to vector<1x32xf32>
    %8 = vector.broadcast %7 : vector<1x32xf32> to vector<10x32xf32>
    %9 = arith.addf %6, %8 : vector<10x32xf32>
    %10 = vector.shape_cast %9 : vector<10x32xf32> to vector<2x5x32xf32>
    %11 = tpu.iota {dimensions = array<i32: 1>} : vector<2x5x32xi32>
    %c0_9 = arith.constant 0 : index
    %c0_10 = arith.constant 0 : index
    %12 = vector.load %arg4[%c0_9, %c0_10] : memref<5x32xf32, #tpu.memory_space<vmem>>, vector<5x32xf32>
    %c0_i32 = arith.constant 0 : i32
    %13 = vector.broadcast %c0_i32 : i32 to vector<2x5x32xi32>
    %14 = arith.cmpi eq, %11, %13 : vector<2x5x32xi32>
    %15 = vector.shape_cast %12 : vector<5x32xf32> to vector<1x5x32xf32>
    %16 = vector.broadcast %15 : vector<1x5x32xf32> to vector<2x5x32xf32>
    %17 = arith.addf %10, %16 : vector<2x5x32xf32>
    %18 = vector.shape_cast %12 : vector<5x32xf32> to vector<1x5x32xf32>
    %19 = vector.broadcast %18 : vector<1x5x32xf32> to vector<2x5x32xf32>
    %20 = arith.select %14, %19, %17 : vector<2x5x32xi1>, vector<2x5x32xf32>
    %21 = vector.shape_cast %20 : vector<2x5x32xf32> to vector<10x32xf32>
    %22 = vector.extract_strided_slice %0 {offsets = [1, 0], sizes = [1, 32], strides = [1, 1]} : vector<9x32xf32> to vector<1x32xf32>
    %23 = vector.extract_strided_slice %0 {offsets = [2, 0], sizes = [1, 32], strides = [1, 1]} : vector<9x32xf32> to vector<1x32xf32>
    %cst_11 = arith.constant dense<0.000000e+00> : vector<10xf32>
    %24 = vector.multi_reduction <add>, %21, %cst_11 [1] : vector<10x32xf32> to vector<10xf32>
    %25 = vector.shape_cast %24 : vector<10xf32> to vector<10x1xf32>
    %cst_12 = arith.constant 3.200000e+01 : f32
    %26 = vector.broadcast %cst_12 : f32 to vector<10x1xf32>
    %27 = arith.divf %25, %26 : vector<10x1xf32>
    %28 = vector.broadcast %27 : vector<10x1xf32> to vector<10x32xf32>
    %29 = arith.subf %21, %28 : vector<10x32xf32>
    %30 = arith.mulf %29, %29 : vector<10x32xf32>
    %cst_13 = arith.constant dense<0.000000e+00> : vector<10xf32>
    %31 = vector.multi_reduction <add>, %30, %cst_13 [1] : vector<10x32xf32> to vector<10xf32>
    %32 = vector.shape_cast %31 : vector<10xf32> to vector<10x1xf32>
    %cst_14 = arith.constant 3.200000e+01 : f32
    %33 = vector.broadcast %cst_14 : f32 to vector<10x1xf32>
    %34 = arith.divf %32, %33 : vector<10x1xf32>
    %35 = vector.broadcast %27 : vector<10x1xf32> to vector<10x32xf32>
    %36 = arith.subf %21, %35 : vector<10x32xf32>
    %cst_15 = arith.constant 9.99999974E-6 : f32
    %37 = vector.broadcast %cst_15 : f32 to vector<10x1xf32>
    %38 = arith.addf %34, %37 : vector<10x1xf32>
    %39 = math.rsqrt %38 : vector<10x1xf32>
    %40 = vector.broadcast %39 : vector<10x1xf32> to vector<10x32xf32>
    %41 = arith.mulf %36, %40 : vector<10x32xf32>
    %42 = vector.broadcast %22 : vector<1x32xf32> to vector<10x32xf32>
    %43 = arith.mulf %41, %42 : vector<10x32xf32>
    %44 = vector.broadcast %23 : vector<1x32xf32> to vector<10x32xf32>
    %45 = arith.addf %43, %44 : vector<10x32xf32>
    %c0_16 = arith.constant 0 : index
    %c0_17 = arith.constant 0 : index
    %46 = vector.load %arg8[%c0_16, %c0_17] : memref<32x96xf32, #tpu.memory_space<vmem>>, vector<32x96xf32>
    %cst_18 = arith.constant dense<0.000000e+00> : vector<10x96xf32>
    %47 = tpu.matmul %45, %46, %cst_18 {dimension_numbers = #tpu.dot_dimension_numbers<[1], [0], [0], [1], [0, 0, 1, 1], [], []>} : vector<10x32xf32>, vector<32x96xf32>, vector<10x96xf32> -> vector<10x96xf32>
    %48 = vector.extract_strided_slice %1 {offsets = [0, 0], sizes = [1, 96], strides = [1, 1]} : vector<3x96xf32> to vector<1x96xf32>
    %49 = vector.broadcast %48 : vector<1x96xf32> to vector<10x96xf32>
    %50 = arith.addf %47, %49 : vector<10x96xf32>
    %51 = vector.extract_strided_slice %50 {offsets = [0, 0], sizes = [10, 32], strides = [1, 1]} : vector<10x96xf32> to vector<10x32xf32>
    %52 = vector.shape_cast %51 : vector<10x32xf32> to vector<2x5x32xf32>
    %53 = vector.extract_strided_slice %50 {offsets = [0, 32], sizes = [10, 32], strides = [1, 1]} : vector<10x96xf32> to vector<10x32xf32>
    %54 = vector.shape_cast %53 : vector<10x32xf32> to vector<2x5x32xf32>
    %55 = vector.extract_strided_slice %50 {offsets = [0, 64], sizes = [10, 32], strides = [1, 1]} : vector<10x96xf32> to vector<10x32xf32>
    %56 = vector.shape_cast %55 : vector<10x32xf32> to vector<2x5x32xf32>
    %57 = tpu.iota {dimensions = array<i32: 2>} : vector<1x1x32xi32>
    %c0_i32_19 = arith.constant 0 : i32
    %58 = vector.broadcast %c0_i32_19 : i32 to vector<1x1x32xi32>
    %59 = arith.cmpi sge, %57, %58 : vector<1x1x32xi32>
    %c8_i32 = arith.constant 8 : i32
    %60 = vector.broadcast %c8_i32 : i32 to vector<1x1x32xi32>
    %61 = arith.cmpi slt, %57, %60 : vector<1x1x32xi32>
    %62 = arith.andi %59, %61 : vector<1x1x32xi1>
    %63 = arith.extui %62 : vector<1x1x32xi1> to vector<1x1x32xi32>
    %64 = arith.sitofp %63 : vector<1x1x32xi32> to vector<1x1x32xf32>
    %c8_i32_20 = arith.constant 8 : i32
    %65 = vector.broadcast %c8_i32_20 : i32 to vector<1x1x32xi32>
    %66 = arith.cmpi sge, %57, %65 : vector<1x1x32xi32>
    %c16_i32 = arith.constant 16 : i32
    %67 = vector.broadcast %c16_i32 : i32 to vector<1x1x32xi32>
    %68 = arith.cmpi slt, %57, %67 : vector<1x1x32xi32>
    %69 = arith.andi %66, %68 : vector<1x1x32xi1>
    %70 = arith.extui %69 : vector<1x1x32xi1> to vector<1x1x32xi32>
    %71 = arith.sitofp %70 : vector<1x1x32xi32> to vector<1x1x32xf32>
    %c16_i32_21 = arith.constant 16 : i32
    %72 = vector.broadcast %c16_i32_21 : i32 to vector<1x1x32xi32>
    %73 = arith.cmpi sge, %57, %72 : vector<1x1x32xi32>
    %c24_i32 = arith.constant 24 : i32
    %74 = vector.broadcast %c24_i32 : i32 to vector<1x1x32xi32>
    %75 = arith.cmpi slt, %57, %74 : vector<1x1x32xi32>
    %76 = arith.andi %73, %75 : vector<1x1x32xi1>
    %77 = arith.extui %76 : vector<1x1x32xi1> to vector<1x1x32xi32>
    %78 = arith.sitofp %77 : vector<1x1x32xi32> to vector<1x1x32xf32>
    %c24_i32_22 = arith.constant 24 : i32
    %79 = vector.broadcast %c24_i32_22 : i32 to vector<1x1x32xi32>
    %80 = arith.cmpi sge, %57, %79 : vector<1x1x32xi32>
    %c32_i32 = arith.constant 32 : i32
    %81 = vector.broadcast %c32_i32 : i32 to vector<1x1x32xi32>
    %82 = arith.cmpi slt, %57, %81 : vector<1x1x32xi32>
    %83 = arith.andi %80, %82 : vector<1x1x32xi1>
    %84 = arith.extui %83 : vector<1x1x32xi1> to vector<1x1x32xi32>
    %85 = arith.sitofp %84 : vector<1x1x32xi32> to vector<1x1x32xf32>
    %cst_23 = arith.constant 0.000000e+00 : f32
    %86 = vector.broadcast %cst_23 : f32 to vector<2x5x32xf32>
    %87 = vector.broadcast %64 : vector<1x1x32xf32> to vector<2x5x32xf32>
    %88 = arith.mulf %54, %87 : vector<2x5x32xf32>
    %89 = vector.broadcast %64 : vector<1x1x32xf32> to vector<2x5x32xf32>
    %90 = arith.mulf %56, %89 : vector<2x5x32xf32>
    "tpu.trace_start"() <{level = 10 : i32, message = "bqd,bkd->bqk"}> : () -> ()
    %cst_24 = arith.constant dense<0.000000e+00> : vector<2x5x5xf32>
    %91 = tpu.matmul %52, %88, %cst_24 {dimension_numbers = #tpu.dot_dimension_numbers<[2], [2], [1], [1], [0, 0, 0, 1, 1, 1], [0], [0]>} : vector<2x5x32xf32>, vector<2x5x32xf32>, vector<2x5x5xf32> -> vector<2x5x5xf32>
    "tpu.trace_stop"() : () -> ()
    %cst_25 = arith.constant 0.353553385 : f32
    %92 = vector.broadcast %cst_25 : f32 to vector<2x5x5xf32>
    %93 = arith.mulf %91, %92 : vector<2x5x5xf32>
    %cst_26 = arith.constant dense<0xFF800000> : vector<2x5xf32>
    %94 = vector.multi_reduction <maximumf>, %93, %cst_26 [2] : vector<2x5x5xf32> to vector<2x5xf32>
    %95 = vector.shape_cast %94 : vector<2x5xf32> to vector<2x5x1xf32>
    %96 = vector.broadcast %95 : vector<2x5x1xf32> to vector<2x5x5xf32>
    %97 = arith.subf %93, %96 : vector<2x5x5xf32>
    %98 = math.exp %97 : vector<2x5x5xf32>
    %cst_27 = arith.constant dense<0.000000e+00> : vector<2x5xf32>
    %99 = vector.multi_reduction <add>, %98, %cst_27 [2] : vector<2x5x5xf32> to vector<2x5xf32>
    %100 = vector.shape_cast %99 : vector<2x5xf32> to vector<2x5x1xf32>
    %101 = tpu.reciprocal %100 {approx = true} : vector<2x5x1xf32> -> vector<2x5x1xf32>
    %102 = vector.broadcast %101 : vector<2x5x1xf32> to vector<2x5x5xf32>
    %103 = arith.mulf %98, %102 : vector<2x5x5xf32>
    "tpu.trace_start"() <{level = 10 : i32, message = "bqk,bkd->bqd"}> : () -> ()
    %cst_28 = arith.constant dense<0.000000e+00> : vector<2x5x32xf32>
    %104 = tpu.matmul %103, %90, %cst_28 {dimension_numbers = #tpu.dot_dimension_numbers<[2], [1], [1], [2], [0, 0, 0, 1, 1, 2], [0], [0]>} : vector<2x5x5xf32>, vector<2x5x32xf32>, vector<2x5x32xf32> -> vector<2x5x32xf32>
    "tpu.trace_stop"() : () -> ()
    %105 = arith.addf %86, %104 : vector<2x5x32xf32>
    %106 = vector.broadcast %71 : vector<1x1x32xf32> to vector<2x5x32xf32>
    %107 = arith.mulf %54, %106 : vector<2x5x32xf32>
    %108 = vector.broadcast %71 : vector<1x1x32xf32> to vector<2x5x32xf32>
    %109 = arith.mulf %56, %108 : vector<2x5x32xf32>
    "tpu.trace_start"() <{level = 10 : i32, message = "bqd,bkd->bqk"}> : () -> ()
    %cst_29 = arith.constant dense<0.000000e+00> : vector<2x5x5xf32>
    %110 = tpu.matmul %52, %107, %cst_29 {dimension_numbers = #tpu.dot_dimension_numbers<[2], [2], [1], [1], [0, 0, 0, 1, 1, 1], [0], [0]>} : vector<2x5x32xf32>, vector<2x5x32xf32>, vector<2x5x5xf32> -> vector<2x5x5xf32>
    "tpu.trace_stop"() : () -> ()
    %cst_30 = arith.constant 0.353553385 : f32
    %111 = vector.broadcast %cst_30 : f32 to vector<2x5x5xf32>
    %112 = arith.mulf %110, %111 : vector<2x5x5xf32>
    %cst_31 = arith.constant dense<0xFF800000> : vector<2x5xf32>
    %113 = vector.multi_reduction <maximumf>, %112, %cst_31 [2] : vector<2x5x5xf32> to vector<2x5xf32>
    %114 = vector.shape_cast %113 : vector<2x5xf32> to vector<2x5x1xf32>
    %115 = vector.broadcast %114 : vector<2x5x1xf32> to vector<2x5x5xf32>
    %116 = arith.subf %112, %115 : vector<2x5x5xf32>
    %117 = math.exp %116 : vector<2x5x5xf32>
    %cst_32 = arith.constant dense<0.000000e+00> : vector<2x5xf32>
    %118 = vector.multi_reduction <add>, %117, %cst_32 [2] : vector<2x5x5xf32> to vector<2x5xf32>
    %119 = vector.shape_cast %118 : vector<2x5xf32> to vector<2x5x1xf32>
    %120 = tpu.reciprocal %119 {approx = true} : vector<2x5x1xf32> -> vector<2x5x1xf32>
    %121 = vector.broadcast %120 : vector<2x5x1xf32> to vector<2x5x5xf32>
    %122 = arith.mulf %117, %121 : vector<2x5x5xf32>
    "tpu.trace_start"() <{level = 10 : i32, message = "bqk,bkd->bqd"}> : () -> ()
    %cst_33 = arith.constant dense<0.000000e+00> : vector<2x5x32xf32>
    %123 = tpu.matmul %122, %109, %cst_33 {dimension_numbers = #tpu.dot_dimension_numbers<[2], [1], [1], [2], [0, 0, 0, 1, 1, 2], [0], [0]>} : vector<2x5x5xf32>, vector<2x5x32xf32>, vector<2x5x32xf32> -> vector<2x5x32xf32>
    "tpu.trace_stop"() : () -> ()
    %124 = arith.addf %105, %123 : vector<2x5x32xf32>
    %125 = vector.broadcast %78 : vector<1x1x32xf32> to vector<2x5x32xf32>
    %126 = arith.mulf %54, %125 : vector<2x5x32xf32>
    %127 = vector.broadcast %78 : vector<1x1x32xf32> to vector<2x5x32xf32>
    %128 = arith.mulf %56, %127 : vector<2x5x32xf32>
    "tpu.trace_start"() <{level = 10 : i32, message = "bqd,bkd->bqk"}> : () -> ()
    %cst_34 = arith.constant dense<0.000000e+00> : vector<2x5x5xf32>
    %129 = tpu.matmul %52, %126, %cst_34 {dimension_numbers = #tpu.dot_dimension_numbers<[2], [2], [1], [1], [0, 0, 0, 1, 1, 1], [0], [0]>} : vector<2x5x32xf32>, vector<2x5x32xf32>, vector<2x5x5xf32> -> vector<2x5x5xf32>
    "tpu.trace_stop"() : () -> ()
    %cst_35 = arith.constant 0.353553385 : f32
    %130 = vector.broadcast %cst_35 : f32 to vector<2x5x5xf32>
    %131 = arith.mulf %129, %130 : vector<2x5x5xf32>
    %cst_36 = arith.constant dense<0xFF800000> : vector<2x5xf32>
    %132 = vector.multi_reduction <maximumf>, %131, %cst_36 [2] : vector<2x5x5xf32> to vector<2x5xf32>
    %133 = vector.shape_cast %132 : vector<2x5xf32> to vector<2x5x1xf32>
    %134 = vector.broadcast %133 : vector<2x5x1xf32> to vector<2x5x5xf32>
    %135 = arith.subf %131, %134 : vector<2x5x5xf32>
    %136 = math.exp %135 : vector<2x5x5xf32>
    %cst_37 = arith.constant dense<0.000000e+00> : vector<2x5xf32>
    %137 = vector.multi_reduction <add>, %136, %cst_37 [2] : vector<2x5x5xf32> to vector<2x5xf32>
    %138 = vector.shape_cast %137 : vector<2x5xf32> to vector<2x5x1xf32>
    %139 = tpu.reciprocal %138 {approx = true} : vector<2x5x1xf32> -> vector<2x5x1xf32>
    %140 = vector.broadcast %139 : vector<2x5x1xf32> to vector<2x5x5xf32>
    %141 = arith.mulf %136, %140 : vector<2x5x5xf32>
    "tpu.trace_start"() <{level = 10 : i32, message = "bqk,bkd->bqd"}> : () -> ()
    %cst_38 = arith.constant dense<0.000000e+00> : vector<2x5x32xf32>
    %142 = tpu.matmul %141, %128, %cst_38 {dimension_numbers = #tpu.dot_dimension_numbers<[2], [1], [1], [2], [0, 0, 0, 1, 1, 2], [0], [0]>} : vector<2x5x5xf32>, vector<2x5x32xf32>, vector<2x5x32xf32> -> vector<2x5x32xf32>
    "tpu.trace_stop"() : () -> ()
    %143 = arith.addf %124, %142 : vector<2x5x32xf32>
    %144 = vector.broadcast %85 : vector<1x1x32xf32> to vector<2x5x32xf32>
    %145 = arith.mulf %54, %144 : vector<2x5x32xf32>
    %146 = vector.broadcast %85 : vector<1x1x32xf32> to vector<2x5x32xf32>
    %147 = arith.mulf %56, %146 : vector<2x5x32xf32>
    "tpu.trace_start"() <{level = 10 : i32, message = "bqd,bkd->bqk"}> : () -> ()
    %cst_39 = arith.constant dense<0.000000e+00> : vector<2x5x5xf32>
    %148 = tpu.matmul %52, %145, %cst_39 {dimension_numbers = #tpu.dot_dimension_numbers<[2], [2], [1], [1], [0, 0, 0, 1, 1, 1], [0], [0]>} : vector<2x5x32xf32>, vector<2x5x32xf32>, vector<2x5x5xf32> -> vector<2x5x5xf32>
    "tpu.trace_stop"() : () -> ()
    %cst_40 = arith.constant 0.353553385 : f32
    %149 = vector.broadcast %cst_40 : f32 to vector<2x5x5xf32>
    %150 = arith.mulf %148, %149 : vector<2x5x5xf32>
    %cst_41 = arith.constant dense<0xFF800000> : vector<2x5xf32>
    %151 = vector.multi_reduction <maximumf>, %150, %cst_41 [2] : vector<2x5x5xf32> to vector<2x5xf32>
    %152 = vector.shape_cast %151 : vector<2x5xf32> to vector<2x5x1xf32>
    %153 = vector.broadcast %152 : vector<2x5x1xf32> to vector<2x5x5xf32>
    %154 = arith.subf %150, %153 : vector<2x5x5xf32>
    %155 = math.exp %154 : vector<2x5x5xf32>
    %cst_42 = arith.constant dense<0.000000e+00> : vector<2x5xf32>
    %156 = vector.multi_reduction <add>, %155, %cst_42 [2] : vector<2x5x5xf32> to vector<2x5xf32>
    %157 = vector.shape_cast %156 : vector<2x5xf32> to vector<2x5x1xf32>
    %158 = tpu.reciprocal %157 {approx = true} : vector<2x5x1xf32> -> vector<2x5x1xf32>
    %159 = vector.broadcast %158 : vector<2x5x1xf32> to vector<2x5x5xf32>
    %160 = arith.mulf %155, %159 : vector<2x5x5xf32>
    "tpu.trace_start"() <{level = 10 : i32, message = "bqk,bkd->bqd"}> : () -> ()
    %cst_43 = arith.constant dense<0.000000e+00> : vector<2x5x32xf32>
    %161 = tpu.matmul %160, %147, %cst_43 {dimension_numbers = #tpu.dot_dimension_numbers<[2], [1], [1], [2], [0, 0, 0, 1, 1, 2], [0], [0]>} : vector<2x5x5xf32>, vector<2x5x32xf32>, vector<2x5x32xf32> -> vector<2x5x32xf32>
    "tpu.trace_stop"() : () -> ()
    %162 = arith.addf %143, %161 : vector<2x5x32xf32>
    %163 = vector.shape_cast %162 : vector<2x5x32xf32> to vector<10x32xf32>
    %c0_44 = arith.constant 0 : index
    %c0_45 = arith.constant 0 : index
    %164 = vector.load %arg9[%c0_44, %c0_45] : memref<32x32xf32, #tpu.memory_space<vmem>>, vector<32x32xf32>
    %cst_46 = arith.constant dense<0.000000e+00> : vector<10x32xf32>
    %165 = tpu.matmul %163, %164, %cst_46 {dimension_numbers = #tpu.dot_dimension_numbers<[1], [0], [0], [1], [0, 0, 1, 1], [], []>} : vector<10x32xf32>, vector<32x32xf32>, vector<10x32xf32> -> vector<10x32xf32>
    %166 = arith.addf %21, %165 : vector<10x32xf32>
    %167 = vector.extract_strided_slice %0 {offsets = [3, 0], sizes = [1, 32], strides = [1, 1]} : vector<9x32xf32> to vector<1x32xf32>
    %168 = vector.broadcast %167 : vector<1x32xf32> to vector<10x32xf32>
    %169 = arith.addf %166, %168 : vector<10x32xf32>
    %170 = vector.extract_strided_slice %0 {offsets = [4, 0], sizes = [1, 32], strides = [1, 1]} : vector<9x32xf32> to vector<1x32xf32>
    %171 = vector.extract_strided_slice %0 {offsets = [5, 0], sizes = [1, 32], strides = [1, 1]} : vector<9x32xf32> to vector<1x32xf32>
    %cst_47 = arith.constant dense<0.000000e+00> : vector<10xf32>
    %172 = vector.multi_reduction <add>, %169, %cst_47 [1] : vector<10x32xf32> to vector<10xf32>
    %173 = vector.shape_cast %172 : vector<10xf32> to vector<10x1xf32>
    %cst_48 = arith.constant 3.200000e+01 : f32
    %174 = vector.broadcast %cst_48 : f32 to vector<10x1xf32>
    %175 = arith.divf %173, %174 : vector<10x1xf32>
    %176 = vector.broadcast %175 : vector<10x1xf32> to vector<10x32xf32>
    %177 = arith.subf %169, %176 : vector<10x32xf32>
    %178 = arith.mulf %177, %177 : vector<10x32xf32>
    %cst_49 = arith.constant dense<0.000000e+00> : vector<10xf32>
    %179 = vector.multi_reduction <add>, %178, %cst_49 [1] : vector<10x32xf32> to vector<10xf32>
    %180 = vector.shape_cast %179 : vector<10xf32> to vector<10x1xf32>
    %cst_50 = arith.constant 3.200000e+01 : f32
    %181 = vector.broadcast %cst_50 : f32 to vector<10x1xf32>
    %182 = arith.divf %180, %181 : vector<10x1xf32>
    %183 = vector.broadcast %175 : vector<10x1xf32> to vector<10x32xf32>
    %184 = arith.subf %169, %183 : vector<10x32xf32>
    %cst_51 = arith.constant 9.99999974E-6 : f32
    %185 = vector.broadcast %cst_51 : f32 to vector<10x1xf32>
    %186 = arith.addf %182, %185 : vector<10x1xf32>
    %187 = math.rsqrt %186 : vector<10x1xf32>
    %188 = vector.broadcast %187 : vector<10x1xf32> to vector<10x32xf32>
    %189 = arith.mulf %184, %188 : vector<10x32xf32>
    %190 = vector.broadcast %170 : vector<1x32xf32> to vector<10x32xf32>
    %191 = arith.mulf %189, %190 : vector<10x32xf32>
    %192 = vector.broadcast %171 : vector<1x32xf32> to vector<10x32xf32>
    %193 = arith.addf %191, %192 : vector<10x32xf32>
    %c0_52 = arith.constant 0 : index
    %c0_53 = arith.constant 0 : index
    %194 = vector.load %arg10[%c0_52, %c0_53] : memref<32x64xf32, #tpu.memory_space<vmem>>, vector<32x64xf32>
    %cst_54 = arith.constant dense<0.000000e+00> : vector<10x64xf32>
    %195 = tpu.matmul %193, %194, %cst_54 {dimension_numbers = #tpu.dot_dimension_numbers<[1], [0], [0], [1], [0, 0, 1, 1], [], []>} : vector<10x32xf32>, vector<32x64xf32>, vector<10x64xf32> -> vector<10x64xf32>
    %196 = vector.extract_strided_slice %1 {offsets = [1, 0], sizes = [1, 64], strides = [1, 1]} : vector<3x96xf32> to vector<1x64xf32>
    %197 = vector.broadcast %196 : vector<1x64xf32> to vector<10x64xf32>
    %198 = arith.addf %195, %197 : vector<10x64xf32>
    %199 = arith.mulf %198, %198 : vector<10x64xf32>
    %200 = arith.mulf %198, %199 : vector<10x64xf32>
    %cst_55 = arith.constant 4.471500e-02 : f32
    %201 = vector.broadcast %cst_55 : f32 to vector<10x64xf32>
    %202 = arith.mulf %201, %200 : vector<10x64xf32>
    %203 = arith.addf %198, %202 : vector<10x64xf32>
    %cst_56 = arith.constant 0.797884583 : f32
    %204 = vector.broadcast %cst_56 : f32 to vector<10x64xf32>
    %205 = arith.mulf %204, %203 : vector<10x64xf32>
    %206 = math.tanh %205 : vector<10x64xf32>
    %cst_57 = arith.constant 1.000000e+00 : f32
    %207 = vector.broadcast %cst_57 : f32 to vector<10x64xf32>
    %208 = arith.addf %207, %206 : vector<10x64xf32>
    %cst_58 = arith.constant 5.000000e-01 : f32
    %209 = vector.broadcast %cst_58 : f32 to vector<10x64xf32>
    %210 = arith.mulf %209, %208 : vector<10x64xf32>
    %211 = arith.mulf %198, %210 : vector<10x64xf32>
    %c0_59 = arith.constant 0 : index
    %c0_60 = arith.constant 0 : index
    %212 = vector.load %arg11[%c0_59, %c0_60] : memref<64x32xf32, #tpu.memory_space<vmem>>, vector<64x32xf32>
    %cst_61 = arith.constant dense<0.000000e+00> : vector<10x32xf32>
    %213 = tpu.matmul %211, %212, %cst_61 {dimension_numbers = #tpu.dot_dimension_numbers<[1], [0], [0], [1], [0, 0, 1, 1], [], []>} : vector<10x64xf32>, vector<64x32xf32>, vector<10x32xf32> -> vector<10x32xf32>
    %214 = arith.addf %169, %213 : vector<10x32xf32>
    %215 = vector.extract_strided_slice %0 {offsets = [6, 0], sizes = [1, 32], strides = [1, 1]} : vector<9x32xf32> to vector<1x32xf32>
    %216 = vector.broadcast %215 : vector<1x32xf32> to vector<10x32xf32>
    %217 = arith.addf %214, %216 : vector<10x32xf32>
    %218 = vector.shape_cast %217 : vector<10x32xf32> to vector<2x5x32xf32>
    %219 = vector.extract_strided_slice %218 {offsets = [0, 0, 0], sizes = [2, 1, 32], strides = [1, 1, 1]} : vector<2x5x32xf32> to vector<2x1x32xf32>
    %220 = vector.shape_cast %219 : vector<2x1x32xf32> to vector<2x32xf32>
    %221 = vector.extract_strided_slice %0 {offsets = [7, 0], sizes = [1, 32], strides = [1, 1]} : vector<9x32xf32> to vector<1x32xf32>
    %222 = vector.extract_strided_slice %0 {offsets = [8, 0], sizes = [1, 32], strides = [1, 1]} : vector<9x32xf32> to vector<1x32xf32>
    %cst_62 = arith.constant dense<0.000000e+00> : vector<2xf32>
    %223 = vector.multi_reduction <add>, %220, %cst_62 [1] : vector<2x32xf32> to vector<2xf32>
    %224 = vector.shape_cast %223 : vector<2xf32> to vector<2x1xf32>
    %cst_63 = arith.constant 3.200000e+01 : f32
    %225 = vector.broadcast %cst_63 : f32 to vector<2x1xf32>
    %226 = arith.divf %224, %225 : vector<2x1xf32>
    %227 = vector.broadcast %226 : vector<2x1xf32> to vector<2x32xf32>
    %228 = arith.subf %220, %227 : vector<2x32xf32>
    %229 = arith.mulf %228, %228 : vector<2x32xf32>
    %cst_64 = arith.constant dense<0.000000e+00> : vector<2xf32>
    %230 = vector.multi_reduction <add>, %229, %cst_64 [1] : vector<2x32xf32> to vector<2xf32>
    %231 = vector.shape_cast %230 : vector<2xf32> to vector<2x1xf32>
    %cst_65 = arith.constant 3.200000e+01 : f32
    %232 = vector.broadcast %cst_65 : f32 to vector<2x1xf32>
    %233 = arith.divf %231, %232 : vector<2x1xf32>
    %234 = vector.broadcast %226 : vector<2x1xf32> to vector<2x32xf32>
    %235 = arith.subf %220, %234 : vector<2x32xf32>
    %cst_66 = arith.constant 9.99999974E-6 : f32
    %236 = vector.broadcast %cst_66 : f32 to vector<2x1xf32>
    %237 = arith.addf %233, %236 : vector<2x1xf32>
    %238 = math.rsqrt %237 : vector<2x1xf32>
    %239 = vector.broadcast %238 : vector<2x1xf32> to vector<2x32xf32>
    %240 = arith.mulf %235, %239 : vector<2x32xf32>
    %241 = vector.broadcast %221 : vector<1x32xf32> to vector<2x32xf32>
    %242 = arith.mulf %240, %241 : vector<2x32xf32>
    %243 = vector.broadcast %222 : vector<1x32xf32> to vector<2x32xf32>
    %244 = arith.addf %242, %243 : vector<2x32xf32>
    %c0_67 = arith.constant 0 : index
    %c0_68 = arith.constant 0 : index
    %245 = vector.load %arg12[%c0_67, %c0_68] : memref<32x8xf32, #tpu.memory_space<vmem>>, vector<32x8xf32>
    %cst_69 = arith.constant dense<0.000000e+00> : vector<2x8xf32>
    %246 = tpu.matmul %244, %245, %cst_69 {dimension_numbers = #tpu.dot_dimension_numbers<[1], [0], [0], [1], [0, 0, 1, 1], [], []>} : vector<2x32xf32>, vector<32x8xf32>, vector<2x8xf32> -> vector<2x8xf32>
    %247 = vector.extract_strided_slice %1 {offsets = [2, 0], sizes = [1, 8], strides = [1, 1]} : vector<3x96xf32> to vector<1x8xf32>
    %248 = vector.broadcast %247 : vector<1x8xf32> to vector<2x8xf32>
    %249 = arith.addf %246, %248 : vector<2x8xf32>
    %cst_70 = arith.constant dense<0xFF800000> : vector<2xf32>
    %250 = vector.multi_reduction <maximumf>, %249, %cst_70 [1] : vector<2x8xf32> to vector<2xf32>
    %251 = vector.shape_cast %250 : vector<2xf32> to vector<2x1xf32>
    %252 = vector.broadcast %251 : vector<2x1xf32> to vector<2x8xf32>
    %253 = arith.subf %249, %252 : vector<2x8xf32>
    %254 = math.exp %253 : vector<2x8xf32>
    %cst_71 = arith.constant dense<0.000000e+00> : vector<2xf32>
    %255 = vector.multi_reduction <add>, %254, %cst_71 [1] : vector<2x8xf32> to vector<2xf32>
    %256 = vector.shape_cast %255 : vector<2xf32> to vector<2x1xf32>
    %257 = math.log %256 : vector<2x1xf32>
    %258 = arith.addf %257, %251 : vector<2x1xf32>
    %c0_72 = arith.constant 0 : index
    %c0_73 = arith.constant 0 : index
    %c0_74 = arith.constant 0 : index
    %259 = vector.load %arg2[%c0_72, %c0_73, %c0_74] : memref<1x2x8xf32, #tpu.memory_space<vmem>>, vector<1x2x8xf32>
    %260 = vector.shape_cast %259 : vector<1x2x8xf32> to vector<2x8xf32>
    %261 = arith.mulf %260, %249 : vector<2x8xf32>
    %cst_75 = arith.constant dense<0.000000e+00> : vector<2xf32>
    %262 = vector.multi_reduction <add>, %261, %cst_75 [1] : vector<2x8xf32> to vector<2xf32>
    %263 = vector.shape_cast %262 : vector<2xf32> to vector<2x1xf32>
    %264 = arith.subf %258, %263 : vector<2x1xf32>
    %c0_76 = arith.constant 0 : index
    %c0_77 = arith.constant 0 : index
    %c0_78 = arith.constant 0 : index
    %265 = vector.load %arg3[%c0_76, %c0_77, %c0_78] : memref<1x2x1xf32, #tpu.memory_space<vmem>>, vector<1x2x1xf32>
    %266 = vector.shape_cast %265 : vector<1x2x1xf32> to vector<2x1xf32>
    %267 = arith.mulf %264, %266 : vector<2x1xf32>
    %c0_i32_79 = arith.constant 0 : i32
    %268 = arith.cmpi eq, %arg0, %c0_i32_79 : i32
    %269 = arith.extui %268 : i1 to i32
    %c0_i32_80 = arith.constant 0 : i32
    %270 = arith.cmpi ne, %269, %c0_i32_80 : i32
    scf.if %270 {
      %cst_86 = arith.constant 0.000000e+00 : f32
      %279 = vector.broadcast %cst_86 : f32 to vector<1x1xf32>
      %c0_87 = arith.constant 0 : index
      %c0_88 = arith.constant 0 : index
      %280 = vector.load %arg13[%c0_87, %c0_88] : memref<1x1xf32, #tpu.memory_space<vmem>>, vector<1x1xf32>
      tpu.vector_store %arg13[%c0_87, %c0_88], %279 {strides = array<i32>} : memref<1x1xf32, #tpu.memory_space<vmem>>, vector<1x1xf32>,
    } else {
    }
    %c0_81 = arith.constant 0 : index
    %c0_82 = arith.constant 0 : index
    %271 = vector.load %arg13[%c0_81, %c0_82] : memref<1x1xf32, #tpu.memory_space<vmem>>, vector<1x1xf32>
    %272 = vector.shape_cast %267 : vector<2x1xf32> to vector<1x2x1xf32>
    %cst_83 = arith.constant dense<0.000000e+00> : vector<1xf32>
    %273 = vector.multi_reduction <add>, %272, %cst_83 [1, 2] : vector<1x2x1xf32> to vector<1xf32>
    %274 = vector.shape_cast %273 : vector<1xf32> to vector<1x1x1xf32>
    %275 = vector.extract %274[0, 0, 0] : f32 from vector<1x1x1xf32>
    %276 = vector.broadcast %275 : f32 to vector<1x1xf32>
    %277 = arith.addf %271, %276 : vector<1x1xf32>
    %c0_84 = arith.constant 0 : index
    %c0_85 = arith.constant 0 : index
    %278 = vector.load %arg13[%c0_84, %c0_85] : memref<1x1xf32, #tpu.memory_space<vmem>>, vector<1x1xf32>
    tpu.vector_store %arg13[%c0_84, %c0_85], %277 {strides = array<i32>} : memref<1x1xf32, #tpu.memory_space<vmem>>, vector<1x1xf32>,
    return
  }
  func.func @transform_0(%arg0: i32) -> (i32, i32, i32, i32) {
    %c0_i32 = arith.constant 0 : i32
    %c0_i32_0 = arith.constant 0 : i32
    %c0_i32_1 = arith.constant 0 : i32
    %c0_i32_2 = arith.constant 0 : i32
    return %arg0, %c0_i32, %c0_i32_0, %c0_i32_1 : i32, i32, i32, i32
  }
  func.func @transform_1(%arg0: i32) -> (i32, i32, i32) {
    %c0_i32 = arith.constant 0 : i32
    %c0_i32_0 = arith.constant 0 : i32
    %c0_i32_1 = arith.constant 0 : i32
    return %arg0, %c0_i32, %c0_i32_0 : i32, i32, i32
  }
  func.func @transform_2(%arg0: i32) -> (i32, i32, i32) {
    %c0_i32 = arith.constant 0 : i32
    %c0_i32_0 = arith.constant 0 : i32
    %c0_i32_1 = arith.constant 0 : i32
    return %arg0, %c0_i32, %c0_i32_0 : i32, i32, i32
  }
  func.func @transform_3(%arg0: i32) -> (i32, i32) {
    %c0_i32 = arith.constant 0 : i32
    %c0_i32_0 = arith.constant 0 : i32
    %c0_i32_1 = arith.constant 0 : i32
    return %c0_i32, %c0_i32_0 : i32, i32
  }
  func.func @transform_4(%arg0: i32) -> (i32, i32) {
    %c0_i32 = arith.constant 0 : i32
    %c0_i32_0 = arith.constant 0 : i32
    %c0_i32_1 = arith.constant 0 : i32
    return %c0_i32, %c0_i32_0 : i32, i32
  }
  func.func @transform_5(%arg0: i32) -> (i32, i32) {
    %c0_i32 = arith.constant 0 : i32
    %c0_i32_0 = arith.constant 0 : i32
    %c0_i32_1 = arith.constant 0 : i32
    return %c0_i32, %c0_i32_0 : i32, i32
  }
  func.func @transform_6(%arg0: i32) -> (i32, i32) {
    %c0_i32 = arith.constant 0 : i32
    %c0_i32_0 = arith.constant 0 : i32
    %c0_i32_1 = arith.constant 0 : i32
    return %c0_i32, %c0_i32_0 : i32, i32
  }
  func.func @transform_7(%arg0: i32) -> (i32, i32) {
    %c0_i32 = arith.constant 0 : i32
    %c0_i32_0 = arith.constant 0 : i32
    %c0_i32_1 = arith.constant 0 : i32
    return %c0_i32, %c0_i32_0 : i32, i32
  }
  func.func @transform_8(%arg0: i32) -> (i32, i32) {
    %c0_i32 = arith.constant 0 : i32
    %c0_i32_0 = arith.constant 0 : i32
    %c0_i32_1 = arith.constant 0 : i32
    return %c0_i32, %c0_i32_0 : i32, i32
  }
  func.func @transform_9(%arg0: i32) -> (i32, i32) {
    %c0_i32 = arith.constant 0 : i32
    %c0_i32_0 = arith.constant 0 : i32
    %c0_i32_1 = arith.constant 0 : i32
    return %c0_i32, %c0_i32_0 : i32, i32
  }
  func.func @transform_10(%arg0: i32) -> (i32, i32) {
    %c0_i32 = arith.constant 0 : i32
    %c0_i32_0 = arith.constant 0 : i32
    %c0_i32_1 = arith.constant 0 : i32
    return %c0_i32, %c0_i32_0 : i32, i32
  }
  func.func @transform_11(%arg0: i32) -> (i32, i32) {
    %c0_i32 = arith.constant 0 : i32
    %c0_i32_0 = arith.constant 0 : i32
    %c0_i32_1 = arith.constant 0 : i32
    return %c0_i32, %c0_i32_0 : i32, i32
  }
  func.func @transform_12(%arg0: i32) -> (i32, i32) {
    %c0_i32 = arith.constant 0 : i32
    %c0_i32_0 = arith.constant 0 : i32
    %c0_i32_1 = arith.constant 0 : i32
    return %c0_i32, %c0_i32_0 : i32, i32
  }
}

</mosaic_0001>

<llo_original>
// kernel: train_step_loss.1
$region0: #{train_step_loss.1}
  #allocation0 [shape = 'u32[]', space=smem, size = 0x4, offset = 0x4, fixed_abs, tag = 'smem constant byte address 0x4 - core index']
  #allocation1 [shape = 'u32[144,128]{1,0:T(1,128)}', space=vmem, size = 0x12000, scoped, tag = 'internal scratch']
  %s0 = inlined_call_operand.vmem [shape: f32[1,2,5,256], index: 0, kind: input, shape index: {}]
  %s1 = inlined_call_operand.vmem [shape: f32[1,2,8], index: 1, kind: input, shape index: {}]
  %s2 = inlined_call_operand.vmem [shape: f32[1,2,1], index: 2, kind: input, shape index: {}]
  %s3 = inlined_call_operand.vmem [shape: f32[5,32], index: 3, kind: input, shape index: {}]
  %s4 = inlined_call_operand.vmem [shape: f32[9,32], index: 4, kind: input, shape index: {}]
  %s5 = inlined_call_operand.vmem [shape: f32[3,96], index: 5, kind: input, shape index: {}]
  %s6 = inlined_call_operand.vmem [shape: f32[256,32], index: 6, kind: input, shape index: {}]
  %s7 = inlined_call_operand.vmem [shape: f32[32,96], index: 7, kind: input, shape index: {}]
  %s8 = inlined_call_operand.vmem [shape: f32[32,32], index: 8, kind: input, shape index: {}]
  %s9 = inlined_call_operand.vmem [shape: f32[32,64], index: 9, kind: input, shape index: {}]
  %s10 = inlined_call_operand.vmem [shape: f32[64,32], index: 10, kind: input, shape index: {}]
  %s11 = inlined_call_operand.vmem [shape: f32[32,8], index: 11, kind: input, shape index: {}]
  %s12 = inlined_call_operand.hbm [shape: f32[1,1], index: 12, kind: output, shape index: {}]
  %s13 = sld [smem:[#allocation0]]
  $region62: #{train_step_loss.1} parent=0
    _
  %s15 = ssub.s32 1, %s13
  %s16 = scalar_select 0, %s15, %s13
  $region1: #{train_step_loss.1} parent=0
    #allocation2 [shape = 'u8[512]{0}', space=vmem, size = 0x400, scoped, tag = 'output window, operand 0, single buffered']
    #allocation3 [shape = 's32[1]{0}', space=sflag, size = 0x4, scoped, tag = 'scoped memory for train_step_loss.1']
    %17 = vsyncpa [#allocation3], 0
    // Predicated region
    $region2: #{train_step_loss.1} parent=1 // pred_check
      _
    $region3: #{train_step_loss.1} parent=1 // pred_check_branch
      %19 = sbr.rel (0) target = $region5
    $region4: #{train_step_loss.1} parent=1 // pred_region
      _
    $region5: #{train_step_loss.1} parent=1 // pred_fallthru
      _
    // Predicated region
    $region6: #{train_step_loss.1} parent=1 // pred_check
      _
    $region7: #{train_step_loss.1} parent=1 // pred_check_branch
      %21 = sbr.rel (0) target = $region9
    $region8: #{train_step_loss.1} parent=1 // pred_region
      _
    $region9: #{train_step_loss.1} parent=1 // pred_fallthru
      _
    // Predicated region
    $region10: #{train_step_loss.1} parent=1 // pred_check
      _
    $region11: #{train_step_loss.1} parent=1 // pred_check_branch
      %23 = sbr.rel (0) target = $region13
    $region12: #{train_step_loss.1} parent=1 // pred_region
      _
    $region13: #{train_step_loss.1} parent=1 // pred_fallthru
      _
    // Predicated region
    $region14: #{train_step_loss.1} parent=1 // pred_check
      _
    $region15: #{train_step_loss.1} parent=1 // pred_check_branch
      %25 = sbr.rel (0) target = $region17
    $region16: #{train_step_loss.1} parent=1 // pred_region
      _
    $region17: #{train_step_loss.1} parent=1 // pred_fallthru
      _
    // Predicated region
    $region18: #{train_step_loss.1} parent=1 // pred_check
      _
    $region19: #{train_step_loss.1} parent=1 // pred_check_branch
      %27 = sbr.rel (0) target = $region21
    $region20: #{train_step_loss.1} parent=1 // pred_region
      _
    $region21: #{train_step_loss.1} parent=1 // pred_fallthru
      _
    // Predicated region
    $region22: #{train_step_loss.1} parent=1 // pred_check
      _
    $region23: #{train_step_loss.1} parent=1 // pred_check_branch
      %29 = sbr.rel (0) target = $region25
    $region24: #{train_step_loss.1} parent=1 // pred_region
      _
    $region25: #{train_step_loss.1} parent=1 // pred_fallthru
      _
    // Predicated region
    $region26: #{train_step_loss.1} parent=1 // pred_check
      _
    $region27: #{train_step_loss.1} parent=1 // pred_check_branch
      %31 = sbr.rel (0) target = $region29
    $region28: #{train_step_loss.1} parent=1 // pred_region
      _
    $region29: #{train_step_loss.1} parent=1 // pred_fallthru
      _
    // Predicated region
    $region30: #{train_step_loss.1} parent=1 // pred_check
      _
    $region31: #{train_step_loss.1} parent=1 // pred_check_branch
      %33 = sbr.rel (0) target = $region33
    $region32: #{train_step_loss.1} parent=1 // pred_region
      _
    $region33: #{train_step_loss.1} parent=1 // pred_fallthru
      _
    // Predicated region
    $region34: #{train_step_loss.1} parent=1 // pred_check
      _
    $region35: #{train_step_loss.1} parent=1 // pred_check_branch
      %35 = sbr.rel (0) target = $region37
    $region36: #{train_step_loss.1} parent=1 // pred_region
      _
    $region37: #{train_step_loss.1} parent=1 // pred_fallthru
      _
    // Predicated region
    $region38: #{train_step_loss.1} parent=1 // pred_check
      _
    $region39: #{train_step_loss.1} parent=1 // pred_check_branch
      %37 = sbr.rel (0) target = $region41
    $region40: #{train_step_loss.1} parent=1 // pred_region
      _
    $region41: #{train_step_loss.1} parent=1 // pred_fallthru
      _
    // Predicated region
    $region42: #{train_step_loss.1} parent=1 // pred_check
      _
    $region43: #{train_step_loss.1} parent=1 // pred_check_branch
      %39 = sbr.rel (0) target = $region45
    $region44: #{train_step_loss.1} parent=1 // pred_region
      _
    $region45: #{train_step_loss.1} parent=1 // pred_fallthru
      _
    // Predicated region
    $region46: #{train_step_loss.1} parent=1 // pred_check
      _
    $region47: #{train_step_loss.1} parent=1 // pred_check_branch
      %41 = sbr.rel (0) target = $region49
    $region48: #{train_step_loss.1} parent=1 // pred_region
      _
    $region49: #{train_step_loss.1} parent=1 // pred_fallthru
      _
    %v42 = vld [vmem:[%s4] sm:$0xff]
    %v43 = vld [vmem:[%s4 + $0x8] sm:$0x1]
    %v44 = vld [vmem:[%s5] sm:$0x7]
    %v45 = vld [vmem:[%s0] sm:$0x1f]
    %v46 = vld [vmem:[%s0 + $0x8] sm:$0x1f]
    %v47 = vld [vmem:[%s0 + $0x10] sm:$0x1f]
    %v48 = vld [vmem:[%s0 + $0x18] sm:$0x1f]
    %v53 = vcombine.low %v45, %v46
    %v54 = vcombine.high %v45, %v46
    %v56 = vunpack.c.l.s4 1966171168
    %v57 = vunpack.c.0.s8 %v56
    %v58 = vlaneseq
    %v59 = vshrl.u32 %v58, 7
    %v60 = vsub.s32 %v57, %v59
    %v61 = vrot.slane %v53, %v60
    %v63 = vunpack.c.l.s4 1966171168
    %v64 = vunpack.c.0.s8 %v63
    %v65 = vlaneseq
    %v66 = vshrl.u32 %v65, 7
    %v67 = vsub.s32 %v64, %v66
    %v68 = vrot.slane %v54, %v67
    %v69 = vcombine.high %v61, %v61
    %v71 = vunpack.c.l.s4 1966171168
    %v72 = vunpack.c.0.s8 %v71
    %v73 = vlaneseq
    %v74 = vshrl.u32 %v73, 7
    %v75 = vsub.s32 %v72, %v74
    %v76 = vrot.slane %v61, %v75
    %v78 = vunpack.c.l.s4 1966171168
    %v79 = vunpack.c.0.s8 %v78
    %v80 = vlaneseq
    %v81 = vshrl.u32 %v80, 7
    %v82 = vsub.s32 %v79, %v81
    %v83 = vrot.slane %v68, %v82
    %v85 = vunpack.c.l.s4 1966171168
    %v86 = vunpack.c.0.s8 %v85
    %v87 = vlaneseq
    %v88 = vshrl.u32 %v87, 7
    %v89 = vsub.s32 %v86, %v88
    %v90 = vrot.slane %v69, %v89
    %v91 = vcombine.high %v76, %v76
    %v92 = vcombine.high %v90, %v90
    %v93 = vcombine.low %v47, %v48
    %v94 = vcombine.high %v47, %v48
    %v96 = vunpack.c.l.s4 1966171168
    %v97 = vunpack.c.0.s8 %v96
    %v98 = vlaneseq
    %v99 = vshrl.u32 %v98, 7
    %v100 = vsub.s32 %v97, %v99
    %v101 = vrot.slane %v93, %v100
    %v103 = vunpack.c.l.s4 1966171168
    %v104 = vunpack.c.0.s8 %v103
    %v105 = vlaneseq
    %v106 = vshrl.u32 %v105, 7
    %v107 = vsub.s32 %v104, %v106
    %v108 = vrot.slane %v94, %v107
    %v109 = vcombine.high %v101, %v101
    %v111 = vunpack.c.l.s4 1966171168
    %v112 = vunpack.c.0.s8 %v111
    %v113 = vlaneseq
    %v114 = vshrl.u32 %v113, 7
    %v115 = vsub.s32 %v112, %v114
    %v116 = vrot.slane %v101, %v115
    %v118 = vunpack.c.l.s4 1966171168
    %v119 = vunpack.c.0.s8 %v118
    %v120 = vlaneseq
    %v121 = vshrl.u32 %v120, 7
    %v122 = vsub.s32 %v119, %v121
    %v123 = vrot.slane %v108, %v122
    %v125 = vunpack.c.l.s4 1966171168
    %v126 = vunpack.c.0.s8 %v125
    %v127 = vlaneseq
    %v128 = vshrl.u32 %v127, 7
    %v129 = vsub.s32 %v126, %v128
    %v130 = vrot.slane %v109, %v129
    %v131 = vcombine.high %v116, %v116
    %v132 = vcombine.high %v130, %v130
    %v133 = vld [vmem:[%s6] sm:$0xff]
    %v134 = vld [vmem:[%s6 + $0x8] sm:$0xff]
    %v135 = vld [vmem:[%s6 + $0x10] sm:$0xff]
    %v136 = vld [vmem:[%s6 + $0x18] sm:$0xff]
    %v137 = vld [vmem:[%s6 + $0x20] sm:$0xff]
    %v138 = vld [vmem:[%s6 + $0x28] sm:$0xff]
    %v139 = vld [vmem:[%s6 + $0x30] sm:$0xff]
    %v140 = vld [vmem:[%s6 + $0x38] sm:$0xff]
    %v141 = vld [vmem:[%s6 + $0x40] sm:$0xff]
    %v142 = vld [vmem:[%s6 + $0x48] sm:$0xff]
    %v143 = vld [vmem:[%s6 + $0x50] sm:$0xff]
    %v144 = vld [vmem:[%s6 + $0x58] sm:$0xff]
    %v145 = vld [vmem:[%s6 + $0x60] sm:$0xff]
    %v146 = vld [vmem:[%s6 + $0x68] sm:$0xff]
    %v147 = vld [vmem:[%s6 + $0x70] sm:$0xff]
    %v148 = vld [vmem:[%s6 + $0x78] sm:$0xff]
    %v149 = vld [vmem:[%s6 + $0x80] sm:$0xff]
    %v150 = vld [vmem:[%s6 + $0x88] sm:$0xff]
    %v151 = vld [vmem:[%s6 + $0x90] sm:$0xff]
    %v152 = vld [vmem:[%s6 + $0x98] sm:$0xff]
    %v153 = vld [vmem:[%s6 + $0xa0] sm:$0xff]
    %v154 = vld [vmem:[%s6 + $0xa8] sm:$0xff]
    %v155 = vld [vmem:[%s6 + $0xb0] sm:$0xff]
    %v156 = vld [vmem:[%s6 + $0xb8] sm:$0xff]
    %v157 = vld [vmem:[%s6 + $0xc0] sm:$0xff]
    %v158 = vld [vmem:[%s6 + $0xc8] sm:$0xff]
    %v159 = vld [vmem:[%s6 + $0xd0] sm:$0xff]
    %v160 = vld [vmem:[%s6 + $0xd8] sm:$0xff]
    %v161 = vld [vmem:[%s6 + $0xe0] sm:$0xff]
    %v162 = vld [vmem:[%s6 + $0xe8] sm:$0xff]
    %v163 = vld [vmem:[%s6 + $0xf0] sm:$0xff]
    %v164 = vld [vmem:[%s6 + $0xf8] sm:$0xff]
    %v165 = vlaneseq
    %v166 = vshrl.u32 %v165, 7
    %v167 = vsub.s32 0, %v166
    %v168 = vrot.slane %v42, %v167
    %v169 = vcombine.low %v76, %v90
    %v170 = vcombine.low %v91, %v92
    %v171 = vcombine.low %v83, %v116
    %v172 = vcombine.low %v130, %v131
    %v174 = vunpack.c.l.s4 1966171168
    %v175 = vunpack.c.0.s8 %v174
    %v176 = vlaneseq
    %v177 = vshrl.u32 %v176, 7
    %v178 = vsub.s32 %v175, %v177
    %v179 = vrot.slane %v169, %v178
    %v181 = vunpack.c.l.s4 1966171168
    %v182 = vunpack.c.0.s8 %v181
    %v183 = vlaneseq
    %v184 = vshrl.u32 %v183, 7
    %v185 = vsub.s32 %v182, %v184
    %v186 = vrot.slane %v170, %v185
    %v188 = vunpack.c.l.s4 1966171168
    %v189 = vunpack.c.0.s8 %v188
    %v190 = vlaneseq
    %v191 = vshrl.u32 %v190, 7
    %v192 = vsub.s32 %v189, %v191
    %v193 = vrot.slane %v171, %v192
    %v195 = vunpack.c.l.s4 1966171168
    %v196 = vunpack.c.0.s8 %v195
    %v197 = vlaneseq
    %v198 = vshrl.u32 %v197, 7
    %v199 = vsub.s32 %v196, %v198
    %v200 = vrot.slane %v172, %v199
    %v201 = vcombine.low %v179, %v186
    %v202 = vcombine.high %v179, %v186
    %v203 = vcombine.low %v193, %v200
    %v204 = vcombine.high %v193, %v200
    %v206 = vunpack.c.l.s4 1966171168
    %v207 = vunpack.c.0.s8 %v206
    %v208 = vlaneseq
    %v209 = vshrl.u32 %v208, 7
    %v210 = vsub.s32 %v207, %v209
    %v211 = vrot.slane %v201, %v210
    %v213 = vunpack.c.l.s4 1966171168
    %v214 = vunpack.c.0.s8 %v213
    %v215 = vlaneseq
    %v216 = vshrl.u32 %v215, 7
    %v217 = vsub.s32 %v214, %v216
    %v218 = vrot.slane %v202, %v217
    %v220 = vunpack.c.l.s4 1966171168
    %v221 = vunpack.c.0.s8 %v220
    %v222 = vlaneseq
    %v223 = vshrl.u32 %v222, 7
    %v224 = vsub.s32 %v221, %v223
    %v225 = vrot.slane %v203, %v224
    %v227 = vunpack.c.l.s4 1966171168
    %v228 = vunpack.c.0.s8 %v227
    %v229 = vlaneseq
    %v230 = vshrl.u32 %v229, 7
    %v231 = vsub.s32 %v228, %v230
    %v232 = vrot.slane %v204, %v231
    %v233 = vcombine.low %v211, %v225
    %v234 = vcombine.low %v218, %v232
    %v235 = vcombine.low %v132, %v123
    %v237 = vunpack.c.l.s4 1966171168
    %v238 = vunpack.c.0.s8 %v237
    %v239 = vlaneseq
    %v240 = vshrl.u32 %v239, 7
    %v241 = vsub.s32 %v238, %v240
    %v242 = vrot.slane %v235, %v241
    %v243 = vcombine.high %v242, %v242
    %v245 = vunpack.c.l.s4 1966171168
    %v246 = vunpack.c.0.s8 %v245
    %v247 = vlaneseq
    %v248 = vshrl.u32 %v247, 7
    %v249 = vsub.s32 %v246, %v248
    %v250 = vrot.slane %v242, %v249
    %v252 = vunpack.c.l.s4 1966171168
    %v253 = vunpack.c.0.s8 %v252
    %v254 = vlaneseq
    %v255 = vshrl.u32 %v254, 7
    %v256 = vsub.s32 %v253, %v255
    %v257 = vrot.slane %v243, %v256
    %262 = vmatprep.subr.mxu0 0.0
    %263 = vmatpush1.msra.mxu0 %v148
    %264 = vmatprep.subr.mxu0 0.0
    %265 = vmatpush1.msra.mxu0 %v147
    %266 = vmatprep.subr.mxu0 0.0
    %267 = vmatpush1.msra.mxu0 %v146
    %268 = vmatprep.subr.mxu0 0.0
    %269 = vmatpush1.msra.mxu0 %v145
    %270 = vmatprep.subr.mxu0 0.0
    %271 = vmatpush1.msra.mxu0 %v144
    %272 = vmatprep.subr.mxu0 0.0
    %273 = vmatpush1.msra.mxu0 %v143
    %274 = vmatprep.subr.mxu0 0.0
    %275 = vmatpush1.msra.mxu0 %v142
    %276 = vmatprep.subr.mxu0 0.0
    %277 = vmatpush1.msra.mxu0 %v141
    %278 = vmatprep.subr.mxu0 0.0
    %279 = vmatpush1.msra.mxu0 %v140
    %280 = vmatprep.subr.mxu0 0.0
    %281 = vmatpush1.msra.mxu0 %v139
    %282 = vmatprep.subr.mxu0 0.0
    %283 = vmatpush1.msra.mxu0 %v138
    %284 = vmatprep.subr.mxu0 0.0
    %285 = vmatpush1.msra.mxu0 %v137
    %286 = vmatprep.subr.mxu0 0.0
    %287 = vmatpush1.msra.mxu0 %v136
    %288 = vmatprep.subr.mxu0 0.0
    %289 = vmatpush1.msra.mxu0 %v135
    %290 = vmatprep.subr.mxu0 0.0
    %291 = vmatpush1.msra.mxu0 %v134
    %292 = vmatprep.subr.mxu0 0.0
    %293 = vmatpush1.msra.mxu0 %v133
    %294 = vmatprep.subr.mxu0 0.0
    %295 = vmatpush2.msra.mxu0 %v164
    %296 = vmatprep.subr.mxu0 0.0
    %297 = vmatpush2.msra.mxu0 %v163
    %298 = vmatprep.subr.mxu0 0.0
    %299 = vmatpush2.msra.mxu0 %v162
    %300 = vmatprep.subr.mxu0 0.0
    %301 = vmatpush2.msra.mxu0 %v161
    %302 = vmatprep.subr.mxu0 0.0
    %303 = vmatpush2.msra.mxu0 %v160
    %304 = vmatprep.subr.mxu0 0.0
    %305 = vmatpush2.msra.mxu0 %v159
    %306 = vmatprep.subr.mxu0 0.0
    %307 = vmatpush2.msra.mxu0 %v158
    %308 = vmatprep.subr.mxu0 0.0
    %309 = vmatpush2.msra.mxu0 %v157
    %310 = vmatprep.subr.mxu0 0.0
    %311 = vmatpush2.msra.mxu0 %v156
    %312 = vmatprep.subr.mxu0 0.0
    %313 = vmatpush2.msra.mxu0 %v155
    %314 = vmatprep.subr.mxu0 0.0
    %315 = vmatpush2.msra.mxu0 %v154
    %316 = vmatprep.subr.mxu0 0.0
    %317 = vmatpush2.msra.mxu0 %v153
    %318 = vmatprep.subr.mxu0 0.0
    %319 = vmatpush2.msra.mxu0 %v152
    %320 = vmatprep.subr.mxu0 0.0
    %321 = vmatpush2.msra.mxu0 %v151
    %322 = vmatprep.subr.mxu0 0.0
    %323 = vmatpush2.msra.mxu0 %v150
    %324 = vmatprep.subr.mxu0 0.0
    %325 = vmatpush2.msra.mxu0 %v149
    %326 = vmatprep.mubr.f32.mxu0 %v234
    %327 = vmatmul.mubr.f32.gmra.mxu0 %v233
    %v328 = vpop.f32.mrf.mxu0
    %v329 = vadd.f32 %v168, %v328
    %v330 = vpop.f32.mrf.mxu0
    %331 = vmatprep.mubr.f32.mxu0 %v257
    %332 = vmatmul.mubr.f32.gmra.mxu0 %v250
    %v333 = vpop.f32.mrf.mxu0
    %v334 = vadd.f32 %v168, %v333
    %v335 = vpop.f32.mrf.mxu0
    %336 = vdwg.mxu0
    %v339 = vcombine.high %v329, %v329
    %v341 = vunpack.c.l.s4 1966171168
    %v342 = vunpack.c.0.s8 %v341
    %v343 = vlaneseq
    %v344 = vshrl.u32 %v343, 7
    %v345 = vsub.s32 %v342, %v344
    %v346 = vrot.slane %v329, %v345
    %v348 = vunpack.c.l.s4 1966171168
    %v349 = vunpack.c.0.s8 %v348
    %v350 = vlaneseq
    %v351 = vshrl.u32 %v350, 7
    %v352 = vsub.s32 %v349, %v351
    %v353 = vrot.slane %v339, %v352
    %v354 = vcombine.high %v346, %v346
    %v355 = vcombine.high %v353, %v353
    %v357 = vunpack.c.l.s4 1966171168
    %v358 = vunpack.c.0.s8 %v357
    %v359 = vlaneseq
    %v360 = vshrl.u32 %v359, 7
    %v361 = vsub.s32 %v358, %v360
    %v362 = vrot.slane %v346, %v361
    %v364 = vunpack.c.l.s4 1966171168
    %v365 = vunpack.c.0.s8 %v364
    %v366 = vlaneseq
    %v367 = vshrl.u32 %v366, 7
    %v368 = vsub.s32 %v365, %v367
    %v369 = vrot.slane %v353, %v368
    %v371 = vunpack.c.l.s4 1966171168
    %v372 = vunpack.c.0.s8 %v371
    %v373 = vlaneseq
    %v374 = vshrl.u32 %v373, 7
    %v375 = vsub.s32 %v372, %v374
    %v376 = vrot.slane %v354, %v375
    %v378 = vunpack.c.l.s4 1966171168
    %v379 = vunpack.c.0.s8 %v378
    %v380 = vlaneseq
    %v381 = vshrl.u32 %v380, 7
    %v382 = vsub.s32 %v379, %v381
    %v383 = vrot.slane %v355, %v382
    %v384 = vcombine.high %v362, %v362
    %v385 = vcombine.high %v369, %v369
    %v386 = vcombine.high %v376, %v376
    %v387 = vcombine.high %v383, %v383
    %v389 = vunpack.c.l.s4 1966171168
    %v390 = vunpack.c.0.s8 %v389
    %v391 = vlaneseq
    %v392 = vshrl.u32 %v391, 7
    %v393 = vsub.s32 %v390, %v392
    %v394 = vrot.slane %v334, %v393
    %v395 = vcombine.high %v394, %v394
    %v397 = vunpack.c.l.s4 1966171168
    %v398 = vunpack.c.0.s8 %v397
    %v399 = vlaneseq
    %v400 = vshrl.u32 %v399, 7
    %v401 = vsub.s32 %v398, %v400
    %v402 = vrot.slane %v394, %v401
    %v404 = vunpack.c.l.s4 1966171168
    %v405 = vunpack.c.0.s8 %v404
    %v406 = vlaneseq
    %v407 = vshrl.u32 %v406, 7
    %v408 = vsub.s32 %v405, %v407
    %v409 = vrot.slane %v395, %v408
    %v420 = vlaneseq
    %v421 = vshrl.u32 %v420, 7
    %v422 = vld [vmem:[%s3] sm:$0x1f]
    %vm423 = vcmp.eq.s32.totalorder %v421, 0
    %v425 = vcombine.high %v422, %v422
    %v427 = vunpack.c.l.s4 1966171168
    %v428 = vunpack.c.0.s8 %v427
    %v429 = vlaneseq
    %v430 = vshrl.u32 %v429, 7
    %v431 = vsub.s32 %v428, %v430
    %v432 = vrot.slane %v422, %v431
    %v434 = vunpack.c.l.s4 1966171168
    %v435 = vunpack.c.0.s8 %v434
    %v436 = vlaneseq
    %v437 = vshrl.u32 %v436, 7
    %v438 = vsub.s32 %v435, %v437
    %v439 = vrot.slane %v425, %v438
    %v440 = vcombine.high %v432, %v432
    %v442 = vunpack.c.l.s4 1966171168
    %v443 = vunpack.c.0.s8 %v442
    %v444 = vlaneseq
    %v445 = vshrl.u32 %v444, 7
    %v446 = vsub.s32 %v443, %v445
    %v447 = vrot.slane %v432, %v446
    %v449 = vunpack.c.l.s4 1966171168
    %v450 = vunpack.c.0.s8 %v449
    %v451 = vlaneseq
    %v452 = vshrl.u32 %v451, 7
    %v453 = vsub.s32 %v450, %v452
    %v454 = vrot.slane %v439, %v453
    %v456 = vunpack.c.l.s4 1966171168
    %v457 = vunpack.c.0.s8 %v456
    %v458 = vlaneseq
    %v459 = vshrl.u32 %v458, 7
    %v460 = vsub.s32 %v457, %v459
    %v461 = vrot.slane %v440, %v460
    %v462 = vcombine.high %v447, %v447
    %v463 = vcombine.high %v461, %v461
    %v469 = vadd.f32 %v362, %v447
    %v470 = vadd.f32 %v376, %v461
    %v471 = vadd.f32 %v384, %v462
    %v472 = vadd.f32 %v386, %v463
    %v473 = vadd.f32 %v369, %v454
    %v474 = vadd.f32 %v383, %v447
    %v475 = vadd.f32 %v385, %v461
    %v476 = vadd.f32 %v387, %v462
    %v477 = vadd.f32 %v402, %v463
    %v478 = vadd.f32 %v409, %v454
    %v489 = vcombine.low %v469, %v470
    %v490 = vcombine.low %v471, %v472
    %v492 = vunpack.c.l.s4 1966171168
    %v493 = vunpack.c.0.s8 %v492
    %v494 = vlaneseq
    %v495 = vshrl.u32 %v494, 7
    %v496 = vsub.s32 %v493, %v495
    %v497 = vrot.slane %v489, %v496
    %v499 = vunpack.c.l.s4 1966171168
    %v500 = vunpack.c.0.s8 %v499
    %v501 = vlaneseq
    %v502 = vshrl.u32 %v501, 7
    %v503 = vsub.s32 %v500, %v502
    %v504 = vrot.slane %v490, %v503
    %v506 = vunpack.c.l.s4 1966171168
    %v507 = vunpack.c.0.s8 %v506
    %v508 = vlaneseq
    %v509 = vshrl.u32 %v508, 7
    %v510 = vsub.s32 %v507, %v509
    %v511 = vrot.slane %v473, %v510
    %v512 = vcombine.low %v497, %v504
    %v514 = vunpack.c.l.s4 1966171168
    %v515 = vunpack.c.0.s8 %v514
    %v516 = vlaneseq
    %v517 = vshrl.u32 %v516, 7
    %v518 = vsub.s32 %v515, %v517
    %v519 = vrot.slane %v512, %v518
    %v521 = vunpack.c.l.s4 1966171168
    %v522 = vunpack.c.0.s8 %v521
    %v523 = vlaneseq
    %v524 = vshrl.u32 %v523, 7
    %v525 = vsub.s32 %v522, %v524
    %v526 = vrot.slane %v511, %v525
    %v527 = vcombine.low %v519, %v526
    %v528 = vcombine.low %v474, %v475
    %v529 = vcombine.low %v476, %v477
    %v531 = vunpack.c.l.s4 1966171168
    %v532 = vunpack.c.0.s8 %v531
    %v533 = vlaneseq
    %v534 = vshrl.u32 %v533, 7
    %v535 = vsub.s32 %v532, %v534
    %v536 = vrot.slane %v528, %v535
    %v538 = vunpack.c.l.s4 1966171168
    %v539 = vunpack.c.0.s8 %v538
    %v540 = vlaneseq
    %v541 = vshrl.u32 %v540, 7
    %v542 = vsub.s32 %v539, %v541
    %v543 = vrot.slane %v529, %v542
    %v545 = vunpack.c.l.s4 1966171168
    %v546 = vunpack.c.0.s8 %v545
    %v547 = vlaneseq
    %v548 = vshrl.u32 %v547, 7
    %v549 = vsub.s32 %v546, %v548
    %v550 = vrot.slane %v478, %v549
    %v551 = vcombine.low %v536, %v543
    %v553 = vunpack.c.l.s4 1966171168
    %v554 = vunpack.c.0.s8 %v553
    %v555 = vlaneseq
    %v556 = vshrl.u32 %v555, 7
    %v557 = vsub.s32 %v554, %v556
    %v558 = vrot.slane %v551, %v557
    %v560 = vunpack.c.l.s4 1966171168
    %v561 = vunpack.c.0.s8 %v560
    %v562 = vlaneseq
    %v563 = vshrl.u32 %v562, 7
    %v564 = vsub.s32 %v561, %v563
    %v565 = vrot.slane %v550, %v564
    %v566 = vcombine.low %v558, %v565
    %v569 = vsel %vm423, %v422, %v527
    %v570 = vsel %vm423, %v422, %v566
    %v573 = vcombine.high %v569, %v569
    %v575 = vunpack.c.l.s4 1966171168
    %v576 = vunpack.c.0.s8 %v575
    %v577 = vlaneseq
    %v578 = vshrl.u32 %v577, 7
    %v579 = vsub.s32 %v576, %v578
    %v580 = vrot.slane %v569, %v579
    %v582 = vunpack.c.l.s4 1966171168
    %v583 = vunpack.c.0.s8 %v582
    %v584 = vlaneseq
    %v585 = vshrl.u32 %v584, 7
    %v586 = vsub.s32 %v583, %v585
    %v587 = vrot.slane %v573, %v586
    %v588 = vcombine.high %v580, %v580
    %v590 = vunpack.c.l.s4 1966171168
    %v591 = vunpack.c.0.s8 %v590
    %v592 = vlaneseq
    %v593 = vshrl.u32 %v592, 7
    %v594 = vsub.s32 %v591, %v593
    %v595 = vrot.slane %v580, %v594
    %v597 = vunpack.c.l.s4 1966171168
    %v598 = vunpack.c.0.s8 %v597
    %v599 = vlaneseq
    %v600 = vshrl.u32 %v599, 7
    %v601 = vsub.s32 %v598, %v600
    %v602 = vrot.slane %v587, %v601
    %v604 = vunpack.c.l.s4 1966171168
    %v605 = vunpack.c.0.s8 %v604
    %v606 = vlaneseq
    %v607 = vshrl.u32 %v606, 7
    %v608 = vsub.s32 %v605, %v607
    %v609 = vrot.slane %v588, %v608
    %v610 = vcombine.high %v595, %v595
    %v611 = vcombine.high %v609, %v609
    %v612 = vcombine.high %v570, %v570
    %v614 = vunpack.c.l.s4 1966171168
    %v615 = vunpack.c.0.s8 %v614
    %v616 = vlaneseq
    %v617 = vshrl.u32 %v616, 7
    %v618 = vsub.s32 %v615, %v617
    %v619 = vrot.slane %v570, %v618
    %v621 = vunpack.c.l.s4 1966171168
    %v622 = vunpack.c.0.s8 %v621
    %v623 = vlaneseq
    %v624 = vshrl.u32 %v623, 7
    %v625 = vsub.s32 %v622, %v624
    %v626 = vrot.slane %v612, %v625
    %v627 = vcombine.high %v619, %v619
    %v629 = vunpack.c.l.s4 1966171168
    %v630 = vunpack.c.0.s8 %v629
    %v631 = vlaneseq
    %v632 = vshrl.u32 %v631, 7
    %v633 = vsub.s32 %v630, %v632
    %v634 = vrot.slane %v619, %v633
    %v636 = vunpack.c.l.s4 1966171168
    %v637 = vunpack.c.0.s8 %v636
    %v638 = vlaneseq
    %v639 = vshrl.u32 %v638, 7
    %v640 = vsub.s32 %v637, %v639
    %v641 = vrot.slane %v626, %v640
    %v643 = vunpack.c.l.s4 1966171168
    %v644 = vunpack.c.0.s8 %v643
    %v645 = vlaneseq
    %v646 = vshrl.u32 %v645, 7
    %v647 = vsub.s32 %v644, %v646
    %v648 = vrot.slane %v627, %v647
    %v649 = vcombine.high %v634, %v634
    %v650 = vcombine.high %v648, %v648
    %v661 = vcombine.low %v595, %v609
    %v662 = vcombine.low %v610, %v611
    %v663 = vcombine.low %v602, %v634
    %v664 = vcombine.low %v648, %v649
    %v666 = vunpack.c.l.s4 1966171168
    %v667 = vunpack.c.0.s8 %v666
    %v668 = vlaneseq
    %v669 = vshrl.u32 %v668, 7
    %v670 = vsub.s32 %v667, %v669
    %v671 = vrot.slane %v661, %v670
    %v673 = vunpack.c.l.s4 1966171168
    %v674 = vunpack.c.0.s8 %v673
    %v675 = vlaneseq
    %v676 = vshrl.u32 %v675, 7
    %v677 = vsub.s32 %v674, %v676
    %v678 = vrot.slane %v662, %v677
    %v680 = vunpack.c.l.s4 1966171168
    %v681 = vunpack.c.0.s8 %v680
    %v682 = vlaneseq
    %v683 = vshrl.u32 %v682, 7
    %v684 = vsub.s32 %v681, %v683
    %v685 = vrot.slane %v663, %v684
    %v687 = vunpack.c.l.s4 1966171168
    %v688 = vunpack.c.0.s8 %v687
    %v689 = vlaneseq
    %v690 = vshrl.u32 %v689, 7
    %v691 = vsub.s32 %v688, %v690
    %v692 = vrot.slane %v664, %v691
    %v693 = vcombine.low %v671, %v678
    %v694 = vcombine.low %v685, %v692
    %v696 = vunpack.c.l.s4 1966171168
    %v697 = vunpack.c.0.s8 %v696
    %v698 = vlaneseq
    %v699 = vshrl.u32 %v698, 7
    %v700 = vsub.s32 %v697, %v699
    %v701 = vrot.slane %v693, %v700
    %v703 = vunpack.c.l.s4 1966171168
    %v704 = vunpack.c.0.s8 %v703
    %v705 = vlaneseq
    %v706 = vshrl.u32 %v705, 7
    %v707 = vsub.s32 %v704, %v706
    %v708 = vrot.slane %v694, %v707
    %v709 = vcombine.low %v701, %v708
    %v710 = vcombine.low %v650, %v641
    %v712 = vunpack.c.l.s4 1966171168
    %v713 = vunpack.c.0.s8 %v712
    %v714 = vlaneseq
    %v715 = vshrl.u32 %v714, 7
    %v716 = vsub.s32 %v713, %v715
    %v717 = vrot.slane %v710, %v716
    %v719 = vunpack.c.l.s4 1966171168
    %v720 = vunpack.c.0.s8 %v719
    %v721 = vlaneseq
    %v722 = vshrl.u32 %v721, 7
    %v723 = vsub.s32 %v720, %v722
    %v724 = vrot.slane %v717, %v723
    %vm727 = vcmask 261120
    %v728 = vsel %vm727, %v709, 0.0
    %729 = vadd.xlane.f32.xlu0 %v728
    %v730 = vpop.xlane.xlu0 %729
    %vm731 = vcmask 254976
    %v732 = vsel %vm731, %v724, 0.0
    %733 = vadd.xlane.f32.xlu0 %v732
    %v734 = vpop.xlane.xlu0 %733
    %v735 = vrcp.pop 32.0
    %v736 = vmul.f32 %v730, %v735
    %v737 = vmul.f32 %v734, %v735
    %v740 = vlaneseq
    %v741 = vshrl.u32 %v740, 7
    %v742 = vsub.s32 0, %v741
    %v743 = vrot.slane %v736, %v742
    %v744 = vlaneseq
    %v745 = vshrl.u32 %v744, 7
    %v746 = vsub.s32 1, %v745
    %v747 = vrot.slane %v736, %v746
    %v748 = vlaneseq
    %v749 = vshrl.u32 %v748, 7
    %v750 = vsub.s32 2, %v749
    %v751 = vrot.slane %v736, %v750
    %v752 = vlaneseq
    %v753 = vshrl.u32 %v752, 7
    %v754 = vsub.s32 3, %v753
    %v755 = vrot.slane %v736, %v754
    %v756 = vlaneseq
    %v757 = vshrl.u32 %v756, 7
    %v758 = vsub.s32 4, %v757
    %v759 = vrot.slane %v736, %v758
    %v760 = vlaneseq
    %v761 = vshrl.u32 %v760, 7
    %v762 = vsub.s32 5, %v761
    %v763 = vrot.slane %v736, %v762
    %v764 = vlaneseq
    %v765 = vshrl.u32 %v764, 7
    %v766 = vsub.s32 6, %v765
    %v767 = vrot.slane %v736, %v766
    %v768 = vlaneseq
    %v769 = vshrl.u32 %v768, 7
    %v770 = vsub.s32 7, %v769
    %v771 = vrot.slane %v736, %v770
    %v772 = vlaneseq
    %v773 = vshrl.u32 %v772, 7
    %v774 = vsub.s32 0, %v773
    %v775 = vrot.slane %v737, %v774
    %v776 = vlaneseq
    %v777 = vshrl.u32 %v776, 7
    %v778 = vsub.s32 1, %v777
    %v779 = vrot.slane %v737, %v778
    %v790 = vsub.f32 %v595, %v743
    %v791 = vsub.f32 %v609, %v747
    %v792 = vsub.f32 %v610, %v751
    %v793 = vsub.f32 %v611, %v755
    %v794 = vsub.f32 %v602, %v759
    %v795 = vsub.f32 %v634, %v763
    %v796 = vsub.f32 %v648, %v767
    %v797 = vsub.f32 %v649, %v771
    %v798 = vsub.f32 %v650, %v775
    %v799 = vsub.f32 %v641, %v779
    %v800 = vmul.f32 %v790, %v790
    %v801 = vmul.f32 %v791, %v791
    %v802 = vmul.f32 %v792, %v792
    %v803 = vmul.f32 %v793, %v793
    %v804 = vmul.f32 %v794, %v794
    %v805 = vmul.f32 %v795, %v795
    %v806 = vmul.f32 %v796, %v796
    %v807 = vmul.f32 %v797, %v797
    %v808 = vmul.f32 %v798, %v798
    %v809 = vmul.f32 %v799, %v799
    %v820 = vcombine.low %v800, %v801
    %v821 = vcombine.low %v802, %v803
    %v822 = vcombine.low %v804, %v805
    %v823 = vcombine.low %v806, %v807
    %v825 = vunpack.c.l.s4 1966171168
    %v826 = vunpack.c.0.s8 %v825
    %v827 = vlaneseq
    %v828 = vshrl.u32 %v827, 7
    %v829 = vsub.s32 %v826, %v828
    %v830 = vrot.slane %v820, %v829
    %v832 = vunpack.c.l.s4 1966171168
    %v833 = vunpack.c.0.s8 %v832
    %v834 = vlaneseq
    %v835 = vshrl.u32 %v834, 7
    %v836 = vsub.s32 %v833, %v835
    %v837 = vrot.slane %v821, %v836
    %v839 = vunpack.c.l.s4 1966171168
    %v840 = vunpack.c.0.s8 %v839
    %v841 = vlaneseq
    %v842 = vshrl.u32 %v841, 7
    %v843 = vsub.s32 %v840, %v842
    %v844 = vrot.slane %v822, %v843
    %v846 = vunpack.c.l.s4 1966171168
    %v847 = vunpack.c.0.s8 %v846
    %v848 = vlaneseq
    %v849 = vshrl.u32 %v848, 7
    %v850 = vsub.s32 %v847, %v849
    %v851 = vrot.slane %v823, %v850
    %v852 = vcombine.low %v830, %v837
    %v853 = vcombine.low %v844, %v851
    %v855 = vunpack.c.l.s4 1966171168
    %v856 = vunpack.c.0.s8 %v855
    %v857 = vlaneseq
    %v858 = vshrl.u32 %v857, 7
    %v859 = vsub.s32 %v856, %v858
    %v860 = vrot.slane %v852, %v859
    %v862 = vunpack.c.l.s4 1966171168
    %v863 = vunpack.c.0.s8 %v862
    %v864 = vlaneseq
    %v865 = vshrl.u32 %v864, 7
    %v866 = vsub.s32 %v863, %v865
    %v867 = vrot.slane %v853, %v866
    %v868 = vcombine.low %v860, %v867
    %v869 = vcombine.low %v808, %v809
    %v871 = vunpack.c.l.s4 1966171168
    %v872 = vunpack.c.0.s8 %v871
    %v873 = vlaneseq
    %v874 = vshrl.u32 %v873, 7
    %v875 = vsub.s32 %v872, %v874
    %v876 = vrot.slane %v869, %v875
    %v878 = vunpack.c.l.s4 1966171168
    %v879 = vunpack.c.0.s8 %v878
    %v880 = vlaneseq
    %v881 = vshrl.u32 %v880, 7
    %v882 = vsub.s32 %v879, %v881
    %v883 = vrot.slane %v876, %v882
    %v886 = vsel %vm727, %v868, 0.0
    %887 = vadd.xlane.f32.xlu0 %v886
    %v888 = vpop.xlane.xlu0 %887
    %v889 = vsel %vm731, %v883, 0.0
    %890 = vadd.xlane.f32.xlu0 %v889
    %v891 = vpop.xlane.xlu0 %890
    %v892 = vmul.f32 %v888, %v735
    %v893 = vmul.f32 %v891, %v735
    %v894 = vadd.f32 %v892, 1e-05
    %v895 = vadd.f32 %v893, 1e-05
    %v896 = vrsqrt.pop %v894
    %v897 = vrsqrt.pop %v895
    %v900 = vlaneseq
    %v901 = vshrl.u32 %v900, 7
    %v902 = vsub.s32 0, %v901
    %v903 = vrot.slane %v896, %v902
    %v904 = vlaneseq
    %v905 = vshrl.u32 %v904, 7
    %v906 = vsub.s32 1, %v905
    %v907 = vrot.slane %v896, %v906
    %v908 = vlaneseq
    %v909 = vshrl.u32 %v908, 7
    %v910 = vsub.s32 2, %v909
    %v911 = vrot.slane %v896, %v910
    %v912 = vlaneseq
    %v913 = vshrl.u32 %v912, 7
    %v914 = vsub.s32 3, %v913
    %v915 = vrot.slane %v896, %v914
    %v916 = vlaneseq
    %v917 = vshrl.u32 %v916, 7
    %v918 = vsub.s32 4, %v917
    %v919 = vrot.slane %v896, %v918
    %v920 = vlaneseq
    %v921 = vshrl.u32 %v920, 7
    %v922 = vsub.s32 5, %v921
    %v923 = vrot.slane %v896, %v922
    %v924 = vlaneseq
    %v925 = vshrl.u32 %v924, 7
    %v926 = vsub.s32 6, %v925
    %v927 = vrot.slane %v896, %v926
    %v928 = vlaneseq
    %v929 = vshrl.u32 %v928, 7
    %v930 = vsub.s32 7, %v929
    %v931 = vrot.slane %v896, %v930
    %v932 = vlaneseq
    %v933 = vshrl.u32 %v932, 7
    %v934 = vsub.s32 0, %v933
    %v935 = vrot.slane %v897, %v934
    %v936 = vlaneseq
    %v937 = vshrl.u32 %v936, 7
    %v938 = vsub.s32 1, %v937
    %v939 = vrot.slane %v897, %v938
    %v950 = vmul.f32 %v790, %v903
    %v951 = vmul.f32 %v791, %v907
    %v952 = vmul.f32 %v792, %v911
    %v953 = vmul.f32 %v793, %v915
    %v954 = vmul.f32 %v794, %v919
    %v955 = vmul.f32 %v795, %v923
    %v956 = vmul.f32 %v796, %v927
    %v957 = vmul.f32 %v797, %v931
    %v958 = vmul.f32 %v798, %v935
    %v959 = vmul.f32 %v799, %v939
    %v960 = vlaneseq
    %v961 = vshrl.u32 %v960, 7
    %v962 = vsub.s32 1, %v961
    %v963 = vrot.slane %v42, %v962
    %v965 = vcombine.high %v963, %v963
    %v967 = vunpack.c.l.s4 1966171168
    %v968 = vunpack.c.0.s8 %v967
    %v969 = vlaneseq
    %v970 = vshrl.u32 %v969, 7
    %v971 = vsub.s32 %v968, %v970
    %v972 = vrot.slane %v963, %v971
    %v974 = vunpack.c.l.s4 1966171168
    %v975 = vunpack.c.0.s8 %v974
    %v976 = vlaneseq
    %v977 = vshrl.u32 %v976, 7
    %v978 = vsub.s32 %v975, %v977
    %v979 = vrot.slane %v965, %v978
    %v980 = vcombine.high %v972, %v972
    %v981 = vcombine.high %v979, %v979
    %v983 = vunpack.c.l.s4 1966171168
    %v984 = vunpack.c.0.s8 %v983
    %v985 = vlaneseq
    %v986 = vshrl.u32 %v985, 7
    %v987 = vsub.s32 %v984, %v986
    %v988 = vrot.slane %v972, %v987
    %v990 = vunpack.c.l.s4 1966171168
    %v991 = vunpack.c.0.s8 %v990
    %v992 = vlaneseq
    %v993 = vshrl.u32 %v992, 7
    %v994 = vsub.s32 %v991, %v993
    %v995 = vrot.slane %v979, %v994
    %v997 = vunpack.c.l.s4 1966171168
    %v998 = vunpack.c.0.s8 %v997
    %v999 = vlaneseq
    %v1000 = vshrl.u32 %v999, 7
    %v1001 = vsub.s32 %v998, %v1000
    %v1002 = vrot.slane %v980, %v1001
    %v1004 = vunpack.c.l.s4 1966171168
    %v1005 = vunpack.c.0.s8 %v1004
    %v1006 = vlaneseq
    %v1007 = vshrl.u32 %v1006, 7
    %v1008 = vsub.s32 %v1005, %v1007
    %v1009 = vrot.slane %v981, %v1008
    %v1010 = vcombine.high %v988, %v988
    %v1011 = vcombine.high %v995, %v995
    %v1012 = vcombine.high %v1002, %v1002
    %v1013 = vcombine.high %v1009, %v1009
    %v1022 = vmul.f32 %v950, %v988
    %v1023 = vmul.f32 %v951, %v1002
    %v1024 = vmul.f32 %v952, %v1010
    %v1025 = vmul.f32 %v953, %v1012
    %v1026 = vmul.f32 %v954, %v995
    %v1027 = vmul.f32 %v955, %v1009
    %v1028 = vmul.f32 %v956, %v1011
    %v1029 = vmul.f32 %v957, %v1013
    %v1030 = vmul.f32 %v958, %v988
    %v1031 = vmul.f32 %v959, %v1002
    %v1032 = vlaneseq
    %v1033 = vshrl.u32 %v1032, 7
    %v1034 = vsub.s32 2, %v1033
    %v1035 = vrot.slane %v42, %v1034
    %v1037 = vcombine.high %v1035, %v1035
    %v1039 = vunpack.c.l.s4 1966171168
    %v1040 = vunpack.c.0.s8 %v1039
    %v1041 = vlaneseq
    %v1042 = vshrl.u32 %v1041, 7
    %v1043 = vsub.s32 %v1040, %v1042
    %v1044 = vrot.slane %v1035, %v1043
    %v1046 = vunpack.c.l.s4 1966171168
    %v1047 = vunpack.c.0.s8 %v1046
    %v1048 = vlaneseq
    %v1049 = vshrl.u32 %v1048, 7
    %v1050 = vsub.s32 %v1047, %v1049
    %v1051 = vrot.slane %v1037, %v1050
    %v1052 = vcombine.high %v1044, %v1044
    %v1053 = vcombine.high %v1051, %v1051
    %v1055 = vunpack.c.l.s4 1966171168
    %v1056 = vunpack.c.0.s8 %v1055
    %v1057 = vlaneseq
    %v1058 = vshrl.u32 %v1057, 7
    %v1059 = vsub.s32 %v1056, %v1058
    %v1060 = vrot.slane %v1044, %v1059
    %v1062 = vunpack.c.l.s4 1966171168
    %v1063 = vunpack.c.0.s8 %v1062
    %v1064 = vlaneseq
    %v1065 = vshrl.u32 %v1064, 7
    %v1066 = vsub.s32 %v1063, %v1065
    %v1067 = vrot.slane %v1051, %v1066
    %v1069 = vunpack.c.l.s4 1966171168
    %v1070 = vunpack.c.0.s8 %v1069
    %v1071 = vlaneseq
    %v1072 = vshrl.u32 %v1071, 7
    %v1073 = vsub.s32 %v1070, %v1072
    %v1074 = vrot.slane %v1052, %v1073
    %v1076 = vunpack.c.l.s4 1966171168
    %v1077 = vunpack.c.0.s8 %v1076
    %v1078 = vlaneseq
    %v1079 = vshrl.u32 %v1078, 7
    %v1080 = vsub.s32 %v1077, %v1079
    %v1081 = vrot.slane %v1053, %v1080
    %v1082 = vcombine.high %v1060, %v1060
    %v1083 = vcombine.high %v1067, %v1067
    %v1084 = vcombine.high %v1074, %v1074
    %v1085 = vcombine.high %v1081, %v1081
    %v1094 = vadd.f32 %v1022, %v1060
    %v1095 = vadd.f32 %v1023, %v1074
    %v1096 = vadd.f32 %v1024, %v1082
    %v1097 = vadd.f32 %v1025, %v1084
    %v1098 = vadd.f32 %v1026, %v1067
    %v1099 = vadd.f32 %v1027, %v1081
    %v1100 = vadd.f32 %v1028, %v1083
    %v1101 = vadd.f32 %v1029, %v1085
    %v1102 = vadd.f32 %v1030, %v1060
    %v1103 = vadd.f32 %v1031, %v1074
    %v1104 = vld [vmem:[%s7] sm:$0xff]
    %v1105 = vld [vmem:[%s7 + $0x8] sm:$0xff]
    %v1106 = vld [vmem:[%s7 + $0x10] sm:$0xff]
    %v1107 = vld [vmem:[%s7 + $0x18] sm:$0xff]
    %v1108 = vlaneseq
    %v1109 = vshrl.u32 %v1108, 7
    %v1110 = vsub.s32 0, %v1109
    %v1111 = vrot.slane %v44, %v1110
    %v1122 = vcombine.low %v1094, %v1095
    %v1123 = vcombine.low %v1096, %v1097
    %v1124 = vcombine.low %v1098, %v1099
    %v1125 = vcombine.low %v1100, %v1101
    %v1127 = vunpack.c.l.s4 1966171168
    %v1128 = vunpack.c.0.s8 %v1127
    %v1129 = vlaneseq
    %v1130 = vshrl.u32 %v1129, 7
    %v1131 = vsub.s32 %v1128, %v1130
    %v1132 = vrot.slane %v1122, %v1131
    %v1134 = vunpack.c.l.s4 1966171168
    %v1135 = vunpack.c.0.s8 %v1134
    %v1136 = vlaneseq
    %v1137 = vshrl.u32 %v1136, 7
    %v1138 = vsub.s32 %v1135, %v1137
    %v1139 = vrot.slane %v1123, %v1138
    %v1141 = vunpack.c.l.s4 1966171168
    %v1142 = vunpack.c.0.s8 %v1141
    %v1143 = vlaneseq
    %v1144 = vshrl.u32 %v1143, 7
    %v1145 = vsub.s32 %v1142, %v1144
    %v1146 = vrot.slane %v1124, %v1145
    %v1148 = vunpack.c.l.s4 1966171168
    %v1149 = vunpack.c.0.s8 %v1148
    %v1150 = vlaneseq
    %v1151 = vshrl.u32 %v1150, 7
    %v1152 = vsub.s32 %v1149, %v1151
    %v1153 = vrot.slane %v1125, %v1152
    %v1154 = vcombine.low %v1132, %v1139
    %v1155 = vcombine.low %v1146, %v1153
    %v1157 = vunpack.c.l.s4 1966171168
    %v1158 = vunpack.c.0.s8 %v1157
    %v1159 = vlaneseq
    %v1160 = vshrl.u32 %v1159, 7
    %v1161 = vsub.s32 %v1158, %v1160
    %v1162 = vrot.slane %v1154, %v1161
    %v1164 = vunpack.c.l.s4 1966171168
    %v1165 = vunpack.c.0.s8 %v1164
    %v1166 = vlaneseq
    %v1167 = vshrl.u32 %v1166, 7
    %v1168 = vsub.s32 %v1165, %v1167
    %v1169 = vrot.slane %v1155, %v1168
    %v1170 = vcombine.low %v1162, %v1169
    %v1171 = vcombine.low %v1102, %v1103
    %v1173 = vunpack.c.l.s4 1966171168
    %v1174 = vunpack.c.0.s8 %v1173
    %v1175 = vlaneseq
    %v1176 = vshrl.u32 %v1175, 7
    %v1177 = vsub.s32 %v1174, %v1176
    %v1178 = vrot.slane %v1171, %v1177
    %v1180 = vunpack.c.l.s4 1966171168
    %v1181 = vunpack.c.0.s8 %v1180
    %v1182 = vlaneseq
    %v1183 = vshrl.u32 %v1182, 7
    %v1184 = vsub.s32 %v1181, %v1183
    %v1185 = vrot.slane %v1178, %v1184
    %v1186 = vsel %vm727, %v1170, 0
    %v1188 = vsel %vm727, %v1185, 0
    %1190 = vmatprep.subr.mxu0 0.0
    %1191 = vmatpush1.msra.mxu0 0.0
    %1192 = vmatprep.subr.mxu0 0.0
    %1193 = vmatpush1.msra.mxu0 0.0
    %1194 = vmatprep.subr.mxu0 0.0
    %1195 = vmatpush1.msra.mxu0 0.0
    %1196 = vmatprep.subr.mxu0 0.0
    %1197 = vmatpush1.msra.mxu0 0.0
    %1198 = vmatprep.subr.mxu0 0.0
    %1199 = vmatpush1.msra.mxu0 0.0
    %1200 = vmatprep.subr.mxu0 0.0
    %1201 = vmatpush1.msra.mxu0 0.0
    %1202 = vmatprep.subr.mxu0 0.0
    %1203 = vmatpush1.msra.mxu0 0.0
    %1204 = vmatprep.subr.mxu0 0.0
    %1205 = vmatpush1.msra.mxu0 0.0
    %1206 = vmatprep.subr.mxu0 0.0
    %1207 = vmatpush1.msra.mxu0 0.0
    %1208 = vmatprep.subr.mxu0 0.0
    %1209 = vmatpush1.msra.mxu0 0.0
    %1210 = vmatprep.subr.mxu0 0.0
    %1211 = vmatpush1.msra.mxu0 0.0
    %1212 = vmatprep.subr.mxu0 0.0
    %1213 = vmatpush1.msra.mxu0 0.0
    %1214 = vmatprep.subr.mxu0 0.0
    %1215 = vmatpush1.msra.mxu0 %v1107
    %1216 = vmatprep.subr.mxu0 0.0
    %1217 = vmatpush1.msra.mxu0 %v1106
    %1218 = vmatprep.subr.mxu0 0.0
    %1219 = vmatpush1.msra.mxu0 %v1105
    %1220 = vmatprep.subr.mxu0 0.0
    %1221 = vmatpush1.msra.mxu0 %v1104
    %1222 = vmatprep.subr.mxu0 0.0
    %1223 = vmatpush2.msra.mxu0 0.0
    %1224 = vmatprep.subr.mxu0 0.0
    %1225 = vmatpush2.msra.mxu0 0.0
    %1226 = vmatprep.subr.mxu0 0.0
    %1227 = vmatpush2.msra.mxu0 0.0
    %1228 = vmatprep.subr.mxu0 0.0
    %1229 = vmatpush2.msra.mxu0 0.0
    %1230 = vmatprep.subr.mxu0 0.0
    %1231 = vmatpush2.msra.mxu0 0.0
    %1232 = vmatprep.subr.mxu0 0.0
    %1233 = vmatpush2.msra.mxu0 0.0
    %1234 = vmatprep.subr.mxu0 0.0
    %1235 = vmatpush2.msra.mxu0 0.0
    %1236 = vmatprep.subr.mxu0 0.0
    %1237 = vmatpush2.msra.mxu0 0.0
    %1238 = vmatprep.subr.mxu0 0.0
    %1239 = vmatpush2.msra.mxu0 0.0
    %1240 = vmatprep.subr.mxu0 0.0
    %1241 = vmatpush2.msra.mxu0 0.0
    %1242 = vmatprep.subr.mxu0 0.0
    %1243 = vmatpush2.msra.mxu0 0.0
    %1244 = vmatprep.subr.mxu0 0.0
    %1245 = vmatpush2.msra.mxu0 0.0
    %1246 = vmatprep.subr.mxu0 0.0
    %1247 = vmatpush2.msra.mxu0 0.0
    %1248 = vmatprep.subr.mxu0 0.0
    %1249 = vmatpush2.msra.mxu0 0.0
    %1250 = vmatprep.subr.mxu0 0.0
    %1251 = vmatpush2.msra.mxu0 0.0
    %1252 = vmatprep.subr.mxu0 0.0
    %1253 = vmatpush2.msra.mxu0 0.0
    %1254 = vmatprep.mubr.f32.mxu0 0.0
    %1255 = vmatmul.mubr.f32.gmra.mxu0 %v1186
    %v1256 = vpop.f32.mrf.mxu0
    %v1257 = vadd.f32 %v1111, %v1256
    %v1258 = vpop.f32.mrf.mxu0
    %1259 = vmatprep.mubr.f32.mxu0 0.0
    %1260 = vmatmul.mubr.f32.gmra.mxu0 %v1188
    %v1261 = vpop.f32.mrf.mxu0
    %v1262 = vadd.f32 %v1111, %v1261
    %v1263 = vpop.f32.mrf.mxu0
    %1264 = vdwg.mxu0
    %v1267 = vcombine.high %v1257, %v1257
    %v1269 = vunpack.c.l.s4 1966171168
    %v1270 = vunpack.c.0.s8 %v1269
    %v1271 = vlaneseq
    %v1272 = vshrl.u32 %v1271, 7
    %v1273 = vsub.s32 %v1270, %v1272
    %v1274 = vrot.slane %v1257, %v1273
    %v1276 = vunpack.c.l.s4 1966171168
    %v1277 = vunpack.c.0.s8 %v1276
    %v1278 = vlaneseq
    %v1279 = vshrl.u32 %v1278, 7
    %v1280 = vsub.s32 %v1277, %v1279
    %v1281 = vrot.slane %v1267, %v1280
    %v1282 = vcombine.high %v1274, %v1274
    %v1283 = vcombine.high %v1281, %v1281
    %v1285 = vunpack.c.l.s4 1966171168
    %v1286 = vunpack.c.0.s8 %v1285
    %v1287 = vlaneseq
    %v1288 = vshrl.u32 %v1287, 7
    %v1289 = vsub.s32 %v1286, %v1288
    %v1290 = vrot.slane %v1274, %v1289
    %v1292 = vunpack.c.l.s4 1966171168
    %v1293 = vunpack.c.0.s8 %v1292
    %v1294 = vlaneseq
    %v1295 = vshrl.u32 %v1294, 7
    %v1296 = vsub.s32 %v1293, %v1295
    %v1297 = vrot.slane %v1281, %v1296
    %v1299 = vunpack.c.l.s4 1966171168
    %v1300 = vunpack.c.0.s8 %v1299
    %v1301 = vlaneseq
    %v1302 = vshrl.u32 %v1301, 7
    %v1303 = vsub.s32 %v1300, %v1302
    %v1304 = vrot.slane %v1282, %v1303
    %v1306 = vunpack.c.l.s4 1966171168
    %v1307 = vunpack.c.0.s8 %v1306
    %v1308 = vlaneseq
    %v1309 = vshrl.u32 %v1308, 7
    %v1310 = vsub.s32 %v1307, %v1309
    %v1311 = vrot.slane %v1283, %v1310
    %v1312 = vcombine.high %v1290, %v1290
    %v1313 = vcombine.high %v1297, %v1297
    %v1314 = vcombine.high %v1304, %v1304
    %v1315 = vcombine.high %v1311, %v1311
    %v1317 = vunpack.c.l.s4 1966171168
    %v1318 = vunpack.c.0.s8 %v1317
    %v1319 = vlaneseq
    %v1320 = vshrl.u32 %v1319, 7
    %v1321 = vsub.s32 %v1318, %v1320
    %v1322 = vrot.slane %v1262, %v1321
    %v1323 = vcombine.high %v1322, %v1322
    %v1325 = vunpack.c.l.s4 1966171168
    %v1326 = vunpack.c.0.s8 %v1325
    %v1327 = vlaneseq
    %v1328 = vshrl.u32 %v1327, 7
    %v1329 = vsub.s32 %v1326, %v1328
    %v1330 = vrot.slane %v1322, %v1329
    %v1332 = vunpack.c.l.s4 1966171168
    %v1333 = vunpack.c.0.s8 %v1332
    %v1334 = vlaneseq
    %v1335 = vshrl.u32 %v1334, 7
    %v1336 = vsub.s32 %v1333, %v1335
    %v1337 = vrot.slane %v1323, %v1336
    %v1348 = vlaneseq
    %v1349 = vand.u32 %v1348, 127
    %vm1350 = vcmp.ge.s32.totalorder %v1349, 0
    %vm1351 = vcmp.lt.s32.totalorder %v1349, 8
    %vm1352 = vmand %vm1350, %vm1351
    %v1353 = vsel %vm1352, 1, 0
    %v1354 = vcvt.s32.f32 %v1353
    %vm1355 = vcmp.ge.s32.totalorder %v1349, 8
    %vm1356 = vcmp.lt.s32.totalorder %v1349, 16
    %vm1357 = vmand %vm1355, %vm1356
    %v1358 = vsel %vm1357, 1, 0
    %v1359 = vcvt.s32.f32 %v1358
    %vm1360 = vcmp.ge.s32.totalorder %v1349, 16
    %vm1361 = vcmp.lt.s32.totalorder %v1349, 24
    %vm1362 = vmand %vm1360, %vm1361
    %v1363 = vsel %vm1362, 1, 0
    %v1364 = vcvt.s32.f32 %v1363
    %vm1365 = vcmp.ge.s32.totalorder %v1349, 24
    %vm1366 = vcmp.lt.s32.totalorder %v1349, 32
    %vm1367 = vmand %vm1365, %vm1366
    %v1368 = vsel %vm1367, 1, 0
    %v1369 = vcvt.s32.f32 %v1368
    %v1371 = vcombine.high %v1354, %v1354
    %v1373 = vunpack.c.l.s4 1966171168
    %v1374 = vunpack.c.0.s8 %v1373
    %v1375 = vlaneseq
    %v1376 = vshrl.u32 %v1375, 7
    %v1377 = vsub.s32 %v1374, %v1376
    %v1378 = vrot.slane %v1354, %v1377
    %v1380 = vunpack.c.l.s4 1966171168
    %v1381 = vunpack.c.0.s8 %v1380
    %v1382 = vlaneseq
    %v1383 = vshrl.u32 %v1382, 7
    %v1384 = vsub.s32 %v1381, %v1383
    %v1385 = vrot.slane %v1371, %v1384
    %v1386 = vcombine.high %v1378, %v1378
    %v1388 = vunpack.c.l.s4 1966171168
    %v1389 = vunpack.c.0.s8 %v1388
    %v1390 = vlaneseq
    %v1391 = vshrl.u32 %v1390, 7
    %v1392 = vsub.s32 %v1389, %v1391
    %v1393 = vrot.slane %v1378, %v1392
    %v1395 = vunpack.c.l.s4 1966171168
    %v1396 = vunpack.c.0.s8 %v1395
    %v1397 = vlaneseq
    %v1398 = vshrl.u32 %v1397, 7
    %v1399 = vsub.s32 %v1396, %v1398
    %v1400 = vrot.slane %v1385, %v1399
    %v1402 = vunpack.c.l.s4 1966171168
    %v1403 = vunpack.c.0.s8 %v1402
    %v1404 = vlaneseq
    %v1405 = vshrl.u32 %v1404, 7
    %v1406 = vsub.s32 %v1403, %v1405
    %v1407 = vrot.slane %v1386, %v1406
    %v1408 = vcombine.high %v1393, %v1393
    %v1409 = vcombine.high %v1407, %v1407
    %1410 = vrot.lane.b32.xlu0 %v1393, 32
    %v1411 = vpop.permute.xlu0 %1410
    %1412 = vrot.lane.b32.xlu0 %v1407, 32
    %v1413 = vpop.permute.xlu0 %1412
    %1414 = vrot.lane.b32.xlu0 %v1408, 32
    %v1415 = vpop.permute.xlu0 %1414
    %1416 = vrot.lane.b32.xlu0 %v1409, 32
    %v1417 = vpop.permute.xlu0 %1416
    %1418 = vrot.lane.b32.xlu0 %v1400, 32
    %v1419 = vpop.permute.xlu0 %1418
    %v1425 = vmul.f32 %v1290, %v1411
    %v1426 = vmul.f32 %v1304, %v1413
    %v1427 = vmul.f32 %v1312, %v1415
    %v1428 = vmul.f32 %v1314, %v1417
    %v1429 = vmul.f32 %v1297, %v1419
    %v1430 = vmul.f32 %v1311, %v1411
    %v1431 = vmul.f32 %v1313, %v1413
    %v1432 = vmul.f32 %v1315, %v1415
    %v1433 = vmul.f32 %v1330, %v1417
    %v1434 = vmul.f32 %v1337, %v1419
    %1435 = vrot.lane.b32.xlu0 %v1393, 64
    %v1436 = vpop.permute.xlu0 %1435
    %1437 = vrot.lane.b32.xlu0 %v1407, 64
    %v1438 = vpop.permute.xlu0 %1437
    %1439 = vrot.lane.b32.xlu0 %v1408, 64
    %v1440 = vpop.permute.xlu0 %1439
    %1441 = vrot.lane.b32.xlu0 %v1409, 64
    %v1442 = vpop.permute.xlu0 %1441
    %1443 = vrot.lane.b32.xlu0 %v1400, 64
    %v1444 = vpop.permute.xlu0 %1443
    %v1450 = vmul.f32 %v1290, %v1436
    %v1451 = vmul.f32 %v1304, %v1438
    %v1452 = vmul.f32 %v1312, %v1440
    %v1453 = vmul.f32 %v1314, %v1442
    %v1454 = vmul.f32 %v1297, %v1444
    %v1455 = vmul.f32 %v1311, %v1436
    %v1456 = vmul.f32 %v1313, %v1438
    %v1457 = vmul.f32 %v1315, %v1440
    %v1458 = vmul.f32 %v1330, %v1442
    %v1459 = vmul.f32 %v1337, %v1444
    %v1460 = vcombine.low %v1290, %v1304
    %v1461 = vcombine.low %v1312, %v1314
    %v1463 = vunpack.c.l.s4 1966171168
    %v1464 = vunpack.c.0.s8 %v1463
    %v1465 = vlaneseq
    %v1466 = vshrl.u32 %v1465, 7
    %v1467 = vsub.s32 %v1464, %v1466
    %v1468 = vrot.slane %v1460, %v1467
    %v1470 = vunpack.c.l.s4 1966171168
    %v1471 = vunpack.c.0.s8 %v1470
    %v1472 = vlaneseq
    %v1473 = vshrl.u32 %v1472, 7
    %v1474 = vsub.s32 %v1471, %v1473
    %v1475 = vrot.slane %v1461, %v1474
    %v1477 = vunpack.c.l.s4 1966171168
    %v1478 = vunpack.c.0.s8 %v1477
    %v1479 = vlaneseq
    %v1480 = vshrl.u32 %v1479, 7
    %v1481 = vsub.s32 %v1478, %v1480
    %v1482 = vrot.slane %v1297, %v1481
    %v1483 = vcombine.low %v1468, %v1475
    %v1485 = vunpack.c.l.s4 1966171168
    %v1486 = vunpack.c.0.s8 %v1485
    %v1487 = vlaneseq
    %v1488 = vshrl.u32 %v1487, 7
    %v1489 = vsub.s32 %v1486, %v1488
    %v1490 = vrot.slane %v1483, %v1489
    %v1492 = vunpack.c.l.s4 1966171168
    %v1493 = vunpack.c.0.s8 %v1492
    %v1494 = vlaneseq
    %v1495 = vshrl.u32 %v1494, 7
    %v1496 = vsub.s32 %v1493, %v1495
    %v1497 = vrot.slane %v1482, %v1496
    %v1498 = vcombine.low %v1490, %v1497
    %v1504 = vcombine.low %v1425, %v1426
    %v1505 = vcombine.low %v1427, %v1428
    %v1507 = vunpack.c.l.s4 1966171168
    %v1508 = vunpack.c.0.s8 %v1507
    %v1509 = vlaneseq
    %v1510 = vshrl.u32 %v1509, 7
    %v1511 = vsub.s32 %v1508, %v1510
    %v1512 = vrot.slane %v1504, %v1511
    %v1514 = vunpack.c.l.s4 1966171168
    %v1515 = vunpack.c.0.s8 %v1514
    %v1516 = vlaneseq
    %v1517 = vshrl.u32 %v1516, 7
    %v1518 = vsub.s32 %v1515, %v1517
    %v1519 = vrot.slane %v1505, %v1518
    %v1521 = vunpack.c.l.s4 1966171168
    %v1522 = vunpack.c.0.s8 %v1521
    %v1523 = vlaneseq
    %v1524 = vshrl.u32 %v1523, 7
    %v1525 = vsub.s32 %v1522, %v1524
    %v1526 = vrot.slane %v1429, %v1525
    %v1527 = vcombine.low %v1512, %v1519
    %v1529 = vunpack.c.l.s4 1966171168
    %v1530 = vunpack.c.0.s8 %v1529
    %v1531 = vlaneseq
    %v1532 = vshrl.u32 %v1531, 7
    %v1533 = vsub.s32 %v1530, %v1532
    %v1534 = vrot.slane %v1527, %v1533
    %v1536 = vunpack.c.l.s4 1966171168
    %v1537 = vunpack.c.0.s8 %v1536
    %v1538 = vlaneseq
    %v1539 = vshrl.u32 %v1538, 7
    %v1540 = vsub.s32 %v1537, %v1539
    %v1541 = vrot.slane %v1526, %v1540
    %v1542 = vcombine.low %v1534, %v1541
    %1543 = vrot.lane.b32.xlu0 %v1542, 96
    %v1544 = vpop.permute.xlu0 %1543
    %v1545 = vsel %vm727, %v1498, 0
    %v1547 = vsel %vm727, %v1544, 0
    %1549 = vmatprep.subr.mxu0 0.0
    %1550 = vmatpush1.xpose.msra.mxu0 0.0
    %1551 = vmatprep.subr.mxu0 0.0
    %1552 = vmatpush1.xpose.msra.mxu0 0.0
    %1553 = vmatprep.subr.mxu0 0.0
    %1554 = vmatpush1.xpose.msra.mxu0 0.0
    %1555 = vmatprep.subr.mxu0 0.0
    %1556 = vmatpush1.xpose.msra.mxu0 0.0
    %1557 = vmatprep.subr.mxu0 0.0
    %1558 = vmatpush1.xpose.msra.mxu0 0.0
    %1559 = vmatprep.subr.mxu0 0.0
    %1560 = vmatpush1.xpose.msra.mxu0 0.0
    %1561 = vmatprep.subr.mxu0 0.0
    %1562 = vmatpush1.xpose.msra.mxu0 0.0
    %1563 = vmatprep.subr.mxu0 0.0
    %1564 = vmatpush1.xpose.msra.mxu0 0.0
    %1565 = vmatprep.subr.mxu0 0.0
    %1566 = vmatpush1.xpose.msra.mxu0 0.0
    %1567 = vmatprep.subr.mxu0 0.0
    %1568 = vmatpush1.xpose.msra.mxu0 0.0
    %1569 = vmatprep.subr.mxu0 0.0
    %1570 = vmatpush1.xpose.msra.mxu0 0.0
    %1571 = vmatprep.subr.mxu0 0.0
    %1572 = vmatpush1.xpose.msra.mxu0 0.0
    %1573 = vmatprep.subr.mxu0 0.0
    %1574 = vmatpush1.xpose.msra.mxu0 0.0
    %1575 = vmatprep.subr.mxu0 0.0
    %1576 = vmatpush1.xpose.msra.mxu0 0.0
    %1577 = vmatprep.subr.mxu0 0.0
    %1578 = vmatpush1.xpose.msra.mxu0 0.0
    %1579 = vmatprep.subr.mxu0 0.0
    %1580 = vmatpush1.xpose.msra.mxu0 %v1547
    %1581 = vmatprep.subr.mxu0 0.0
    %1582 = vmatpush2.xpose.msra.mxu0 0.0
    %1583 = vmatprep.subr.mxu0 0.0
    %1584 = vmatpush2.xpose.msra.mxu0 0.0
    %1585 = vmatprep.subr.mxu0 0.0
    %1586 = vmatpush2.xpose.msra.mxu0 0.0
    %1587 = vmatprep.subr.mxu0 0.0
    %1588 = vmatpush2.xpose.msra.mxu0 0.0
    %1589 = vmatprep.subr.mxu0 0.0
    %1590 = vmatpush2.xpose.msra.mxu0 0.0
    %1591 = vmatprep.subr.mxu0 0.0
    %1592 = vmatpush2.xpose.msra.mxu0 0.0
    %1593 = vmatprep.subr.mxu0 0.0
    %1594 = vmatpush2.xpose.msra.mxu0 0.0
    %1595 = vmatprep.subr.mxu0 0.0
    %1596 = vmatpush2.xpose.msra.mxu0 0.0
    %1597 = vmatprep.subr.mxu0 0.0
    %1598 = vmatpush2.xpose.msra.mxu0 0.0
    %1599 = vmatprep.subr.mxu0 0.0
    %1600 = vmatpush2.xpose.msra.mxu0 0.0
    %1601 = vmatprep.subr.mxu0 0.0
    %1602 = vmatpush2.xpose.msra.mxu0 0.0
    %1603 = vmatprep.subr.mxu0 0.0
    %1604 = vmatpush2.xpose.msra.mxu0 0.0
    %1605 = vmatprep.subr.mxu0 0.0
    %1606 = vmatpush2.xpose.msra.mxu0 0.0
    %1607 = vmatprep.subr.mxu0 0.0
    %1608 = vmatpush2.xpose.msra.mxu0 0.0
    %1609 = vmatprep.subr.mxu0 0.0
    %1610 = vmatpush2.xpose.msra.mxu0 0.0
    %1611 = vmatprep.subr.mxu0 0.0
    %1612 = vmatpush2.xpose.msra.mxu0 0.0
    %1613 = vmatprep.mubr.f32.mxu0 0.0
    %1614 = vmatmul.mubr.f32.gmra.mxu0 %v1545
    %v1615 = vpop.f32.mrf.mxu0
    %v1616 = vadd.f32 0.0, %v1615
    %v1617 = vpop.f32.mrf.mxu0
    %1618 = vdwg.mxu0
    %v1619 = vcombine.low %v1311, %v1313
    %v1620 = vcombine.low %v1315, %v1330
    %v1622 = vunpack.c.l.s4 1966171168
    %v1623 = vunpack.c.0.s8 %v1622
    %v1624 = vlaneseq
    %v1625 = vshrl.u32 %v1624, 7
    %v1626 = vsub.s32 %v1623, %v1625
    %v1627 = vrot.slane %v1619, %v1626
    %v1629 = vunpack.c.l.s4 1966171168
    %v1630 = vunpack.c.0.s8 %v1629
    %v1631 = vlaneseq
    %v1632 = vshrl.u32 %v1631, 7
    %v1633 = vsub.s32 %v1630, %v1632
    %v1634 = vrot.slane %v1620, %v1633
    %v1636 = vunpack.c.l.s4 1966171168
    %v1637 = vunpack.c.0.s8 %v1636
    %v1638 = vlaneseq
    %v1639 = vshrl.u32 %v1638, 7
    %v1640 = vsub.s32 %v1637, %v1639
    %v1641 = vrot.slane %v1337, %v1640
    %v1642 = vcombine.low %v1627, %v1634
    %v1644 = vunpack.c.l.s4 1966171168
    %v1645 = vunpack.c.0.s8 %v1644
    %v1646 = vlaneseq
    %v1647 = vshrl.u32 %v1646, 7
    %v1648 = vsub.s32 %v1645, %v1647
    %v1649 = vrot.slane %v1642, %v1648
    %v1651 = vunpack.c.l.s4 1966171168
    %v1652 = vunpack.c.0.s8 %v1651
    %v1653 = vlaneseq
    %v1654 = vshrl.u32 %v1653, 7
    %v1655 = vsub.s32 %v1652, %v1654
    %v1656 = vrot.slane %v1641, %v1655
    %v1657 = vcombine.low %v1649, %v1656
    %v1663 = vcombine.low %v1430, %v1431
    %v1664 = vcombine.low %v1432, %v1433
    %v1666 = vunpack.c.l.s4 1966171168
    %v1667 = vunpack.c.0.s8 %v1666
    %v1668 = vlaneseq
    %v1669 = vshrl.u32 %v1668, 7
    %v1670 = vsub.s32 %v1667, %v1669
    %v1671 = vrot.slane %v1663, %v1670
    %v1673 = vunpack.c.l.s4 1966171168
    %v1674 = vunpack.c.0.s8 %v1673
    %v1675 = vlaneseq
    %v1676 = vshrl.u32 %v1675, 7
    %v1677 = vsub.s32 %v1674, %v1676
    %v1678 = vrot.slane %v1664, %v1677
    %v1680 = vunpack.c.l.s4 1966171168
    %v1681 = vunpack.c.0.s8 %v1680
    %v1682 = vlaneseq
    %v1683 = vshrl.u32 %v1682, 7
    %v1684 = vsub.s32 %v1681, %v1683
    %v1685 = vrot.slane %v1434, %v1684
    %v1686 = vcombine.low %v1671, %v1678
    %v1688 = vunpack.c.l.s4 1966171168
    %v1689 = vunpack.c.0.s8 %v1688
    %v1690 = vlaneseq
    %v1691 = vshrl.u32 %v1690, 7
    %v1692 = vsub.s32 %v1689, %v1691
    %v1693 = vrot.slane %v1686, %v1692
    %v1695 = vunpack.c.l.s4 1966171168
    %v1696 = vunpack.c.0.s8 %v1695
    %v1697 = vlaneseq
    %v1698 = vshrl.u32 %v1697, 7
    %v1699 = vsub.s32 %v1696, %v1698
    %v1700 = vrot.slane %v1685, %v1699
    %v1701 = vcombine.low %v1693, %v1700
    %1702 = vrot.lane.b32.xlu0 %v1701, 96
    %v1703 = vpop.permute.xlu0 %1702
    %v1704 = vsel %vm727, %v1657, 0
    %v1706 = vsel %vm727, %v1703, 0
    %1708 = vmatprep.subr.mxu0 0.0
    %1709 = vmatpush1.xpose.msra.mxu0 0.0
    %1710 = vmatprep.subr.mxu0 0.0
    %1711 = vmatpush1.xpose.msra.mxu0 0.0
    %1712 = vmatprep.subr.mxu0 0.0
    %1713 = vmatpush1.xpose.msra.mxu0 0.0
    %1714 = vmatprep.subr.mxu0 0.0
    %1715 = vmatpush1.xpose.msra.mxu0 0.0
    %1716 = vmatprep.subr.mxu0 0.0
    %1717 = vmatpush1.xpose.msra.mxu0 0.0
    %1718 = vmatprep.subr.mxu0 0.0
    %1719 = vmatpush1.xpose.msra.mxu0 0.0
    %1720 = vmatprep.subr.mxu0 0.0
    %1721 = vmatpush1.xpose.msra.mxu0 0.0
    %1722 = vmatprep.subr.mxu0 0.0
    %1723 = vmatpush1.xpose.msra.mxu0 0.0
    %1724 = vmatprep.subr.mxu0 0.0
    %1725 = vmatpush1.xpose.msra.mxu0 0.0
    %1726 = vmatprep.subr.mxu0 0.0
    %1727 = vmatpush1.xpose.msra.mxu0 0.0
    %1728 = vmatprep.subr.mxu0 0.0
    %1729 = vmatpush1.xpose.msra.mxu0 0.0
    %1730 = vmatprep.subr.mxu0 0.0
    %1731 = vmatpush1.xpose.msra.mxu0 0.0
    %1732 = vmatprep.subr.mxu0 0.0
    %1733 = vmatpush1.xpose.msra.mxu0 0.0
    %1734 = vmatprep.subr.mxu0 0.0
    %1735 = vmatpush1.xpose.msra.mxu0 0.0
    %1736 = vmatprep.subr.mxu0 0.0
    %1737 = vmatpush1.xpose.msra.mxu0 0.0
    %1738 = vmatprep.subr.mxu0 0.0
    %1739 = vmatpush1.xpose.msra.mxu0 %v1706
    %1740 = vmatprep.subr.mxu0 0.0
    %1741 = vmatpush2.xpose.msra.mxu0 0.0
    %1742 = vmatprep.subr.mxu0 0.0
    %1743 = vmatpush2.xpose.msra.mxu0 0.0
    %1744 = vmatprep.subr.mxu0 0.0
    %1745 = vmatpush2.xpose.msra.mxu0 0.0
    %1746 = vmatprep.subr.mxu0 0.0
    %1747 = vmatpush2.xpose.msra.mxu0 0.0
    %1748 = vmatprep.subr.mxu0 0.0
    %1749 = vmatpush2.xpose.msra.mxu0 0.0
    %1750 = vmatprep.subr.mxu0 0.0
    %1751 = vmatpush2.xpose.msra.mxu0 0.0
    %1752 = vmatprep.subr.mxu0 0.0
    %1753 = vmatpush2.xpose.msra.mxu0 0.0
    %1754 = vmatprep.subr.mxu0 0.0
    %1755 = vmatpush2.xpose.msra.mxu0 0.0
    %1756 = vmatprep.subr.mxu0 0.0
    %1757 = vmatpush2.xpose.msra.mxu0 0.0
    %1758 = vmatprep.subr.mxu0 0.0
    %1759 = vmatpush2.xpose.msra.mxu0 0.0
    %1760 = vmatprep.subr.mxu0 0.0
    %1761 = vmatpush2.xpose.msra.mxu0 0.0
    %1762 = vmatprep.subr.mxu0 0.0
    %1763 = vmatpush2.xpose.msra.mxu0 0.0
    %1764 = vmatprep.subr.mxu0 0.0
    %1765 = vmatpush2.xpose.msra.mxu0 0.0
    %1766 = vmatprep.subr.mxu0 0.0
    %1767 = vmatpush2.xpose.msra.mxu0 0.0
    %1768 = vmatprep.subr.mxu0 0.0
    %1769 = vmatpush2.xpose.msra.mxu0 0.0
    %1770 = vmatprep.subr.mxu0 0.0
    %1771 = vmatpush2.xpose.msra.mxu0 0.0
    %1772 = vmatprep.mubr.f32.mxu0 0.0
    %1773 = vmatmul.mubr.f32.gmra.mxu0 %v1704
    %v1774 = vpop.f32.mrf.mxu0
    %v1775 = vadd.f32 0.0, %v1774
    %v1776 = vpop.f32.mrf.mxu0
    %1777 = vdwg.mxu0
    %v1778 = vmul.f32 %v1616, 0.35355338
    %v1779 = vmul.f32 %v1775, 0.35355338
    %vm1780 = vcmask 36864
    %v1781 = vsel %vm1780, %v1778, -inf
    %1782 = vmax.xlane.f32.xlu0 %v1781
    %v1783 = vpop.xlane.xlu0 %1782
    %v1784 = vsel %vm1780, %v1779, -inf
    %1785 = vmax.xlane.f32.xlu0 %v1784
    %v1786 = vpop.xlane.xlu0 %1785
    %v1787 = vsub.f32 %v1778, %v1783
    %v1788 = vsub.f32 %v1779, %v1786
    %v1789 = vmul.f32 %v1787, 1.442695
    %v1790 = vpow.pop %v1789
    %v1791 = vmul.f32 %v1788, 1.442695
    %v1792 = vpow.pop %v1791
    %v1793 = vsel %vm1780, %v1790, 0.0
    %1794 = vadd.xlane.f32.xlu0 %v1793
    %v1795 = vpop.xlane.xlu0 %1794
    %v1796 = vsel %vm1780, %v1792, 0.0
    %1797 = vadd.xlane.f32.xlu0 %v1796
    %v1798 = vpop.xlane.xlu0 %1797
    %v1799 = vrcp.pop %v1795
    %v1800 = vrcp.pop %v1798
    %v1801 = vmul.f32 %v1790, %v1799
    %v1802 = vmul.f32 %v1792, %v1800
    %v1804 = vcombine.high %v1359, %v1359
    %v1806 = vunpack.c.l.s4 1966171168
    %v1807 = vunpack.c.0.s8 %v1806
    %v1808 = vlaneseq
    %v1809 = vshrl.u32 %v1808, 7
    %v1810 = vsub.s32 %v1807, %v1809
    %v1811 = vrot.slane %v1359, %v1810
    %v1813 = vunpack.c.l.s4 1966171168
    %v1814 = vunpack.c.0.s8 %v1813
    %v1815 = vlaneseq
    %v1816 = vshrl.u32 %v1815, 7
    %v1817 = vsub.s32 %v1814, %v1816
    %v1818 = vrot.slane %v1804, %v1817
    %v1819 = vcombine.high %v1811, %v1811
    %v1821 = vunpack.c.l.s4 1966171168
    %v1822 = vunpack.c.0.s8 %v1821
    %v1823 = vlaneseq
    %v1824 = vshrl.u32 %v1823, 7
    %v1825 = vsub.s32 %v1822, %v1824
    %v1826 = vrot.slane %v1811, %v1825
    %v1828 = vunpack.c.l.s4 1966171168
    %v1829 = vunpack.c.0.s8 %v1828
    %v1830 = vlaneseq
    %v1831 = vshrl.u32 %v1830, 7
    %v1832 = vsub.s32 %v1829, %v1831
    %v1833 = vrot.slane %v1818, %v1832
    %v1835 = vunpack.c.l.s4 1966171168
    %v1836 = vunpack.c.0.s8 %v1835
    %v1837 = vlaneseq
    %v1838 = vshrl.u32 %v1837, 7
    %v1839 = vsub.s32 %v1836, %v1838
    %v1840 = vrot.slane %v1819, %v1839
    %v1841 = vcombine.high %v1826, %v1826
    %v1842 = vcombine.high %v1840, %v1840
    %1843 = vrot.lane.b32.xlu0 %v1826, 32
    %v1844 = vpop.permute.xlu0 %1843
    %1845 = vrot.lane.b32.xlu0 %v1840, 32
    %v1846 = vpop.permute.xlu0 %1845
    %1847 = vrot.lane.b32.xlu0 %v1841, 32
    %v1848 = vpop.permute.xlu0 %1847
    %1849 = vrot.lane.b32.xlu0 %v1842, 32
    %v1850 = vpop.permute.xlu0 %1849
    %1851 = vrot.lane.b32.xlu0 %v1833, 32
    %v1852 = vpop.permute.xlu0 %1851
    %v1858 = vmul.f32 %v1290, %v1844
    %v1859 = vmul.f32 %v1304, %v1846
    %v1860 = vmul.f32 %v1312, %v1848
    %v1861 = vmul.f32 %v1314, %v1850
    %v1862 = vmul.f32 %v1297, %v1852
    %v1863 = vmul.f32 %v1311, %v1844
    %v1864 = vmul.f32 %v1313, %v1846
    %v1865 = vmul.f32 %v1315, %v1848
    %v1866 = vmul.f32 %v1330, %v1850
    %v1867 = vmul.f32 %v1337, %v1852
    %1868 = vrot.lane.b32.xlu0 %v1826, 64
    %v1869 = vpop.permute.xlu0 %1868
    %1870 = vrot.lane.b32.xlu0 %v1840, 64
    %v1871 = vpop.permute.xlu0 %1870
    %1872 = vrot.lane.b32.xlu0 %v1841, 64
    %v1873 = vpop.permute.xlu0 %1872
    %1874 = vrot.lane.b32.xlu0 %v1842, 64
    %v1875 = vpop.permute.xlu0 %1874
    %1876 = vrot.lane.b32.xlu0 %v1833, 64
    %v1877 = vpop.permute.xlu0 %1876
    %v1883 = vmul.f32 %v1290, %v1869
    %v1884 = vmul.f32 %v1304, %v1871
    %v1885 = vmul.f32 %v1312, %v1873
    %v1886 = vmul.f32 %v1314, %v1875
    %v1887 = vmul.f32 %v1297, %v1877
    %v1888 = vmul.f32 %v1311, %v1869
    %v1889 = vmul.f32 %v1313, %v1871
    %v1890 = vmul.f32 %v1315, %v1873
    %v1891 = vmul.f32 %v1330, %v1875
    %v1892 = vmul.f32 %v1337, %v1877
    %v1898 = vcombine.low %v1858, %v1859
    %v1899 = vcombine.low %v1860, %v1861
    %v1901 = vunpack.c.l.s4 1966171168
    %v1902 = vunpack.c.0.s8 %v1901
    %v1903 = vlaneseq
    %v1904 = vshrl.u32 %v1903, 7
    %v1905 = vsub.s32 %v1902, %v1904
    %v1906 = vrot.slane %v1898, %v1905
    %v1908 = vunpack.c.l.s4 1966171168
    %v1909 = vunpack.c.0.s8 %v1908
    %v1910 = vlaneseq
    %v1911 = vshrl.u32 %v1910, 7
    %v1912 = vsub.s32 %v1909, %v1911
    %v1913 = vrot.slane %v1899, %v1912
    %v1915 = vunpack.c.l.s4 1966171168
    %v1916 = vunpack.c.0.s8 %v1915
    %v1917 = vlaneseq
    %v1918 = vshrl.u32 %v1917, 7
    %v1919 = vsub.s32 %v1916, %v1918
    %v1920 = vrot.slane %v1862, %v1919
    %v1921 = vcombine.low %v1906, %v1913
    %v1923 = vunpack.c.l.s4 1966171168
    %v1924 = vunpack.c.0.s8 %v1923
    %v1925 = vlaneseq
    %v1926 = vshrl.u32 %v1925, 7
    %v1927 = vsub.s32 %v1924, %v1926
    %v1928 = vrot.slane %v1921, %v1927
    %v1930 = vunpack.c.l.s4 1966171168
    %v1931 = vunpack.c.0.s8 %v1930
    %v1932 = vlaneseq
    %v1933 = vshrl.u32 %v1932, 7
    %v1934 = vsub.s32 %v1931, %v1933
    %v1935 = vrot.slane %v1920, %v1934
    %v1936 = vcombine.low %v1928, %v1935
    %1937 = vrot.lane.b32.xlu0 %v1936, 96
    %v1938 = vpop.permute.xlu0 %1937
    %v1939 = vsel %vm727, %v1938, 0
    %1941 = vmatprep.subr.mxu0 0.0
    %1942 = vmatpush1.xpose.msra.mxu0 0.0
    %1943 = vmatprep.subr.mxu0 0.0
    %1944 = vmatpush1.xpose.msra.mxu0 0.0
    %1945 = vmatprep.subr.mxu0 0.0
    %1946 = vmatpush1.xpose.msra.mxu0 0.0
    %1947 = vmatprep.subr.mxu0 0.0
    %1948 = vmatpush1.xpose.msra.mxu0 0.0
    %1949 = vmatprep.subr.mxu0 0.0
    %1950 = vmatpush1.xpose.msra.mxu0 0.0
    %1951 = vmatprep.subr.mxu0 0.0
    %1952 = vmatpush1.xpose.msra.mxu0 0.0
    %1953 = vmatprep.subr.mxu0 0.0
    %1954 = vmatpush1.xpose.msra.mxu0 0.0
    %1955 = vmatprep.subr.mxu0 0.0
    %1956 = vmatpush1.xpose.msra.mxu0 0.0
    %1957 = vmatprep.subr.mxu0 0.0
    %1958 = vmatpush1.xpose.msra.mxu0 0.0
    %1959 = vmatprep.subr.mxu0 0.0
    %1960 = vmatpush1.xpose.msra.mxu0 0.0
    %1961 = vmatprep.subr.mxu0 0.0
    %1962 = vmatpush1.xpose.msra.mxu0 0.0
    %1963 = vmatprep.subr.mxu0 0.0
    %1964 = vmatpush1.xpose.msra.mxu0 0.0
    %1965 = vmatprep.subr.mxu0 0.0
    %1966 = vmatpush1.xpose.msra.mxu0 0.0
    %1967 = vmatprep.subr.mxu0 0.0
    %1968 = vmatpush1.xpose.msra.mxu0 0.0
    %1969 = vmatprep.subr.mxu0 0.0
    %1970 = vmatpush1.xpose.msra.mxu0 0.0
    %1971 = vmatprep.subr.mxu0 0.0
    %1972 = vmatpush1.xpose.msra.mxu0 %v1939
    %1973 = vmatprep.subr.mxu0 0.0
    %1974 = vmatpush2.xpose.msra.mxu0 0.0
    %1975 = vmatprep.subr.mxu0 0.0
    %1976 = vmatpush2.xpose.msra.mxu0 0.0
    %1977 = vmatprep.subr.mxu0 0.0
    %1978 = vmatpush2.xpose.msra.mxu0 0.0
    %1979 = vmatprep.subr.mxu0 0.0
    %1980 = vmatpush2.xpose.msra.mxu0 0.0
    %1981 = vmatprep.subr.mxu0 0.0
    %1982 = vmatpush2.xpose.msra.mxu0 0.0
    %1983 = vmatprep.subr.mxu0 0.0
    %1984 = vmatpush2.xpose.msra.mxu0 0.0
    %1985 = vmatprep.subr.mxu0 0.0
    %1986 = vmatpush2.xpose.msra.mxu0 0.0
    %1987 = vmatprep.subr.mxu0 0.0
    %1988 = vmatpush2.xpose.msra.mxu0 0.0
    %1989 = vmatprep.subr.mxu0 0.0
    %1990 = vmatpush2.xpose.msra.mxu0 0.0
    %1991 = vmatprep.subr.mxu0 0.0
    %1992 = vmatpush2.xpose.msra.mxu0 0.0
    %1993 = vmatprep.subr.mxu0 0.0
    %1994 = vmatpush2.xpose.msra.mxu0 0.0
    %1995 = vmatprep.subr.mxu0 0.0
    %1996 = vmatpush2.xpose.msra.mxu0 0.0
    %1997 = vmatprep.subr.mxu0 0.0
    %1998 = vmatpush2.xpose.msra.mxu0 0.0
    %1999 = vmatprep.subr.mxu0 0.0
    %2000 = vmatpush2.xpose.msra.mxu0 0.0
    %2001 = vmatprep.subr.mxu0 0.0
    %2002 = vmatpush2.xpose.msra.mxu0 0.0
    %2003 = vmatprep.subr.mxu0 0.0
    %2004 = vmatpush2.xpose.msra.mxu0 0.0
    %2005 = vmatprep.mubr.f32.mxu0 0.0
    %2006 = vmatmul.mubr.f32.gmra.mxu0 %v1545
    %v2007 = vpop.f32.mrf.mxu0
    %v2008 = vadd.f32 0.0, %v2007
    %v2009 = vpop.f32.mrf.mxu0
    %2010 = vdwg.mxu0
    %v2016 = vcombine.low %v1863, %v1864
    %v2017 = vcombine.low %v1865, %v1866
    %v2019 = vunpack.c.l.s4 1966171168
    %v2020 = vunpack.c.0.s8 %v2019
    %v2021 = vlaneseq
    %v2022 = vshrl.u32 %v2021, 7
    %v2023 = vsub.s32 %v2020, %v2022
    %v2024 = vrot.slane %v2016, %v2023
    %v2026 = vunpack.c.l.s4 1966171168
    %v2027 = vunpack.c.0.s8 %v2026
    %v2028 = vlaneseq
    %v2029 = vshrl.u32 %v2028, 7
    %v2030 = vsub.s32 %v2027, %v2029
    %v2031 = vrot.slane %v2017, %v2030
    %v2033 = vunpack.c.l.s4 1966171168
    %v2034 = vunpack.c.0.s8 %v2033
    %v2035 = vlaneseq
    %v2036 = vshrl.u32 %v2035, 7
    %v2037 = vsub.s32 %v2034, %v2036
    %v2038 = vrot.slane %v1867, %v2037
    %v2039 = vcombine.low %v2024, %v2031
    %v2041 = vunpack.c.l.s4 1966171168
    %v2042 = vunpack.c.0.s8 %v2041
    %v2043 = vlaneseq
    %v2044 = vshrl.u32 %v2043, 7
    %v2045 = vsub.s32 %v2042, %v2044
    %v2046 = vrot.slane %v2039, %v2045
    %v2048 = vunpack.c.l.s4 1966171168
    %v2049 = vunpack.c.0.s8 %v2048
    %v2050 = vlaneseq
    %v2051 = vshrl.u32 %v2050, 7
    %v2052 = vsub.s32 %v2049, %v2051
    %v2053 = vrot.slane %v2038, %v2052
    %v2054 = vcombine.low %v2046, %v2053
    %2055 = vrot.lane.b32.xlu0 %v2054, 96
    %v2056 = vpop.permute.xlu0 %2055
    %v2057 = vsel %vm727, %v2056, 0
    %2059 = vmatprep.subr.mxu0 0.0
    %2060 = vmatpush1.xpose.msra.mxu0 0.0
    %2061 = vmatprep.subr.mxu0 0.0
    %2062 = vmatpush1.xpose.msra.mxu0 0.0
    %2063 = vmatprep.subr.mxu0 0.0
    %2064 = vmatpush1.xpose.msra.mxu0 0.0
    %2065 = vmatprep.subr.mxu0 0.0
    %2066 = vmatpush1.xpose.msra.mxu0 0.0
    %2067 = vmatprep.subr.mxu0 0.0
    %2068 = vmatpush1.xpose.msra.mxu0 0.0
    %2069 = vmatprep.subr.mxu0 0.0
    %2070 = vmatpush1.xpose.msra.mxu0 0.0
    %2071 = vmatprep.subr.mxu0 0.0
    %2072 = vmatpush1.xpose.msra.mxu0 0.0
    %2073 = vmatprep.subr.mxu0 0.0
    %2074 = vmatpush1.xpose.msra.mxu0 0.0
    %2075 = vmatprep.subr.mxu0 0.0
    %2076 = vmatpush1.xpose.msra.mxu0 0.0
    %2077 = vmatprep.subr.mxu0 0.0
    %2078 = vmatpush1.xpose.msra.mxu0 0.0
    %2079 = vmatprep.subr.mxu0 0.0
    %2080 = vmatpush1.xpose.msra.mxu0 0.0
    %2081 = vmatprep.subr.mxu0 0.0
    %2082 = vmatpush1.xpose.msra.mxu0 0.0
    %2083 = vmatprep.subr.mxu0 0.0
    %2084 = vmatpush1.xpose.msra.mxu0 0.0
    %2085 = vmatprep.subr.mxu0 0.0
    %2086 = vmatpush1.xpose.msra.mxu0 0.0
    %2087 = vmatprep.subr.mxu0 0.0
    %2088 = vmatpush1.xpose.msra.mxu0 0.0
    %2089 = vmatprep.subr.mxu0 0.0
    %2090 = vmatpush1.xpose.msra.mxu0 %v2057
    %2091 = vmatprep.subr.mxu0 0.0
    %2092 = vmatpush2.xpose.msra.mxu0 0.0
    %2093 = vmatprep.subr.mxu0 0.0
    %2094 = vmatpush2.xpose.msra.mxu0 0.0
    %2095 = vmatprep.subr.mxu0 0.0
    %2096 = vmatpush2.xpose.msra.mxu0 0.0
    %2097 = vmatprep.subr.mxu0 0.0
    %2098 = vmatpush2.xpose.msra.mxu0 0.0
    %2099 = vmatprep.subr.mxu0 0.0
    %2100 = vmatpush2.xpose.msra.mxu0 0.0
    %2101 = vmatprep.subr.mxu0 0.0
    %2102 = vmatpush2.xpose.msra.mxu0 0.0
    %2103 = vmatprep.subr.mxu0 0.0
    %2104 = vmatpush2.xpose.msra.mxu0 0.0
    %2105 = vmatprep.subr.mxu0 0.0
    %2106 = vmatpush2.xpose.msra.mxu0 0.0
    %2107 = vmatprep.subr.mxu0 0.0
    %2108 = vmatpush2.xpose.msra.mxu0 0.0
    %2109 = vmatprep.subr.mxu0 0.0
    %2110 = vmatpush2.xpose.msra.mxu0 0.0
    %2111 = vmatprep.subr.mxu0 0.0
    %2112 = vmatpush2.xpose.msra.mxu0 0.0
    %2113 = vmatprep.subr.mxu0 0.0
    %2114 = vmatpush2.xpose.msra.mxu0 0.0
    %2115 = vmatprep.subr.mxu0 0.0
    %2116 = vmatpush2.xpose.msra.mxu0 0.0
    %2117 = vmatprep.subr.mxu0 0.0
    %2118 = vmatpush2.xpose.msra.mxu0 0.0
    %2119 = vmatprep.subr.mxu0 0.0
    %2120 = vmatpush2.xpose.msra.mxu0 0.0
    %2121 = vmatprep.subr.mxu0 0.0
    %2122 = vmatpush2.xpose.msra.mxu0 0.0
    %2123 = vmatprep.mubr.f32.mxu0 0.0
    %2124 = vmatmul.mubr.f32.gmra.mxu0 %v1704
    %v2125 = vpop.f32.mrf.mxu0
    %v2126 = vadd.f32 0.0, %v2125
    %v2127 = vpop.f32.mrf.mxu0
    %2128 = vdwg.mxu0
    %v2129 = vmul.f32 %v2008, 0.35355338
    %v2130 = vmul.f32 %v2126, 0.35355338
    %v2131 = vsel %vm1780, %v2129, -inf
    %2132 = vmax.xlane.f32.xlu0 %v2131
    %v2133 = vpop.xlane.xlu0 %2132
    %v2134 = vsel %vm1780, %v2130, -inf
    %2135 = vmax.xlane.f32.xlu0 %v2134
    %v2136 = vpop.xlane.xlu0 %2135
    %v2137 = vsub.f32 %v2129, %v2133
    %v2138 = vsub.f32 %v2130, %v2136
    %v2139 = vmul.f32 %v2137, 1.442695
    %v2140 = vpow.pop %v2139
    %v2141 = vmul.f32 %v2138, 1.442695
    %v2142 = vpow.pop %v2141
    %v2143 = vsel %vm1780, %v2140, 0.0
    %2144 = vadd.xlane.f32.xlu0 %v2143
    %v2145 = vpop.xlane.xlu0 %2144
    %v2146 = vsel %vm1780, %v2142, 0.0
    %2147 = vadd.xlane.f32.xlu0 %v2146
    %v2148 = vpop.xlane.xlu0 %2147
    %v2149 = vrcp.pop %v2145
    %v2150 = vrcp.pop %v2148
    %v2151 = vmul.f32 %v2140, %v2149
    %v2152 = vmul.f32 %v2142, %v2150
    %v2158 = vcombine.low %v1883, %v1884
    %v2159 = vcombine.low %v1885, %v1886
    %v2161 = vunpack.c.l.s4 1966171168
    %v2162 = vunpack.c.0.s8 %v2161
    %v2163 = vlaneseq
    %v2164 = vshrl.u32 %v2163, 7
    %v2165 = vsub.s32 %v2162, %v2164
    %v2166 = vrot.slane %v2158, %v2165
    %v2168 = vunpack.c.l.s4 1966171168
    %v2169 = vunpack.c.0.s8 %v2168
    %v2170 = vlaneseq
    %v2171 = vshrl.u32 %v2170, 7
    %v2172 = vsub.s32 %v2169, %v2171
    %v2173 = vrot.slane %v2159, %v2172
    %v2175 = vunpack.c.l.s4 1966171168
    %v2176 = vunpack.c.0.s8 %v2175
    %v2177 = vlaneseq
    %v2178 = vshrl.u32 %v2177, 7
    %v2179 = vsub.s32 %v2176, %v2178
    %v2180 = vrot.slane %v1887, %v2179
    %v2181 = vcombine.low %v2166, %v2173
    %v2183 = vunpack.c.l.s4 1966171168
    %v2184 = vunpack.c.0.s8 %v2183
    %v2185 = vlaneseq
    %v2186 = vshrl.u32 %v2185, 7
    %v2187 = vsub.s32 %v2184, %v2186
    %v2188 = vrot.slane %v2181, %v2187
    %v2190 = vunpack.c.l.s4 1966171168
    %v2191 = vunpack.c.0.s8 %v2190
    %v2192 = vlaneseq
    %v2193 = vshrl.u32 %v2192, 7
    %v2194 = vsub.s32 %v2191, %v2193
    %v2195 = vrot.slane %v2180, %v2194
    %v2196 = vcombine.low %v2188, %v2195
    %2197 = vrot.lane.b32.xlu0 %v2196, 64
    %v2198 = vpop.permute.xlu0 %2197
    %vm2199 = vcmask 39936
    %v2201 = vsel %vm2199, %v2151, 0
    %vm2203 = vcmask 1044480
    %v2204 = vsel %vm2203, %v2198, 0
    %2206 = vmatprep.subr.mxu0 0.0
    %2207 = vmatpush1.msra.mxu0 0.0
    %2208 = vmatprep.subr.mxu0 0.0
    %2209 = vmatpush1.msra.mxu0 0.0
    %2210 = vmatprep.subr.mxu0 0.0
    %2211 = vmatpush1.msra.mxu0 0.0
    %2212 = vmatprep.subr.mxu0 0.0
    %2213 = vmatpush1.msra.mxu0 0.0
    %2214 = vmatprep.subr.mxu0 0.0
    %2215 = vmatpush1.msra.mxu0 0.0
    %2216 = vmatprep.subr.mxu0 0.0
    %2217 = vmatpush1.msra.mxu0 0.0
    %2218 = vmatprep.subr.mxu0 0.0
    %2219 = vmatpush1.msra.mxu0 0.0
    %2220 = vmatprep.subr.mxu0 0.0
    %2221 = vmatpush1.msra.mxu0 0.0
    %2222 = vmatprep.subr.mxu0 0.0
    %2223 = vmatpush1.msra.mxu0 0.0
    %2224 = vmatprep.subr.mxu0 0.0
    %2225 = vmatpush1.msra.mxu0 0.0
    %2226 = vmatprep.subr.mxu0 0.0
    %2227 = vmatpush1.msra.mxu0 0.0
    %2228 = vmatprep.subr.mxu0 0.0
    %2229 = vmatpush1.msra.mxu0 0.0
    %2230 = vmatprep.subr.mxu0 0.0
    %2231 = vmatpush1.msra.mxu0 0.0
    %2232 = vmatprep.subr.mxu0 0.0
    %2233 = vmatpush1.msra.mxu0 0.0
    %2234 = vmatprep.subr.mxu0 0.0
    %2235 = vmatpush1.msra.mxu0 0.0
    %2236 = vmatprep.subr.mxu0 0.0
    %2237 = vmatpush1.msra.mxu0 %v2204
    %2238 = vmatprep.subr.mxu0 0.0
    %2239 = vmatpush2.msra.mxu0 0.0
    %2240 = vmatprep.subr.mxu0 0.0
    %2241 = vmatpush2.msra.mxu0 0.0
    %2242 = vmatprep.subr.mxu0 0.0
    %2243 = vmatpush2.msra.mxu0 0.0
    %2244 = vmatprep.subr.mxu0 0.0
    %2245 = vmatpush2.msra.mxu0 0.0
    %2246 = vmatprep.subr.mxu0 0.0
    %2247 = vmatpush2.msra.mxu0 0.0
    %2248 = vmatprep.subr.mxu0 0.0
    %2249 = vmatpush2.msra.mxu0 0.0
    %2250 = vmatprep.subr.mxu0 0.0
    %2251 = vmatpush2.msra.mxu0 0.0
    %2252 = vmatprep.subr.mxu0 0.0
    %2253 = vmatpush2.msra.mxu0 0.0
    %2254 = vmatprep.subr.mxu0 0.0
    %2255 = vmatpush2.msra.mxu0 0.0
    %2256 = vmatprep.subr.mxu0 0.0
    %2257 = vmatpush2.msra.mxu0 0.0
    %2258 = vmatprep.subr.mxu0 0.0
    %2259 = vmatpush2.msra.mxu0 0.0
    %2260 = vmatprep.subr.mxu0 0.0
    %2261 = vmatpush2.msra.mxu0 0.0
    %2262 = vmatprep.subr.mxu0 0.0
    %2263 = vmatpush2.msra.mxu0 0.0
    %2264 = vmatprep.subr.mxu0 0.0
    %2265 = vmatpush2.msra.mxu0 0.0
    %2266 = vmatprep.subr.mxu0 0.0
    %2267 = vmatpush2.msra.mxu0 0.0
    %2268 = vmatprep.subr.mxu0 0.0
    %2269 = vmatpush2.msra.mxu0 0.0
    %2270 = vmatprep.mubr.f32.mxu0 0.0
    %2271 = vmatmul.mubr.f32.gmra.mxu0 %v2201
    %v2272 = vpop.f32.mrf.mxu0
    %v2273 = vadd.f32 0.0, %v2272
    %v2274 = vpop.f32.mrf.mxu0
    %2275 = vdwg.mxu0
    %v2281 = vcombine.low %v1888, %v1889
    %v2282 = vcombine.low %v1890, %v1891
    %v2284 = vunpack.c.l.s4 1966171168
    %v2285 = vunpack.c.0.s8 %v2284
    %v2286 = vlaneseq
    %v2287 = vshrl.u32 %v2286, 7
    %v2288 = vsub.s32 %v2285, %v2287
    %v2289 = vrot.slane %v2281, %v2288
    %v2291 = vunpack.c.l.s4 1966171168
    %v2292 = vunpack.c.0.s8 %v2291
    %v2293 = vlaneseq
    %v2294 = vshrl.u32 %v2293, 7
    %v2295 = vsub.s32 %v2292, %v2294
    %v2296 = vrot.slane %v2282, %v2295
    %v2298 = vunpack.c.l.s4 1966171168
    %v2299 = vunpack.c.0.s8 %v2298
    %v2300 = vlaneseq
    %v2301 = vshrl.u32 %v2300, 7
    %v2302 = vsub.s32 %v2299, %v2301
    %v2303 = vrot.slane %v1892, %v2302
    %v2304 = vcombine.low %v2289, %v2296
    %v2306 = vunpack.c.l.s4 1966171168
    %v2307 = vunpack.c.0.s8 %v2306
    %v2308 = vlaneseq
    %v2309 = vshrl.u32 %v2308, 7
    %v2310 = vsub.s32 %v2307, %v2309
    %v2311 = vrot.slane %v2304, %v2310
    %v2313 = vunpack.c.l.s4 1966171168
    %v2314 = vunpack.c.0.s8 %v2313
    %v2315 = vlaneseq
    %v2316 = vshrl.u32 %v2315, 7
    %v2317 = vsub.s32 %v2314, %v2316
    %v2318 = vrot.slane %v2303, %v2317
    %v2319 = vcombine.low %v2311, %v2318
    %2320 = vrot.lane.b32.xlu0 %v2319, 64
    %v2321 = vpop.permute.xlu0 %2320
    %v2323 = vsel %vm2199, %v2152, 0
    %v2325 = vsel %vm2203, %v2321, 0
    %2327 = vmatprep.subr.mxu0 0.0
    %2328 = vmatpush1.msra.mxu0 0.0
    %2329 = vmatprep.subr.mxu0 0.0
    %2330 = vmatpush1.msra.mxu0 0.0
    %2331 = vmatprep.subr.mxu0 0.0
    %2332 = vmatpush1.msra.mxu0 0.0
    %2333 = vmatprep.subr.mxu0 0.0
    %2334 = vmatpush1.msra.mxu0 0.0
    %2335 = vmatprep.subr.mxu0 0.0
    %2336 = vmatpush1.msra.mxu0 0.0
    %2337 = vmatprep.subr.mxu0 0.0
    %2338 = vmatpush1.msra.mxu0 0.0
    %2339 = vmatprep.subr.mxu0 0.0
    %2340 = vmatpush1.msra.mxu0 0.0
    %2341 = vmatprep.subr.mxu0 0.0
    %2342 = vmatpush1.msra.mxu0 0.0
    %2343 = vmatprep.subr.mxu0 0.0
    %2344 = vmatpush1.msra.mxu0 0.0
    %2345 = vmatprep.subr.mxu0 0.0
    %2346 = vmatpush1.msra.mxu0 0.0
    %2347 = vmatprep.subr.mxu0 0.0
    %2348 = vmatpush1.msra.mxu0 0.0
    %2349 = vmatprep.subr.mxu0 0.0
    %2350 = vmatpush1.msra.mxu0 0.0
    %2351 = vmatprep.subr.mxu0 0.0
    %2352 = vmatpush1.msra.mxu0 0.0
    %2353 = vmatprep.subr.mxu0 0.0
    %2354 = vmatpush1.msra.mxu0 0.0
    %2355 = vmatprep.subr.mxu0 0.0
    %2356 = vmatpush1.msra.mxu0 0.0
    %2357 = vmatprep.subr.mxu0 0.0
    %2358 = vmatpush1.msra.mxu0 %v2325
    %2359 = vmatprep.subr.mxu0 0.0
    %2360 = vmatpush2.msra.mxu0 0.0
    %2361 = vmatprep.subr.mxu0 0.0
    %2362 = vmatpush2.msra.mxu0 0.0
    %2363 = vmatprep.subr.mxu0 0.0
    %2364 = vmatpush2.msra.mxu0 0.0
    %2365 = vmatprep.subr.mxu0 0.0
    %2366 = vmatpush2.msra.mxu0 0.0
    %2367 = vmatprep.subr.mxu0 0.0
    %2368 = vmatpush2.msra.mxu0 0.0
    %2369 = vmatprep.subr.mxu0 0.0
    %2370 = vmatpush2.msra.mxu0 0.0
    %2371 = vmatprep.subr.mxu0 0.0
    %2372 = vmatpush2.msra.mxu0 0.0
    %2373 = vmatprep.subr.mxu0 0.0
    %2374 = vmatpush2.msra.mxu0 0.0
    %2375 = vmatprep.subr.mxu0 0.0
    %2376 = vmatpush2.msra.mxu0 0.0
    %2377 = vmatprep.subr.mxu0 0.0
    %2378 = vmatpush2.msra.mxu0 0.0
    %2379 = vmatprep.subr.mxu0 0.0
    %2380 = vmatpush2.msra.mxu0 0.0
    %2381 = vmatprep.subr.mxu0 0.0
    %2382 = vmatpush2.msra.mxu0 0.0
    %2383 = vmatprep.subr.mxu0 0.0
    %2384 = vmatpush2.msra.mxu0 0.0
    %2385 = vmatprep.subr.mxu0 0.0
    %2386 = vmatpush2.msra.mxu0 0.0
    %2387 = vmatprep.subr.mxu0 0.0
    %2388 = vmatpush2.msra.mxu0 0.0
    %2389 = vmatprep.subr.mxu0 0.0
    %2390 = vmatpush2.msra.mxu0 0.0
    %2391 = vmatprep.mubr.f32.mxu0 0.0
    %2392 = vmatmul.mubr.f32.gmra.mxu0 %v2323
    %v2393 = vpop.f32.mrf.mxu0
    %v2394 = vadd.f32 0.0, %v2393
    %v2395 = vpop.f32.mrf.mxu0
    %2396 = vdwg.mxu0
    %v2402 = vcombine.low %v1450, %v1451
    %v2403 = vcombine.low %v1452, %v1453
    %v2405 = vunpack.c.l.s4 1966171168
    %v2406 = vunpack.c.0.s8 %v2405
    %v2407 = vlaneseq
    %v2408 = vshrl.u32 %v2407, 7
    %v2409 = vsub.s32 %v2406, %v2408
    %v2410 = vrot.slane %v2402, %v2409
    %v2412 = vunpack.c.l.s4 1966171168
    %v2413 = vunpack.c.0.s8 %v2412
    %v2414 = vlaneseq
    %v2415 = vshrl.u32 %v2414, 7
    %v2416 = vsub.s32 %v2413, %v2415
    %v2417 = vrot.slane %v2403, %v2416
    %v2419 = vunpack.c.l.s4 1966171168
    %v2420 = vunpack.c.0.s8 %v2419
    %v2421 = vlaneseq
    %v2422 = vshrl.u32 %v2421, 7
    %v2423 = vsub.s32 %v2420, %v2422
    %v2424 = vrot.slane %v1454, %v2423
    %v2425 = vcombine.low %v2410, %v2417
    %v2427 = vunpack.c.l.s4 1966171168
    %v2428 = vunpack.c.0.s8 %v2427
    %v2429 = vlaneseq
    %v2430 = vshrl.u32 %v2429, 7
    %v2431 = vsub.s32 %v2428, %v2430
    %v2432 = vrot.slane %v2425, %v2431
    %v2434 = vunpack.c.l.s4 1966171168
    %v2435 = vunpack.c.0.s8 %v2434
    %v2436 = vlaneseq
    %v2437 = vshrl.u32 %v2436, 7
    %v2438 = vsub.s32 %v2435, %v2437
    %v2439 = vrot.slane %v2424, %v2438
    %v2440 = vcombine.low %v2432, %v2439
    %2441 = vrot.lane.b32.xlu0 %v2440, 64
    %v2442 = vpop.permute.xlu0 %2441
    %v2444 = vsel %vm2199, %v1801, 0
    %v2446 = vsel %vm2203, %v2442, 0
    %2448 = vmatprep.subr.mxu0 0.0
    %2449 = vmatpush1.msra.mxu0 0.0
    %2450 = vmatprep.subr.mxu0 0.0
    %2451 = vmatpush1.msra.mxu0 0.0
    %2452 = vmatprep.subr.mxu0 0.0
    %2453 = vmatpush1.msra.mxu0 0.0
    %2454 = vmatprep.subr.mxu0 0.0
    %2455 = vmatpush1.msra.mxu0 0.0
    %2456 = vmatprep.subr.mxu0 0.0
    %2457 = vmatpush1.msra.mxu0 0.0
    %2458 = vmatprep.subr.mxu0 0.0
    %2459 = vmatpush1.msra.mxu0 0.0
    %2460 = vmatprep.subr.mxu0 0.0
    %2461 = vmatpush1.msra.mxu0 0.0
    %2462 = vmatprep.subr.mxu0 0.0
    %2463 = vmatpush1.msra.mxu0 0.0
    %2464 = vmatprep.subr.mxu0 0.0
    %2465 = vmatpush1.msra.mxu0 0.0
    %2466 = vmatprep.subr.mxu0 0.0
    %2467 = vmatpush1.msra.mxu0 0.0
    %2468 = vmatprep.subr.mxu0 0.0
    %2469 = vmatpush1.msra.mxu0 0.0
    %2470 = vmatprep.subr.mxu0 0.0
    %2471 = vmatpush1.msra.mxu0 0.0
    %2472 = vmatprep.subr.mxu0 0.0
    %2473 = vmatpush1.msra.mxu0 0.0
    %2474 = vmatprep.subr.mxu0 0.0
    %2475 = vmatpush1.msra.mxu0 0.0
    %2476 = vmatprep.subr.mxu0 0.0
    %2477 = vmatpush1.msra.mxu0 0.0
    %2478 = vmatprep.subr.mxu0 0.0
    %2479 = vmatpush1.msra.mxu0 %v2446
    %2480 = vmatprep.subr.mxu0 0.0
    %2481 = vmatpush2.msra.mxu0 0.0
    %2482 = vmatprep.subr.mxu0 0.0
    %2483 = vmatpush2.msra.mxu0 0.0
    %2484 = vmatprep.subr.mxu0 0.0
    %2485 = vmatpush2.msra.mxu0 0.0
    %2486 = vmatprep.subr.mxu0 0.0
    %2487 = vmatpush2.msra.mxu0 0.0
    %2488 = vmatprep.subr.mxu0 0.0
    %2489 = vmatpush2.msra.mxu0 0.0
    %2490 = vmatprep.subr.mxu0 0.0
    %2491 = vmatpush2.msra.mxu0 0.0
    %2492 = vmatprep.subr.mxu0 0.0
    %2493 = vmatpush2.msra.mxu0 0.0
    %2494 = vmatprep.subr.mxu0 0.0
    %2495 = vmatpush2.msra.mxu0 0.0
    %2496 = vmatprep.subr.mxu0 0.0
    %2497 = vmatpush2.msra.mxu0 0.0
    %2498 = vmatprep.subr.mxu0 0.0
    %2499 = vmatpush2.msra.mxu0 0.0
    %2500 = vmatprep.subr.mxu0 0.0
    %2501 = vmatpush2.msra.mxu0 0.0
    %2502 = vmatprep.subr.mxu0 0.0
    %2503 = vmatpush2.msra.mxu0 0.0
    %2504 = vmatprep.subr.mxu0 0.0
    %2505 = vmatpush2.msra.mxu0 0.0
    %2506 = vmatprep.subr.mxu0 0.0
    %2507 = vmatpush2.msra.mxu0 0.0
    %2508 = vmatprep.subr.mxu0 0.0
    %2509 = vmatpush2.msra.mxu0 0.0
    %2510 = vmatprep.subr.mxu0 0.0
    %2511 = vmatpush2.msra.mxu0 0.0
    %2512 = vmatprep.mubr.f32.mxu0 0.0
    %2513 = vmatmul.mubr.f32.gmra.mxu0 %v2444
    %v2514 = vpop.f32.mrf.mxu0
    %v2515 = vadd.f32 %v2273, %v2514
    %v2516 = vpop.f32.mrf.mxu0
    %2517 = vdwg.mxu0
    %v2523 = vcombine.low %v1455, %v1456
    %v2524 = vcombine.low %v1457, %v1458
    %v2526 = vunpack.c.l.s4 1966171168
    %v2527 = vunpack.c.0.s8 %v2526
    %v2528 = vlaneseq
    %v2529 = vshrl.u32 %v2528, 7
    %v2530 = vsub.s32 %v2527, %v2529
    %v2531 = vrot.slane %v2523, %v2530
    %v2533 = vunpack.c.l.s4 1966171168
    %v2534 = vunpack.c.0.s8 %v2533
    %v2535 = vlaneseq
    %v2536 = vshrl.u32 %v2535, 7
    %v2537 = vsub.s32 %v2534, %v2536
    %v2538 = vrot.slane %v2524, %v2537
    %v2540 = vunpack.c.l.s4 1966171168
    %v2541 = vunpack.c.0.s8 %v2540
    %v2542 = vlaneseq
    %v2543 = vshrl.u32 %v2542, 7
    %v2544 = vsub.s32 %v2541, %v2543
    %v2545 = vrot.slane %v1459, %v2544
    %v2546 = vcombine.low %v2531, %v2538
    %v2548 = vunpack.c.l.s4 1966171168
    %v2549 = vunpack.c.0.s8 %v2548
    %v2550 = vlaneseq
    %v2551 = vshrl.u32 %v2550, 7
    %v2552 = vsub.s32 %v2549, %v2551
    %v2553 = vrot.slane %v2546, %v2552
    %v2555 = vunpack.c.l.s4 1966171168
    %v2556 = vunpack.c.0.s8 %v2555
    %v2557 = vlaneseq
    %v2558 = vshrl.u32 %v2557, 7
    %v2559 = vsub.s32 %v2556, %v2558
    %v2560 = vrot.slane %v2545, %v2559
    %v2561 = vcombine.low %v2553, %v2560
    %2562 = vrot.lane.b32.xlu0 %v2561, 64
    %v2563 = vpop.permute.xlu0 %2562
    %v2565 = vsel %vm2199, %v1802, 0
    %v2567 = vsel %vm2203, %v2563, 0
    %2569 = vmatprep.subr.mxu0 0.0
    %2570 = vmatpush1.msra.mxu0 0.0
    %2571 = vmatprep.subr.mxu0 0.0
    %2572 = vmatpush1.msra.mxu0 0.0
    %2573 = vmatprep.subr.mxu0 0.0
    %2574 = vmatpush1.msra.mxu0 0.0
    %2575 = vmatprep.subr.mxu0 0.0
    %2576 = vmatpush1.msra.mxu0 0.0
    %2577 = vmatprep.subr.mxu0 0.0
    %2578 = vmatpush1.msra.mxu0 0.0
    %2579 = vmatprep.subr.mxu0 0.0
    %2580 = vmatpush1.msra.mxu0 0.0
    %2581 = vmatprep.subr.mxu0 0.0
    %2582 = vmatpush1.msra.mxu0 0.0
    %2583 = vmatprep.subr.mxu0 0.0
    %2584 = vmatpush1.msra.mxu0 0.0
    %2585 = vmatprep.subr.mxu0 0.0
    %2586 = vmatpush1.msra.mxu0 0.0
    %2587 = vmatprep.subr.mxu0 0.0
    %2588 = vmatpush1.msra.mxu0 0.0
    %2589 = vmatprep.subr.mxu0 0.0
    %2590 = vmatpush1.msra.mxu0 0.0
    %2591 = vmatprep.subr.mxu0 0.0
    %2592 = vmatpush1.msra.mxu0 0.0
    %2593 = vmatprep.subr.mxu0 0.0
    %2594 = vmatpush1.msra.mxu0 0.0
    %2595 = vmatprep.subr.mxu0 0.0
    %2596 = vmatpush1.msra.mxu0 0.0
    %2597 = vmatprep.subr.mxu0 0.0
    %2598 = vmatpush1.msra.mxu0 0.0
    %2599 = vmatprep.subr.mxu0 0.0
    %2600 = vmatpush1.msra.mxu0 %v2567
    %2601 = vmatprep.subr.mxu0 0.0
    %2602 = vmatpush2.msra.mxu0 0.0
    %2603 = vmatprep.subr.mxu0 0.0
    %2604 = vmatpush2.msra.mxu0 0.0
    %2605 = vmatprep.subr.mxu0 0.0
    %2606 = vmatpush2.msra.mxu0 0.0
    %2607 = vmatprep.subr.mxu0 0.0
    %2608 = vmatpush2.msra.mxu0 0.0
    %2609 = vmatprep.subr.mxu0 0.0
    %2610 = vmatpush2.msra.mxu0 0.0
    %2611 = vmatprep.subr.mxu0 0.0
    %2612 = vmatpush2.msra.mxu0 0.0
    %2613 = vmatprep.subr.mxu0 0.0
    %2614 = vmatpush2.msra.mxu0 0.0
    %2615 = vmatprep.subr.mxu0 0.0
    %2616 = vmatpush2.msra.mxu0 0.0
    %2617 = vmatprep.subr.mxu0 0.0
    %2618 = vmatpush2.msra.mxu0 0.0
    %2619 = vmatprep.subr.mxu0 0.0
    %2620 = vmatpush2.msra.mxu0 0.0
    %2621 = vmatprep.subr.mxu0 0.0
    %2622 = vmatpush2.msra.mxu0 0.0
    %2623 = vmatprep.subr.mxu0 0.0
    %2624 = vmatpush2.msra.mxu0 0.0
    %2625 = vmatprep.subr.mxu0 0.0
    %2626 = vmatpush2.msra.mxu0 0.0
    %2627 = vmatprep.subr.mxu0 0.0
    %2628 = vmatpush2.msra.mxu0 0.0
    %2629 = vmatprep.subr.mxu0 0.0
    %2630 = vmatpush2.msra.mxu0 0.0
    %2631 = vmatprep.subr.mxu0 0.0
    %2632 = vmatpush2.msra.mxu0 0.0
    %2633 = vmatprep.mubr.f32.mxu0 0.0
    %2634 = vmatmul.mubr.f32.gmra.mxu0 %v2565
    %v2635 = vpop.f32.mrf.mxu0
    %v2636 = vadd.f32 %v2394, %v2635
    %v2637 = vpop.f32.mrf.mxu0
    %2638 = vdwg.mxu0
    %v2640 = vcombine.high %v1364, %v1364
    %v2642 = vunpack.c.l.s4 1966171168
    %v2643 = vunpack.c.0.s8 %v2642
    %v2644 = vlaneseq
    %v2645 = vshrl.u32 %v2644, 7
    %v2646 = vsub.s32 %v2643, %v2645
    %v2647 = vrot.slane %v1364, %v2646
    %v2649 = vunpack.c.l.s4 1966171168
    %v2650 = vunpack.c.0.s8 %v2649
    %v2651 = vlaneseq
    %v2652 = vshrl.u32 %v2651, 7
    %v2653 = vsub.s32 %v2650, %v2652
    %v2654 = vrot.slane %v2640, %v2653
    %v2655 = vcombine.high %v2647, %v2647
    %v2657 = vunpack.c.l.s4 1966171168
    %v2658 = vunpack.c.0.s8 %v2657
    %v2659 = vlaneseq
    %v2660 = vshrl.u32 %v2659, 7
    %v2661 = vsub.s32 %v2658, %v2660
    %v2662 = vrot.slane %v2647, %v2661
    %v2664 = vunpack.c.l.s4 1966171168
    %v2665 = vunpack.c.0.s8 %v2664
    %v2666 = vlaneseq
    %v2667 = vshrl.u32 %v2666, 7
    %v2668 = vsub.s32 %v2665, %v2667
    %v2669 = vrot.slane %v2654, %v2668
    %v2671 = vunpack.c.l.s4 1966171168
    %v2672 = vunpack.c.0.s8 %v2671
    %v2673 = vlaneseq
    %v2674 = vshrl.u32 %v2673, 7
    %v2675 = vsub.s32 %v2672, %v2674
    %v2676 = vrot.slane %v2655, %v2675
    %v2677 = vcombine.high %v2662, %v2662
    %v2678 = vcombine.high %v2676, %v2676
    %2679 = vrot.lane.b32.xlu0 %v2662, 32
    %v2680 = vpop.permute.xlu0 %2679
    %2681 = vrot.lane.b32.xlu0 %v2676, 32
    %v2682 = vpop.permute.xlu0 %2681
    %2683 = vrot.lane.b32.xlu0 %v2677, 32
    %v2684 = vpop.permute.xlu0 %2683
    %2685 = vrot.lane.b32.xlu0 %v2678, 32
    %v2686 = vpop.permute.xlu0 %2685
    %2687 = vrot.lane.b32.xlu0 %v2669, 32
    %v2688 = vpop.permute.xlu0 %2687
    %v2694 = vmul.f32 %v1290, %v2680
    %v2695 = vmul.f32 %v1304, %v2682
    %v2696 = vmul.f32 %v1312, %v2684
    %v2697 = vmul.f32 %v1314, %v2686
    %v2698 = vmul.f32 %v1297, %v2688
    %v2699 = vmul.f32 %v1311, %v2680
    %v2700 = vmul.f32 %v1313, %v2682
    %v2701 = vmul.f32 %v1315, %v2684
    %v2702 = vmul.f32 %v1330, %v2686
    %v2703 = vmul.f32 %v1337, %v2688
    %2704 = vrot.lane.b32.xlu0 %v2662, 64
    %v2705 = vpop.permute.xlu0 %2704
    %2706 = vrot.lane.b32.xlu0 %v2676, 64
    %v2707 = vpop.permute.xlu0 %2706
    %2708 = vrot.lane.b32.xlu0 %v2677, 64
    %v2709 = vpop.permute.xlu0 %2708
    %2710 = vrot.lane.b32.xlu0 %v2678, 64
    %v2711 = vpop.permute.xlu0 %2710
    %2712 = vrot.lane.b32.xlu0 %v2669, 64
    %v2713 = vpop.permute.xlu0 %2712
    %v2719 = vmul.f32 %v1290, %v2705
    %v2720 = vmul.f32 %v1304, %v2707
    %v2721 = vmul.f32 %v1312, %v2709
    %v2722 = vmul.f32 %v1314, %v2711
    %v2723 = vmul.f32 %v1297, %v2713
    %v2724 = vmul.f32 %v1311, %v2705
    %v2725 = vmul.f32 %v1313, %v2707
    %v2726 = vmul.f32 %v1315, %v2709
    %v2727 = vmul.f32 %v1330, %v2711
    %v2728 = vmul.f32 %v1337, %v2713
    %v2734 = vcombine.low %v2694, %v2695
    %v2735 = vcombine.low %v2696, %v2697
    %v2737 = vunpack.c.l.s4 1966171168
    %v2738 = vunpack.c.0.s8 %v2737
    %v2739 = vlaneseq
    %v2740 = vshrl.u32 %v2739, 7
    %v2741 = vsub.s32 %v2738, %v2740
    %v2742 = vrot.slane %v2734, %v2741
    %v2744 = vunpack.c.l.s4 1966171168
    %v2745 = vunpack.c.0.s8 %v2744
    %v2746 = vlaneseq
    %v2747 = vshrl.u32 %v2746, 7
    %v2748 = vsub.s32 %v2745, %v2747
    %v2749 = vrot.slane %v2735, %v2748
    %v2751 = vunpack.c.l.s4 1966171168
    %v2752 = vunpack.c.0.s8 %v2751
    %v2753 = vlaneseq
    %v2754 = vshrl.u32 %v2753, 7
    %v2755 = vsub.s32 %v2752, %v2754
    %v2756 = vrot.slane %v2698, %v2755
    %v2757 = vcombine.low %v2742, %v2749
    %v2759 = vunpack.c.l.s4 1966171168
    %v2760 = vunpack.c.0.s8 %v2759
    %v2761 = vlaneseq
    %v2762 = vshrl.u32 %v2761, 7
    %v2763 = vsub.s32 %v2760, %v2762
    %v2764 = vrot.slane %v2757, %v2763
    %v2766 = vunpack.c.l.s4 1966171168
    %v2767 = vunpack.c.0.s8 %v2766
    %v2768 = vlaneseq
    %v2769 = vshrl.u32 %v2768, 7
    %v2770 = vsub.s32 %v2767, %v2769
    %v2771 = vrot.slane %v2756, %v2770
    %v2772 = vcombine.low %v2764, %v2771
    %2773 = vrot.lane.b32.xlu0 %v2772, 96
    %v2774 = vpop.permute.xlu0 %2773
    %v2775 = vsel %vm727, %v2774, 0
    %2777 = vmatprep.subr.mxu0 0.0
    %2778 = vmatpush1.xpose.msra.mxu0 0.0
    %2779 = vmatprep.subr.mxu0 0.0
    %2780 = vmatpush1.xpose.msra.mxu0 0.0
    %2781 = vmatprep.subr.mxu0 0.0
    %2782 = vmatpush1.xpose.msra.mxu0 0.0
    %2783 = vmatprep.subr.mxu0 0.0
    %2784 = vmatpush1.xpose.msra.mxu0 0.0
    %2785 = vmatprep.subr.mxu0 0.0
    %2786 = vmatpush1.xpose.msra.mxu0 0.0
    %2787 = vmatprep.subr.mxu0 0.0
    %2788 = vmatpush1.xpose.msra.mxu0 0.0
    %2789 = vmatprep.subr.mxu0 0.0
    %2790 = vmatpush1.xpose.msra.mxu0 0.0
    %2791 = vmatprep.subr.mxu0 0.0
    %2792 = vmatpush1.xpose.msra.mxu0 0.0
    %2793 = vmatprep.subr.mxu0 0.0
    %2794 = vmatpush1.xpose.msra.mxu0 0.0
    %2795 = vmatprep.subr.mxu0 0.0
    %2796 = vmatpush1.xpose.msra.mxu0 0.0
    %2797 = vmatprep.subr.mxu0 0.0
    %2798 = vmatpush1.xpose.msra.mxu0 0.0
    %2799 = vmatprep.subr.mxu0 0.0
    %2800 = vmatpush1.xpose.msra.mxu0 0.0
    %2801 = vmatprep.subr.mxu0 0.0
    %2802 = vmatpush1.xpose.msra.mxu0 0.0
    %2803 = vmatprep.subr.mxu0 0.0
    %2804 = vmatpush1.xpose.msra.mxu0 0.0
    %2805 = vmatprep.subr.mxu0 0.0
    %2806 = vmatpush1.xpose.msra.mxu0 0.0
    %2807 = vmatprep.subr.mxu0 0.0
    %2808 = vmatpush1.xpose.msra.mxu0 %v2775
    %2809 = vmatprep.subr.mxu0 0.0
    %2810 = vmatpush2.xpose.msra.mxu0 0.0
    %2811 = vmatprep.subr.mxu0 0.0
    %2812 = vmatpush2.xpose.msra.mxu0 0.0
    %2813 = vmatprep.subr.mxu0 0.0
    %2814 = vmatpush2.xpose.msra.mxu0 0.0
    %2815 = vmatprep.subr.mxu0 0.0
    %2816 = vmatpush2.xpose.msra.mxu0 0.0
    %2817 = vmatprep.subr.mxu0 0.0
    %2818 = vmatpush2.xpose.msra.mxu0 0.0
    %2819 = vmatprep.subr.mxu0 0.0
    %2820 = vmatpush2.xpose.msra.mxu0 0.0
    %2821 = vmatprep.subr.mxu0 0.0
    %2822 = vmatpush2.xpose.msra.mxu0 0.0
    %2823 = vmatprep.subr.mxu0 0.0
    %2824 = vmatpush2.xpose.msra.mxu0 0.0
    %2825 = vmatprep.subr.mxu0 0.0
    %2826 = vmatpush2.xpose.msra.mxu0 0.0
    %2827 = vmatprep.subr.mxu0 0.0
    %2828 = vmatpush2.xpose.msra.mxu0 0.0
    %2829 = vmatprep.subr.mxu0 0.0
    %2830 = vmatpush2.xpose.msra.mxu0 0.0
    %2831 = vmatprep.subr.mxu0 0.0
    %2832 = vmatpush2.xpose.msra.mxu0 0.0
    %2833 = vmatprep.subr.mxu0 0.0
    %2834 = vmatpush2.xpose.msra.mxu0 0.0
    %2835 = vmatprep.subr.mxu0 0.0
    %2836 = vmatpush2.xpose.msra.mxu0 0.0
    %2837 = vmatprep.subr.mxu0 0.0
    %2838 = vmatpush2.xpose.msra.mxu0 0.0
    %2839 = vmatprep.subr.mxu0 0.0
    %2840 = vmatpush2.xpose.msra.mxu0 0.0
    %2841 = vmatprep.mubr.f32.mxu0 0.0
    %2842 = vmatmul.mubr.f32.gmra.mxu0 %v1545
    %v2843 = vpop.f32.mrf.mxu0
    %v2844 = vadd.f32 0.0, %v2843
    %v2845 = vpop.f32.mrf.mxu0
    %2846 = vdwg.mxu0
    %v2852 = vcombine.low %v2699, %v2700
    %v2853 = vcombine.low %v2701, %v2702
    %v2855 = vunpack.c.l.s4 1966171168
    %v2856 = vunpack.c.0.s8 %v2855
    %v2857 = vlaneseq
    %v2858 = vshrl.u32 %v2857, 7
    %v2859 = vsub.s32 %v2856, %v2858
    %v2860 = vrot.slane %v2852, %v2859
    %v2862 = vunpack.c.l.s4 1966171168
    %v2863 = vunpack.c.0.s8 %v2862
    %v2864 = vlaneseq
    %v2865 = vshrl.u32 %v2864, 7
    %v2866 = vsub.s32 %v2863, %v2865
    %v2867 = vrot.slane %v2853, %v2866
    %v2869 = vunpack.c.l.s4 1966171168
    %v2870 = vunpack.c.0.s8 %v2869
    %v2871 = vlaneseq
    %v2872 = vshrl.u32 %v2871, 7
    %v2873 = vsub.s32 %v2870, %v2872
    %v2874 = vrot.slane %v2703, %v2873
    %v2875 = vcombine.low %v2860, %v2867
    %v2877 = vunpack.c.l.s4 1966171168
    %v2878 = vunpack.c.0.s8 %v2877
    %v2879 = vlaneseq
    %v2880 = vshrl.u32 %v2879, 7
    %v2881 = vsub.s32 %v2878, %v2880
    %v2882 = vrot.slane %v2875, %v2881
    %v2884 = vunpack.c.l.s4 1966171168
    %v2885 = vunpack.c.0.s8 %v2884
    %v2886 = vlaneseq
    %v2887 = vshrl.u32 %v2886, 7
    %v2888 = vsub.s32 %v2885, %v2887
    %v2889 = vrot.slane %v2874, %v2888
    %v2890 = vcombine.low %v2882, %v2889
    %2891 = vrot.lane.b32.xlu0 %v2890, 96
    %v2892 = vpop.permute.xlu0 %2891
    %v2893 = vsel %vm727, %v2892, 0
    %2895 = vmatprep.subr.mxu0 0.0
    %2896 = vmatpush1.xpose.msra.mxu0 0.0
    %2897 = vmatprep.subr.mxu0 0.0
    %2898 = vmatpush1.xpose.msra.mxu0 0.0
    %2899 = vmatprep.subr.mxu0 0.0
    %2900 = vmatpush1.xpose.msra.mxu0 0.0
    %2901 = vmatprep.subr.mxu0 0.0
    %2902 = vmatpush1.xpose.msra.mxu0 0.0
    %2903 = vmatprep.subr.mxu0 0.0
    %2904 = vmatpush1.xpose.msra.mxu0 0.0
    %2905 = vmatprep.subr.mxu0 0.0
    %2906 = vmatpush1.xpose.msra.mxu0 0.0
    %2907 = vmatprep.subr.mxu0 0.0
    %2908 = vmatpush1.xpose.msra.mxu0 0.0
    %2909 = vmatprep.subr.mxu0 0.0
    %2910 = vmatpush1.xpose.msra.mxu0 0.0
    %2911 = vmatprep.subr.mxu0 0.0
    %2912 = vmatpush1.xpose.msra.mxu0 0.0
    %2913 = vmatprep.subr.mxu0 0.0
    %2914 = vmatpush1.xpose.msra.mxu0 0.0
    %2915 = vmatprep.subr.mxu0 0.0
    %2916 = vmatpush1.xpose.msra.mxu0 0.0
    %2917 = vmatprep.subr.mxu0 0.0
    %2918 = vmatpush1.xpose.msra.mxu0 0.0
    %2919 = vmatprep.subr.mxu0 0.0
    %2920 = vmatpush1.xpose.msra.mxu0 0.0
    %2921 = vmatprep.subr.mxu0 0.0
    %2922 = vmatpush1.xpose.msra.mxu0 0.0
    %2923 = vmatprep.subr.mxu0 0.0
    %2924 = vmatpush1.xpose.msra.mxu0 0.0
    %2925 = vmatprep.subr.mxu0 0.0
    %2926 = vmatpush1.xpose.msra.mxu0 %v2893
    %2927 = vmatprep.subr.mxu0 0.0
    %2928 = vmatpush2.xpose.msra.mxu0 0.0
    %2929 = vmatprep.subr.mxu0 0.0
    %2930 = vmatpush2.xpose.msra.mxu0 0.0
    %2931 = vmatprep.subr.mxu0 0.0
    %2932 = vmatpush2.xpose.msra.mxu0 0.0
    %2933 = vmatprep.subr.mxu0 0.0
    %2934 = vmatpush2.xpose.msra.mxu0 0.0
    %2935 = vmatprep.subr.mxu0 0.0
    %2936 = vmatpush2.xpose.msra.mxu0 0.0
    %2937 = vmatprep.subr.mxu0 0.0
    %2938 = vmatpush2.xpose.msra.mxu0 0.0
    %2939 = vmatprep.subr.mxu0 0.0
    %2940 = vmatpush2.xpose.msra.mxu0 0.0
    %2941 = vmatprep.subr.mxu0 0.0
    %2942 = vmatpush2.xpose.msra.mxu0 0.0
    %2943 = vmatprep.subr.mxu0 0.0
    %2944 = vmatpush2.xpose.msra.mxu0 0.0
    %2945 = vmatprep.subr.mxu0 0.0
    %2946 = vmatpush2.xpose.msra.mxu0 0.0
    %2947 = vmatprep.subr.mxu0 0.0
    %2948 = vmatpush2.xpose.msra.mxu0 0.0
    %2949 = vmatprep.subr.mxu0 0.0
    %2950 = vmatpush2.xpose.msra.mxu0 0.0
    %2951 = vmatprep.subr.mxu0 0.0
    %2952 = vmatpush2.xpose.msra.mxu0 0.0
    %2953 = vmatprep.subr.mxu0 0.0
    %2954 = vmatpush2.xpose.msra.mxu0 0.0
    %2955 = vmatprep.subr.mxu0 0.0
    %2956 = vmatpush2.xpose.msra.mxu0 0.0
    %2957 = vmatprep.subr.mxu0 0.0
    %2958 = vmatpush2.xpose.msra.mxu0 0.0
    %2959 = vmatprep.mubr.f32.mxu0 0.0
    %2960 = vmatmul.mubr.f32.gmra.mxu0 %v1704
    %v2961 = vpop.f32.mrf.mxu0
    %v2962 = vadd.f32 0.0, %v2961
    %v2963 = vpop.f32.mrf.mxu0
    %2964 = vdwg.mxu0
    %v2965 = vmul.f32 %v2844, 0.35355338
    %v2966 = vmul.f32 %v2962, 0.35355338
    %v2967 = vsel %vm1780, %v2965, -inf
    %2968 = vmax.xlane.f32.xlu0 %v2967
    %v2969 = vpop.xlane.xlu0 %2968
    %v2970 = vsel %vm1780, %v2966, -inf
    %2971 = vmax.xlane.f32.xlu0 %v2970
    %v2972 = vpop.xlane.xlu0 %2971
    %v2973 = vsub.f32 %v2965, %v2969
    %v2974 = vsub.f32 %v2966, %v2972
    %v2975 = vmul.f32 %v2973, 1.442695
    %v2976 = vpow.pop %v2975
    %v2977 = vmul.f32 %v2974, 1.442695
    %v2978 = vpow.pop %v2977
    %v2979 = vsel %vm1780, %v2976, 0.0
    %2980 = vadd.xlane.f32.xlu0 %v2979
    %v2981 = vpop.xlane.xlu0 %2980
    %v2982 = vsel %vm1780, %v2978, 0.0
    %2983 = vadd.xlane.f32.xlu0 %v2982
    %v2984 = vpop.xlane.xlu0 %2983
    %v2985 = vrcp.pop %v2981
    %v2986 = vrcp.pop %v2984
    %v2987 = vmul.f32 %v2976, %v2985
    %v2988 = vmul.f32 %v2978, %v2986
    %v2994 = vcombine.low %v2719, %v2720
    %v2995 = vcombine.low %v2721, %v2722
    %v2997 = vunpack.c.l.s4 1966171168
    %v2998 = vunpack.c.0.s8 %v2997
    %v2999 = vlaneseq
    %v3000 = vshrl.u32 %v2999, 7
    %v3001 = vsub.s32 %v2998, %v3000
    %v3002 = vrot.slane %v2994, %v3001
    %v3004 = vunpack.c.l.s4 1966171168
    %v3005 = vunpack.c.0.s8 %v3004
    %v3006 = vlaneseq
    %v3007 = vshrl.u32 %v3006, 7
    %v3008 = vsub.s32 %v3005, %v3007
    %v3009 = vrot.slane %v2995, %v3008
    %v3011 = vunpack.c.l.s4 1966171168
    %v3012 = vunpack.c.0.s8 %v3011
    %v3013 = vlaneseq
    %v3014 = vshrl.u32 %v3013, 7
    %v3015 = vsub.s32 %v3012, %v3014
    %v3016 = vrot.slane %v2723, %v3015
    %v3017 = vcombine.low %v3002, %v3009
    %v3019 = vunpack.c.l.s4 1966171168
    %v3020 = vunpack.c.0.s8 %v3019
    %v3021 = vlaneseq
    %v3022 = vshrl.u32 %v3021, 7
    %v3023 = vsub.s32 %v3020, %v3022
    %v3024 = vrot.slane %v3017, %v3023
    %v3026 = vunpack.c.l.s4 1966171168
    %v3027 = vunpack.c.0.s8 %v3026
    %v3028 = vlaneseq
    %v3029 = vshrl.u32 %v3028, 7
    %v3030 = vsub.s32 %v3027, %v3029
    %v3031 = vrot.slane %v3016, %v3030
    %v3032 = vcombine.low %v3024, %v3031
    %3033 = vrot.lane.b32.xlu0 %v3032, 64
    %v3034 = vpop.permute.xlu0 %3033
    %v3036 = vsel %vm2199, %v2987, 0
    %v3038 = vsel %vm2203, %v3034, 0
    %3040 = vmatprep.subr.mxu0 0.0
    %3041 = vmatpush1.msra.mxu0 0.0
    %3042 = vmatprep.subr.mxu0 0.0
    %3043 = vmatpush1.msra.mxu0 0.0
    %3044 = vmatprep.subr.mxu0 0.0
    %3045 = vmatpush1.msra.mxu0 0.0
    %3046 = vmatprep.subr.mxu0 0.0
    %3047 = vmatpush1.msra.mxu0 0.0
    %3048 = vmatprep.subr.mxu0 0.0
    %3049 = vmatpush1.msra.mxu0 0.0
    %3050 = vmatprep.subr.mxu0 0.0
    %3051 = vmatpush1.msra.mxu0 0.0
    %3052 = vmatprep.subr.mxu0 0.0
    %3053 = vmatpush1.msra.mxu0 0.0
    %3054 = vmatprep.subr.mxu0 0.0
    %3055 = vmatpush1.msra.mxu0 0.0
    %3056 = vmatprep.subr.mxu0 0.0
    %3057 = vmatpush1.msra.mxu0 0.0
    %3058 = vmatprep.subr.mxu0 0.0
    %3059 = vmatpush1.msra.mxu0 0.0
    %3060 = vmatprep.subr.mxu0 0.0
    %3061 = vmatpush1.msra.mxu0 0.0
    %3062 = vmatprep.subr.mxu0 0.0
    %3063 = vmatpush1.msra.mxu0 0.0
    %3064 = vmatprep.subr.mxu0 0.0
    %3065 = vmatpush1.msra.mxu0 0.0
    %3066 = vmatprep.subr.mxu0 0.0
    %3067 = vmatpush1.msra.mxu0 0.0
    %3068 = vmatprep.subr.mxu0 0.0
    %3069 = vmatpush1.msra.mxu0 0.0
    %3070 = vmatprep.subr.mxu0 0.0
    %3071 = vmatpush1.msra.mxu0 %v3038
    %3072 = vmatprep.subr.mxu0 0.0
    %3073 = vmatpush2.msra.mxu0 0.0
    %3074 = vmatprep.subr.mxu0 0.0
    %3075 = vmatpush2.msra.mxu0 0.0
    %3076 = vmatprep.subr.mxu0 0.0
    %3077 = vmatpush2.msra.mxu0 0.0
    %3078 = vmatprep.subr.mxu0 0.0
    %3079 = vmatpush2.msra.mxu0 0.0
    %3080 = vmatprep.subr.mxu0 0.0
    %3081 = vmatpush2.msra.mxu0 0.0
    %3082 = vmatprep.subr.mxu0 0.0
    %3083 = vmatpush2.msra.mxu0 0.0
    %3084 = vmatprep.subr.mxu0 0.0
    %3085 = vmatpush2.msra.mxu0 0.0
    %3086 = vmatprep.subr.mxu0 0.0
    %3087 = vmatpush2.msra.mxu0 0.0
    %3088 = vmatprep.subr.mxu0 0.0
    %3089 = vmatpush2.msra.mxu0 0.0
    %3090 = vmatprep.subr.mxu0 0.0
    %3091 = vmatpush2.msra.mxu0 0.0
    %3092 = vmatprep.subr.mxu0 0.0
    %3093 = vmatpush2.msra.mxu0 0.0
    %3094 = vmatprep.subr.mxu0 0.0
    %3095 = vmatpush2.msra.mxu0 0.0
    %3096 = vmatprep.subr.mxu0 0.0
    %3097 = vmatpush2.msra.mxu0 0.0
    %3098 = vmatprep.subr.mxu0 0.0
    %3099 = vmatpush2.msra.mxu0 0.0
    %3100 = vmatprep.subr.mxu0 0.0
    %3101 = vmatpush2.msra.mxu0 0.0
    %3102 = vmatprep.subr.mxu0 0.0
    %3103 = vmatpush2.msra.mxu0 0.0
    %3104 = vmatprep.mubr.f32.mxu0 0.0
    %3105 = vmatmul.mubr.f32.gmra.mxu0 %v3036
    %v3106 = vpop.f32.mrf.mxu0
    %v3107 = vadd.f32 0.0, %v3106
    %v3108 = vpop.f32.mrf.mxu0
    %3109 = vdwg.mxu0
    %v3115 = vcombine.low %v2724, %v2725
    %v3116 = vcombine.low %v2726, %v2727
    %v3118 = vunpack.c.l.s4 1966171168
    %v3119 = vunpack.c.0.s8 %v3118
    %v3120 = vlaneseq
    %v3121 = vshrl.u32 %v3120, 7
    %v3122 = vsub.s32 %v3119, %v3121
    %v3123 = vrot.slane %v3115, %v3122
    %v3125 = vunpack.c.l.s4 1966171168
    %v3126 = vunpack.c.0.s8 %v3125
    %v3127 = vlaneseq
    %v3128 = vshrl.u32 %v3127, 7
    %v3129 = vsub.s32 %v3126, %v3128
    %v3130 = vrot.slane %v3116, %v3129
    %v3132 = vunpack.c.l.s4 1966171168
    %v3133 = vunpack.c.0.s8 %v3132
    %v3134 = vlaneseq
    %v3135 = vshrl.u32 %v3134, 7
    %v3136 = vsub.s32 %v3133, %v3135
    %v3137 = vrot.slane %v2728, %v3136
    %v3138 = vcombine.low %v3123, %v3130
    %v3140 = vunpack.c.l.s4 1966171168
    %v3141 = vunpack.c.0.s8 %v3140
    %v3142 = vlaneseq
    %v3143 = vshrl.u32 %v3142, 7
    %v3144 = vsub.s32 %v3141, %v3143
    %v3145 = vrot.slane %v3138, %v3144
    %v3147 = vunpack.c.l.s4 1966171168
    %v3148 = vunpack.c.0.s8 %v3147
    %v3149 = vlaneseq
    %v3150 = vshrl.u32 %v3149, 7
    %v3151 = vsub.s32 %v3148, %v3150
    %v3152 = vrot.slane %v3137, %v3151
    %v3153 = vcombine.low %v3145, %v3152
    %3154 = vrot.lane.b32.xlu0 %v3153, 64
    %v3155 = vpop.permute.xlu0 %3154
    %v3157 = vsel %vm2199, %v2988, 0
    %v3159 = vsel %vm2203, %v3155, 0
    %3161 = vmatprep.subr.mxu0 0.0
    %3162 = vmatpush1.msra.mxu0 0.0
    %3163 = vmatprep.subr.mxu0 0.0
    %3164 = vmatpush1.msra.mxu0 0.0
    %3165 = vmatprep.subr.mxu0 0.0
    %3166 = vmatpush1.msra.mxu0 0.0
    %3167 = vmatprep.subr.mxu0 0.0
    %3168 = vmatpush1.msra.mxu0 0.0
    %3169 = vmatprep.subr.mxu0 0.0
    %3170 = vmatpush1.msra.mxu0 0.0
    %3171 = vmatprep.subr.mxu0 0.0
    %3172 = vmatpush1.msra.mxu0 0.0
    %3173 = vmatprep.subr.mxu0 0.0
    %3174 = vmatpush1.msra.mxu0 0.0
    %3175 = vmatprep.subr.mxu0 0.0
    %3176 = vmatpush1.msra.mxu0 0.0
    %3177 = vmatprep.subr.mxu0 0.0
    %3178 = vmatpush1.msra.mxu0 0.0
    %3179 = vmatprep.subr.mxu0 0.0
    %3180 = vmatpush1.msra.mxu0 0.0
    %3181 = vmatprep.subr.mxu0 0.0
    %3182 = vmatpush1.msra.mxu0 0.0
    %3183 = vmatprep.subr.mxu0 0.0
    %3184 = vmatpush1.msra.mxu0 0.0
    %3185 = vmatprep.subr.mxu0 0.0
    %3186 = vmatpush1.msra.mxu0 0.0
    %3187 = vmatprep.subr.mxu0 0.0
    %3188 = vmatpush1.msra.mxu0 0.0
    %3189 = vmatprep.subr.mxu0 0.0
    %3190 = vmatpush1.msra.mxu0 0.0
    %3191 = vmatprep.subr.mxu0 0.0
    %3192 = vmatpush1.msra.mxu0 %v3159
    %3193 = vmatprep.subr.mxu0 0.0
    %3194 = vmatpush2.msra.mxu0 0.0
    %3195 = vmatprep.subr.mxu0 0.0
    %3196 = vmatpush2.msra.mxu0 0.0
    %3197 = vmatprep.subr.mxu0 0.0
    %3198 = vmatpush2.msra.mxu0 0.0
    %3199 = vmatprep.subr.mxu0 0.0
    %3200 = vmatpush2.msra.mxu0 0.0
    %3201 = vmatprep.subr.mxu0 0.0
    %3202 = vmatpush2.msra.mxu0 0.0
    %3203 = vmatprep.subr.mxu0 0.0
    %3204 = vmatpush2.msra.mxu0 0.0
    %3205 = vmatprep.subr.mxu0 0.0
    %3206 = vmatpush2.msra.mxu0 0.0
    %3207 = vmatprep.subr.mxu0 0.0
    %3208 = vmatpush2.msra.mxu0 0.0
    %3209 = vmatprep.subr.mxu0 0.0
    %3210 = vmatpush2.msra.mxu0 0.0
    %3211 = vmatprep.subr.mxu0 0.0
    %3212 = vmatpush2.msra.mxu0 0.0
    %3213 = vmatprep.subr.mxu0 0.0
    %3214 = vmatpush2.msra.mxu0 0.0
    %3215 = vmatprep.subr.mxu0 0.0
    %3216 = vmatpush2.msra.mxu0 0.0
    %3217 = vmatprep.subr.mxu0 0.0
    %3218 = vmatpush2.msra.mxu0 0.0
    %3219 = vmatprep.subr.mxu0 0.0
    %3220 = vmatpush2.msra.mxu0 0.0
    %3221 = vmatprep.subr.mxu0 0.0
    %3222 = vmatpush2.msra.mxu0 0.0
    %3223 = vmatprep.subr.mxu0 0.0
    %3224 = vmatpush2.msra.mxu0 0.0
    %3225 = vmatprep.mubr.f32.mxu0 0.0
    %3226 = vmatmul.mubr.f32.gmra.mxu0 %v3157
    %v3227 = vpop.f32.mrf.mxu0
    %v3228 = vadd.f32 0.0, %v3227
    %v3229 = vpop.f32.mrf.mxu0
    %3230 = vdwg.mxu0
    %v3231 = vadd.f32 %v2515, %v3107
    %v3232 = vadd.f32 %v2636, %v3228
    %v3234 = vcombine.high %v1369, %v1369
    %v3236 = vunpack.c.l.s4 1966171168
    %v3237 = vunpack.c.0.s8 %v3236
    %v3238 = vlaneseq
    %v3239 = vshrl.u32 %v3238, 7
    %v3240 = vsub.s32 %v3237, %v3239
    %v3241 = vrot.slane %v1369, %v3240
    %v3243 = vunpack.c.l.s4 1966171168
    %v3244 = vunpack.c.0.s8 %v3243
    %v3245 = vlaneseq
    %v3246 = vshrl.u32 %v3245, 7
    %v3247 = vsub.s32 %v3244, %v3246
    %v3248 = vrot.slane %v3234, %v3247
    %v3249 = vcombine.high %v3241, %v3241
    %v3251 = vunpack.c.l.s4 1966171168
    %v3252 = vunpack.c.0.s8 %v3251
    %v3253 = vlaneseq
    %v3254 = vshrl.u32 %v3253, 7
    %v3255 = vsub.s32 %v3252, %v3254
    %v3256 = vrot.slane %v3241, %v3255
    %v3258 = vunpack.c.l.s4 1966171168
    %v3259 = vunpack.c.0.s8 %v3258
    %v3260 = vlaneseq
    %v3261 = vshrl.u32 %v3260, 7
    %v3262 = vsub.s32 %v3259, %v3261
    %v3263 = vrot.slane %v3248, %v3262
    %v3265 = vunpack.c.l.s4 1966171168
    %v3266 = vunpack.c.0.s8 %v3265
    %v3267 = vlaneseq
    %v3268 = vshrl.u32 %v3267, 7
    %v3269 = vsub.s32 %v3266, %v3268
    %v3270 = vrot.slane %v3249, %v3269
    %v3271 = vcombine.high %v3256, %v3256
    %v3272 = vcombine.high %v3270, %v3270
    %3273 = vrot.lane.b32.xlu0 %v3256, 32
    %v3274 = vpop.permute.xlu0 %3273
    %3275 = vrot.lane.b32.xlu0 %v3270, 32
    %v3276 = vpop.permute.xlu0 %3275
    %3277 = vrot.lane.b32.xlu0 %v3271, 32
    %v3278 = vpop.permute.xlu0 %3277
    %3279 = vrot.lane.b32.xlu0 %v3272, 32
    %v3280 = vpop.permute.xlu0 %3279
    %3281 = vrot.lane.b32.xlu0 %v3263, 32
    %v3282 = vpop.permute.xlu0 %3281
    %v3288 = vmul.f32 %v1290, %v3274
    %v3289 = vmul.f32 %v1304, %v3276
    %v3290 = vmul.f32 %v1312, %v3278
    %v3291 = vmul.f32 %v1314, %v3280
    %v3292 = vmul.f32 %v1297, %v3282
    %v3293 = vmul.f32 %v1311, %v3274
    %v3294 = vmul.f32 %v1313, %v3276
    %v3295 = vmul.f32 %v1315, %v3278
    %v3296 = vmul.f32 %v1330, %v3280
    %v3297 = vmul.f32 %v1337, %v3282
    %3298 = vrot.lane.b32.xlu0 %v3256, 64
    %v3299 = vpop.permute.xlu0 %3298
    %3300 = vrot.lane.b32.xlu0 %v3270, 64
    %v3301 = vpop.permute.xlu0 %3300
    %3302 = vrot.lane.b32.xlu0 %v3271, 64
    %v3303 = vpop.permute.xlu0 %3302
    %3304 = vrot.lane.b32.xlu0 %v3272, 64
    %v3305 = vpop.permute.xlu0 %3304
    %3306 = vrot.lane.b32.xlu0 %v3263, 64
    %v3307 = vpop.permute.xlu0 %3306
    %v3313 = vmul.f32 %v1290, %v3299
    %v3314 = vmul.f32 %v1304, %v3301
    %v3315 = vmul.f32 %v1312, %v3303
    %v3316 = vmul.f32 %v1314, %v3305
    %v3317 = vmul.f32 %v1297, %v3307
    %v3318 = vmul.f32 %v1311, %v3299
    %v3319 = vmul.f32 %v1313, %v3301
    %v3320 = vmul.f32 %v1315, %v3303
    %v3321 = vmul.f32 %v1330, %v3305
    %v3322 = vmul.f32 %v1337, %v3307
    %v3328 = vcombine.low %v3288, %v3289
    %v3329 = vcombine.low %v3290, %v3291
    %v3331 = vunpack.c.l.s4 1966171168
    %v3332 = vunpack.c.0.s8 %v3331
    %v3333 = vlaneseq
    %v3334 = vshrl.u32 %v3333, 7
    %v3335 = vsub.s32 %v3332, %v3334
    %v3336 = vrot.slane %v3328, %v3335
    %v3338 = vunpack.c.l.s4 1966171168
    %v3339 = vunpack.c.0.s8 %v3338
    %v3340 = vlaneseq
    %v3341 = vshrl.u32 %v3340, 7
    %v3342 = vsub.s32 %v3339, %v3341
    %v3343 = vrot.slane %v3329, %v3342
    %v3345 = vunpack.c.l.s4 1966171168
    %v3346 = vunpack.c.0.s8 %v3345
    %v3347 = vlaneseq
    %v3348 = vshrl.u32 %v3347, 7
    %v3349 = vsub.s32 %v3346, %v3348
    %v3350 = vrot.slane %v3292, %v3349
    %v3351 = vcombine.low %v3336, %v3343
    %v3353 = vunpack.c.l.s4 1966171168
    %v3354 = vunpack.c.0.s8 %v3353
    %v3355 = vlaneseq
    %v3356 = vshrl.u32 %v3355, 7
    %v3357 = vsub.s32 %v3354, %v3356
    %v3358 = vrot.slane %v3351, %v3357
    %v3360 = vunpack.c.l.s4 1966171168
    %v3361 = vunpack.c.0.s8 %v3360
    %v3362 = vlaneseq
    %v3363 = vshrl.u32 %v3362, 7
    %v3364 = vsub.s32 %v3361, %v3363
    %v3365 = vrot.slane %v3350, %v3364
    %v3366 = vcombine.low %v3358, %v3365
    %3367 = vrot.lane.b32.xlu0 %v3366, 96
    %v3368 = vpop.permute.xlu0 %3367
    %v3369 = vsel %vm727, %v3368, 0
    %3371 = vmatprep.subr.mxu0 0.0
    %3372 = vmatpush1.xpose.msra.mxu0 0.0
    %3373 = vmatprep.subr.mxu0 0.0
    %3374 = vmatpush1.xpose.msra.mxu0 0.0
    %3375 = vmatprep.subr.mxu0 0.0
    %3376 = vmatpush1.xpose.msra.mxu0 0.0
    %3377 = vmatprep.subr.mxu0 0.0
    %3378 = vmatpush1.xpose.msra.mxu0 0.0
    %3379 = vmatprep.subr.mxu0 0.0
    %3380 = vmatpush1.xpose.msra.mxu0 0.0
    %3381 = vmatprep.subr.mxu0 0.0
    %3382 = vmatpush1.xpose.msra.mxu0 0.0
    %3383 = vmatprep.subr.mxu0 0.0
    %3384 = vmatpush1.xpose.msra.mxu0 0.0
    %3385 = vmatprep.subr.mxu0 0.0
    %3386 = vmatpush1.xpose.msra.mxu0 0.0
    %3387 = vmatprep.subr.mxu0 0.0
    %3388 = vmatpush1.xpose.msra.mxu0 0.0
    %3389 = vmatprep.subr.mxu0 0.0
    %3390 = vmatpush1.xpose.msra.mxu0 0.0
    %3391 = vmatprep.subr.mxu0 0.0
    %3392 = vmatpush1.xpose.msra.mxu0 0.0
    %3393 = vmatprep.subr.mxu0 0.0
    %3394 = vmatpush1.xpose.msra.mxu0 0.0
    %3395 = vmatprep.subr.mxu0 0.0
    %3396 = vmatpush1.xpose.msra.mxu0 0.0
    %3397 = vmatprep.subr.mxu0 0.0
    %3398 = vmatpush1.xpose.msra.mxu0 0.0
    %3399 = vmatprep.subr.mxu0 0.0
    %3400 = vmatpush1.xpose.msra.mxu0 0.0
    %3401 = vmatprep.subr.mxu0 0.0
    %3402 = vmatpush1.xpose.msra.mxu0 %v3369
    %3403 = vmatprep.subr.mxu0 0.0
    %3404 = vmatpush2.xpose.msra.mxu0 0.0
    %3405 = vmatprep.subr.mxu0 0.0
    %3406 = vmatpush2.xpose.msra.mxu0 0.0
    %3407 = vmatprep.subr.mxu0 0.0
    %3408 = vmatpush2.xpose.msra.mxu0 0.0
    %3409 = vmatprep.subr.mxu0 0.0
    %3410 = vmatpush2.xpose.msra.mxu0 0.0
    %3411 = vmatprep.subr.mxu0 0.0
    %3412 = vmatpush2.xpose.msra.mxu0 0.0
    %3413 = vmatprep.subr.mxu0 0.0
    %3414 = vmatpush2.xpose.msra.mxu0 0.0
    %3415 = vmatprep.subr.mxu0 0.0
    %3416 = vmatpush2.xpose.msra.mxu0 0.0
    %3417 = vmatprep.subr.mxu0 0.0
    %3418 = vmatpush2.xpose.msra.mxu0 0.0
    %3419 = vmatprep.subr.mxu0 0.0
    %3420 = vmatpush2.xpose.msra.mxu0 0.0
    %3421 = vmatprep.subr.mxu0 0.0
    %3422 = vmatpush2.xpose.msra.mxu0 0.0
    %3423 = vmatprep.subr.mxu0 0.0
    %3424 = vmatpush2.xpose.msra.mxu0 0.0
    %3425 = vmatprep.subr.mxu0 0.0
    %3426 = vmatpush2.xpose.msra.mxu0 0.0
    %3427 = vmatprep.subr.mxu0 0.0
    %3428 = vmatpush2.xpose.msra.mxu0 0.0
    %3429 = vmatprep.subr.mxu0 0.0
    %3430 = vmatpush2.xpose.msra.mxu0 0.0
    %3431 = vmatprep.subr.mxu0 0.0
    %3432 = vmatpush2.xpose.msra.mxu0 0.0
    %3433 = vmatprep.subr.mxu0 0.0
    %3434 = vmatpush2.xpose.msra.mxu0 0.0
    %3435 = vmatprep.mubr.f32.mxu0 0.0
    %3436 = vmatmul.mubr.f32.gmra.mxu0 %v1545
    %v3437 = vpop.f32.mrf.mxu0
    %v3438 = vadd.f32 0.0, %v3437
    %v3439 = vpop.f32.mrf.mxu0
    %3440 = vdwg.mxu0
    %v3446 = vcombine.low %v3293, %v3294
    %v3447 = vcombine.low %v3295, %v3296
    %v3449 = vunpack.c.l.s4 1966171168
    %v3450 = vunpack.c.0.s8 %v3449
    %v3451 = vlaneseq
    %v3452 = vshrl.u32 %v3451, 7
    %v3453 = vsub.s32 %v3450, %v3452
    %v3454 = vrot.slane %v3446, %v3453
    %v3456 = vunpack.c.l.s4 1966171168
    %v3457 = vunpack.c.0.s8 %v3456
    %v3458 = vlaneseq
    %v3459 = vshrl.u32 %v3458, 7
    %v3460 = vsub.s32 %v3457, %v3459
    %v3461 = vrot.slane %v3447, %v3460
    %v3463 = vunpack.c.l.s4 1966171168
    %v3464 = vunpack.c.0.s8 %v3463
    %v3465 = vlaneseq
    %v3466 = vshrl.u32 %v3465, 7
    %v3467 = vsub.s32 %v3464, %v3466
    %v3468 = vrot.slane %v3297, %v3467
    %v3469 = vcombine.low %v3454, %v3461
    %v3471 = vunpack.c.l.s4 1966171168
    %v3472 = vunpack.c.0.s8 %v3471
    %v3473 = vlaneseq
    %v3474 = vshrl.u32 %v3473, 7
    %v3475 = vsub.s32 %v3472, %v3474
    %v3476 = vrot.slane %v3469, %v3475
    %v3478 = vunpack.c.l.s4 1966171168
    %v3479 = vunpack.c.0.s8 %v3478
    %v3480 = vlaneseq
    %v3481 = vshrl.u32 %v3480, 7
    %v3482 = vsub.s32 %v3479, %v3481
    %v3483 = vrot.slane %v3468, %v3482
    %v3484 = vcombine.low %v3476, %v3483
    %3485 = vrot.lane.b32.xlu0 %v3484, 96
    %v3486 = vpop.permute.xlu0 %3485
    %v3487 = vsel %vm727, %v3486, 0
    %3489 = vmatprep.subr.mxu0 0.0
    %3490 = vmatpush1.xpose.msra.mxu0 0.0
    %3491 = vmatprep.subr.mxu0 0.0
    %3492 = vmatpush1.xpose.msra.mxu0 0.0
    %3493 = vmatprep.subr.mxu0 0.0
    %3494 = vmatpush1.xpose.msra.mxu0 0.0
    %3495 = vmatprep.subr.mxu0 0.0
    %3496 = vmatpush1.xpose.msra.mxu0 0.0
    %3497 = vmatprep.subr.mxu0 0.0
    %3498 = vmatpush1.xpose.msra.mxu0 0.0
    %3499 = vmatprep.subr.mxu0 0.0
    %3500 = vmatpush1.xpose.msra.mxu0 0.0
    %3501 = vmatprep.subr.mxu0 0.0
    %3502 = vmatpush1.xpose.msra.mxu0 0.0
    %3503 = vmatprep.subr.mxu0 0.0
    %3504 = vmatpush1.xpose.msra.mxu0 0.0
    %3505 = vmatprep.subr.mxu0 0.0
    %3506 = vmatpush1.xpose.msra.mxu0 0.0
    %3507 = vmatprep.subr.mxu0 0.0
    %3508 = vmatpush1.xpose.msra.mxu0 0.0
    %3509 = vmatprep.subr.mxu0 0.0
    %3510 = vmatpush1.xpose.msra.mxu0 0.0
    %3511 = vmatprep.subr.mxu0 0.0
    %3512 = vmatpush1.xpose.msra.mxu0 0.0
    %3513 = vmatprep.subr.mxu0 0.0
    %3514 = vmatpush1.xpose.msra.mxu0 0.0
    %3515 = vmatprep.subr.mxu0 0.0
    %3516 = vmatpush1.xpose.msra.mxu0 0.0
    %3517 = vmatprep.subr.mxu0 0.0
    %3518 = vmatpush1.xpose.msra.mxu0 0.0
    %3519 = vmatprep.subr.mxu0 0.0
    %3520 = vmatpush1.xpose.msra.mxu0 %v3487
    %3521 = vmatprep.subr.mxu0 0.0
    %3522 = vmatpush2.xpose.msra.mxu0 0.0
    %3523 = vmatprep.subr.mxu0 0.0
    %3524 = vmatpush2.xpose.msra.mxu0 0.0
    %3525 = vmatprep.subr.mxu0 0.0
    %3526 = vmatpush2.xpose.msra.mxu0 0.0
    %3527 = vmatprep.subr.mxu0 0.0
    %3528 = vmatpush2.xpose.msra.mxu0 0.0
    %3529 = vmatprep.subr.mxu0 0.0
    %3530 = vmatpush2.xpose.msra.mxu0 0.0
    %3531 = vmatprep.subr.mxu0 0.0
    %3532 = vmatpush2.xpose.msra.mxu0 0.0
    %3533 = vmatprep.subr.mxu0 0.0
    %3534 = vmatpush2.xpose.msra.mxu0 0.0
    %3535 = vmatprep.subr.mxu0 0.0
    %3536 = vmatpush2.xpose.msra.mxu0 0.0
    %3537 = vmatprep.subr.mxu0 0.0
    %3538 = vmatpush2.xpose.msra.mxu0 0.0
    %3539 = vmatprep.subr.mxu0 0.0
    %3540 = vmatpush2.xpose.msra.mxu0 0.0
    %3541 = vmatprep.subr.mxu0 0.0
    %3542 = vmatpush2.xpose.msra.mxu0 0.0
    %3543 = vmatprep.subr.mxu0 0.0
    %3544 = vmatpush2.xpose.msra.mxu0 0.0
    %3545 = vmatprep.subr.mxu0 0.0
    %3546 = vmatpush2.xpose.msra.mxu0 0.0
    %3547 = vmatprep.subr.mxu0 0.0
    %3548 = vmatpush2.xpose.msra.mxu0 0.0
    %3549 = vmatprep.subr.mxu0 0.0
    %3550 = vmatpush2.xpose.msra.mxu0 0.0
    %3551 = vmatprep.subr.mxu0 0.0
    %3552 = vmatpush2.xpose.msra.mxu0 0.0
    %3553 = vmatprep.mubr.f32.mxu0 0.0
    %3554 = vmatmul.mubr.f32.gmra.mxu0 %v1704
    %v3555 = vpop.f32.mrf.mxu0
    %v3556 = vadd.f32 0.0, %v3555
    %v3557 = vpop.f32.mrf.mxu0
    %3558 = vdwg.mxu0
    %v3559 = vmul.f32 %v3438, 0.35355338
    %v3560 = vmul.f32 %v3556, 0.35355338
    %v3561 = vsel %vm1780, %v3559, -inf
    %3562 = vmax.xlane.f32.xlu0 %v3561
    %v3563 = vpop.xlane.xlu0 %3562
    %v3564 = vsel %vm1780, %v3560, -inf
    %3565 = vmax.xlane.f32.xlu0 %v3564
    %v3566 = vpop.xlane.xlu0 %3565
    %v3567 = vsub.f32 %v3559, %v3563
    %v3568 = vsub.f32 %v3560, %v3566
    %v3569 = vmul.f32 %v3567, 1.442695
    %v3570 = vpow.pop %v3569
    %v3571 = vmul.f32 %v3568, 1.442695
    %v3572 = vpow.pop %v3571
    %v3573 = vsel %vm1780, %v3570, 0.0
    %3574 = vadd.xlane.f32.xlu0 %v3573
    %v3575 = vpop.xlane.xlu0 %3574
    %v3576 = vsel %vm1780, %v3572, 0.0
    %3577 = vadd.xlane.f32.xlu0 %v3576
    %v3578 = vpop.xlane.xlu0 %3577
    %v3579 = vrcp.pop %v3575
    %v3580 = vrcp.pop %v3578
    %v3581 = vmul.f32 %v3570, %v3579
    %v3582 = vmul.f32 %v3572, %v3580
    %v3588 = vcombine.low %v3313, %v3314
    %v3589 = vcombine.low %v3315, %v3316
    %v3591 = vunpack.c.l.s4 1966171168
    %v3592 = vunpack.c.0.s8 %v3591
    %v3593 = vlaneseq
    %v3594 = vshrl.u32 %v3593, 7
    %v3595 = vsub.s32 %v3592, %v3594
    %v3596 = vrot.slane %v3588, %v3595
    %v3598 = vunpack.c.l.s4 1966171168
    %v3599 = vunpack.c.0.s8 %v3598
    %v3600 = vlaneseq
    %v3601 = vshrl.u32 %v3600, 7
    %v3602 = vsub.s32 %v3599, %v3601
    %v3603 = vrot.slane %v3589, %v3602
    %v3605 = vunpack.c.l.s4 1966171168
    %v3606 = vunpack.c.0.s8 %v3605
    %v3607 = vlaneseq
    %v3608 = vshrl.u32 %v3607, 7
    %v3609 = vsub.s32 %v3606, %v3608
    %v3610 = vrot.slane %v3317, %v3609
    %v3611 = vcombine.low %v3596, %v3603
    %v3613 = vunpack.c.l.s4 1966171168
    %v3614 = vunpack.c.0.s8 %v3613
    %v3615 = vlaneseq
    %v3616 = vshrl.u32 %v3615, 7
    %v3617 = vsub.s32 %v3614, %v3616
    %v3618 = vrot.slane %v3611, %v3617
    %v3620 = vunpack.c.l.s4 1966171168
    %v3621 = vunpack.c.0.s8 %v3620
    %v3622 = vlaneseq
    %v3623 = vshrl.u32 %v3622, 7
    %v3624 = vsub.s32 %v3621, %v3623
    %v3625 = vrot.slane %v3610, %v3624
    %v3626 = vcombine.low %v3618, %v3625
    %3627 = vrot.lane.b32.xlu0 %v3626, 64
    %v3628 = vpop.permute.xlu0 %3627
    %v3630 = vsel %vm2199, %v3581, 0
    %v3632 = vsel %vm2203, %v3628, 0
    %3634 = vmatprep.subr.mxu0 0.0
    %3635 = vmatpush1.msra.mxu0 0.0
    %3636 = vmatprep.subr.mxu0 0.0
    %3637 = vmatpush1.msra.mxu0 0.0
    %3638 = vmatprep.subr.mxu0 0.0
    %3639 = vmatpush1.msra.mxu0 0.0
    %3640 = vmatprep.subr.mxu0 0.0
    %3641 = vmatpush1.msra.mxu0 0.0
    %3642 = vmatprep.subr.mxu0 0.0
    %3643 = vmatpush1.msra.mxu0 0.0
    %3644 = vmatprep.subr.mxu0 0.0
    %3645 = vmatpush1.msra.mxu0 0.0
    %3646 = vmatprep.subr.mxu0 0.0
    %3647 = vmatpush1.msra.mxu0 0.0
    %3648 = vmatprep.subr.mxu0 0.0
    %3649 = vmatpush1.msra.mxu0 0.0
    %3650 = vmatprep.subr.mxu0 0.0
    %3651 = vmatpush1.msra.mxu0 0.0
    %3652 = vmatprep.subr.mxu0 0.0
    %3653 = vmatpush1.msra.mxu0 0.0
    %3654 = vmatprep.subr.mxu0 0.0
    %3655 = vmatpush1.msra.mxu0 0.0
    %3656 = vmatprep.subr.mxu0 0.0
    %3657 = vmatpush1.msra.mxu0 0.0
    %3658 = vmatprep.subr.mxu0 0.0
    %3659 = vmatpush1.msra.mxu0 0.0
    %3660 = vmatprep.subr.mxu0 0.0
    %3661 = vmatpush1.msra.mxu0 0.0
    %3662 = vmatprep.subr.mxu0 0.0
    %3663 = vmatpush1.msra.mxu0 0.0
    %3664 = vmatprep.subr.mxu0 0.0
    %3665 = vmatpush1.msra.mxu0 %v3632
    %3666 = vmatprep.subr.mxu0 0.0
    %3667 = vmatpush2.msra.mxu0 0.0
    %3668 = vmatprep.subr.mxu0 0.0
    %3669 = vmatpush2.msra.mxu0 0.0
    %3670 = vmatprep.subr.mxu0 0.0
    %3671 = vmatpush2.msra.mxu0 0.0
    %3672 = vmatprep.subr.mxu0 0.0
    %3673 = vmatpush2.msra.mxu0 0.0
    %3674 = vmatprep.subr.mxu0 0.0
    %3675 = vmatpush2.msra.mxu0 0.0
    %3676 = vmatprep.subr.mxu0 0.0
    %3677 = vmatpush2.msra.mxu0 0.0
    %3678 = vmatprep.subr.mxu0 0.0
    %3679 = vmatpush2.msra.mxu0 0.0
    %3680 = vmatprep.subr.mxu0 0.0
    %3681 = vmatpush2.msra.mxu0 0.0
    %3682 = vmatprep.subr.mxu0 0.0
    %3683 = vmatpush2.msra.mxu0 0.0
    %3684 = vmatprep.subr.mxu0 0.0
    %3685 = vmatpush2.msra.mxu0 0.0
    %3686 = vmatprep.subr.mxu0 0.0
    %3687 = vmatpush2.msra.mxu0 0.0
    %3688 = vmatprep.subr.mxu0 0.0
    %3689 = vmatpush2.msra.mxu0 0.0
    %3690 = vmatprep.subr.mxu0 0.0
    %3691 = vmatpush2.msra.mxu0 0.0
    %3692 = vmatprep.subr.mxu0 0.0
    %3693 = vmatpush2.msra.mxu0 0.0
    %3694 = vmatprep.subr.mxu0 0.0
    %3695 = vmatpush2.msra.mxu0 0.0
    %3696 = vmatprep.subr.mxu0 0.0
    %3697 = vmatpush2.msra.mxu0 0.0
    %3698 = vmatprep.mubr.f32.mxu0 0.0
    %3699 = vmatmul.mubr.f32.gmra.mxu0 %v3630
    %v3700 = vpop.f32.mrf.mxu0
    %v3701 = vadd.f32 0.0, %v3700
    %v3702 = vpop.f32.mrf.mxu0
    %3703 = vdwg.mxu0
    %v3709 = vcombine.low %v3318, %v3319
    %v3710 = vcombine.low %v3320, %v3321
    %v3712 = vunpack.c.l.s4 1966171168
    %v3713 = vunpack.c.0.s8 %v3712
    %v3714 = vlaneseq
    %v3715 = vshrl.u32 %v3714, 7
    %v3716 = vsub.s32 %v3713, %v3715
    %v3717 = vrot.slane %v3709, %v3716
    %v3719 = vunpack.c.l.s4 1966171168
    %v3720 = vunpack.c.0.s8 %v3719
    %v3721 = vlaneseq
    %v3722 = vshrl.u32 %v3721, 7
    %v3723 = vsub.s32 %v3720, %v3722
    %v3724 = vrot.slane %v3710, %v3723
    %v3726 = vunpack.c.l.s4 1966171168
    %v3727 = vunpack.c.0.s8 %v3726
    %v3728 = vlaneseq
    %v3729 = vshrl.u32 %v3728, 7
    %v3730 = vsub.s32 %v3727, %v3729
    %v3731 = vrot.slane %v3322, %v3730
    %v3732 = vcombine.low %v3717, %v3724
    %v3734 = vunpack.c.l.s4 1966171168
    %v3735 = vunpack.c.0.s8 %v3734
    %v3736 = vlaneseq
    %v3737 = vshrl.u32 %v3736, 7
    %v3738 = vsub.s32 %v3735, %v3737
    %v3739 = vrot.slane %v3732, %v3738
    %v3741 = vunpack.c.l.s4 1966171168
    %v3742 = vunpack.c.0.s8 %v3741
    %v3743 = vlaneseq
    %v3744 = vshrl.u32 %v3743, 7
    %v3745 = vsub.s32 %v3742, %v3744
    %v3746 = vrot.slane %v3731, %v3745
    %v3747 = vcombine.low %v3739, %v3746
    %3748 = vrot.lane.b32.xlu0 %v3747, 64
    %v3749 = vpop.permute.xlu0 %3748
    %v3751 = vsel %vm2199, %v3582, 0
    %v3753 = vsel %vm2203, %v3749, 0
    %3755 = vmatprep.subr.mxu0 0.0
    %3756 = vmatpush1.msra.mxu0 0.0
    %3757 = vmatprep.subr.mxu0 0.0
    %3758 = vmatpush1.msra.mxu0 0.0
    %3759 = vmatprep.subr.mxu0 0.0
    %3760 = vmatpush1.msra.mxu0 0.0
    %3761 = vmatprep.subr.mxu0 0.0
    %3762 = vmatpush1.msra.mxu0 0.0
    %3763 = vmatprep.subr.mxu0 0.0
    %3764 = vmatpush1.msra.mxu0 0.0
    %3765 = vmatprep.subr.mxu0 0.0
    %3766 = vmatpush1.msra.mxu0 0.0
    %3767 = vmatprep.subr.mxu0 0.0
    %3768 = vmatpush1.msra.mxu0 0.0
    %3769 = vmatprep.subr.mxu0 0.0
    %3770 = vmatpush1.msra.mxu0 0.0
    %3771 = vmatprep.subr.mxu0 0.0
    %3772 = vmatpush1.msra.mxu0 0.0
    %3773 = vmatprep.subr.mxu0 0.0
    %3774 = vmatpush1.msra.mxu0 0.0
    %3775 = vmatprep.subr.mxu0 0.0
    %3776 = vmatpush1.msra.mxu0 0.0
    %3777 = vmatprep.subr.mxu0 0.0
    %3778 = vmatpush1.msra.mxu0 0.0
    %3779 = vmatprep.subr.mxu0 0.0
    %3780 = vmatpush1.msra.mxu0 0.0
    %3781 = vmatprep.subr.mxu0 0.0
    %3782 = vmatpush1.msra.mxu0 0.0
    %3783 = vmatprep.subr.mxu0 0.0
    %3784 = vmatpush1.msra.mxu0 0.0
    %3785 = vmatprep.subr.mxu0 0.0
    %3786 = vmatpush1.msra.mxu0 %v3753
    %3787 = vmatprep.subr.mxu0 0.0
    %3788 = vmatpush2.msra.mxu0 0.0
    %3789 = vmatprep.subr.mxu0 0.0
    %3790 = vmatpush2.msra.mxu0 0.0
    %3791 = vmatprep.subr.mxu0 0.0
    %3792 = vmatpush2.msra.mxu0 0.0
    %3793 = vmatprep.subr.mxu0 0.0
    %3794 = vmatpush2.msra.mxu0 0.0
    %3795 = vmatprep.subr.mxu0 0.0
    %3796 = vmatpush2.msra.mxu0 0.0
    %3797 = vmatprep.subr.mxu0 0.0
    %3798 = vmatpush2.msra.mxu0 0.0
    %3799 = vmatprep.subr.mxu0 0.0
    %3800 = vmatpush2.msra.mxu0 0.0
    %3801 = vmatprep.subr.mxu0 0.0
    %3802 = vmatpush2.msra.mxu0 0.0
    %3803 = vmatprep.subr.mxu0 0.0
    %3804 = vmatpush2.msra.mxu0 0.0
    %3805 = vmatprep.subr.mxu0 0.0
    %3806 = vmatpush2.msra.mxu0 0.0
    %3807 = vmatprep.subr.mxu0 0.0
    %3808 = vmatpush2.msra.mxu0 0.0
    %3809 = vmatprep.subr.mxu0 0.0
    %3810 = vmatpush2.msra.mxu0 0.0
    %3811 = vmatprep.subr.mxu0 0.0
    %3812 = vmatpush2.msra.mxu0 0.0
    %3813 = vmatprep.subr.mxu0 0.0
    %3814 = vmatpush2.msra.mxu0 0.0
    %3815 = vmatprep.subr.mxu0 0.0
    %3816 = vmatpush2.msra.mxu0 0.0
    %3817 = vmatprep.subr.mxu0 0.0
    %3818 = vmatpush2.msra.mxu0 0.0
    %3819 = vmatprep.mubr.f32.mxu0 0.0
    %3820 = vmatmul.mubr.f32.gmra.mxu0 %v3751
    %v3821 = vpop.f32.mrf.mxu0
    %v3822 = vadd.f32 0.0, %v3821
    %v3823 = vpop.f32.mrf.mxu0
    %3824 = vdwg.mxu0
    %v3825 = vadd.f32 %v3231, %v3701
    %v3826 = vadd.f32 %v3232, %v3822
    %v3829 = vcombine.high %v3825, %v3825
    %v3831 = vunpack.c.l.s4 1966171168
    %v3832 = vunpack.c.0.s8 %v3831
    %v3833 = vlaneseq
    %v3834 = vshrl.u32 %v3833, 7
    %v3835 = vsub.s32 %v3832, %v3834
    %v3836 = vrot.slane %v3825, %v3835
    %v3838 = vunpack.c.l.s4 1966171168
    %v3839 = vunpack.c.0.s8 %v3838
    %v3840 = vlaneseq
    %v3841 = vshrl.u32 %v3840, 7
    %v3842 = vsub.s32 %v3839, %v3841
    %v3843 = vrot.slane %v3829, %v3842
    %v3844 = vcombine.high %v3836, %v3836
    %v3846 = vunpack.c.l.s4 1966171168
    %v3847 = vunpack.c.0.s8 %v3846
    %v3848 = vlaneseq
    %v3849 = vshrl.u32 %v3848, 7
    %v3850 = vsub.s32 %v3847, %v3849
    %v3851 = vrot.slane %v3836, %v3850
    %v3853 = vunpack.c.l.s4 1966171168
    %v3854 = vunpack.c.0.s8 %v3853
    %v3855 = vlaneseq
    %v3856 = vshrl.u32 %v3855, 7
    %v3857 = vsub.s32 %v3854, %v3856
    %v3858 = vrot.slane %v3843, %v3857
    %v3860 = vunpack.c.l.s4 1966171168
    %v3861 = vunpack.c.0.s8 %v3860
    %v3862 = vlaneseq
    %v3863 = vshrl.u32 %v3862, 7
    %v3864 = vsub.s32 %v3861, %v3863
    %v3865 = vrot.slane %v3844, %v3864
    %v3866 = vcombine.high %v3851, %v3851
    %v3867 = vcombine.high %v3865, %v3865
    %v3868 = vcombine.high %v3826, %v3826
    %v3870 = vunpack.c.l.s4 1966171168
    %v3871 = vunpack.c.0.s8 %v3870
    %v3872 = vlaneseq
    %v3873 = vshrl.u32 %v3872, 7
    %v3874 = vsub.s32 %v3871, %v3873
    %v3875 = vrot.slane %v3826, %v3874
    %v3877 = vunpack.c.l.s4 1966171168
    %v3878 = vunpack.c.0.s8 %v3877
    %v3879 = vlaneseq
    %v3880 = vshrl.u32 %v3879, 7
    %v3881 = vsub.s32 %v3878, %v3880
    %v3882 = vrot.slane %v3868, %v3881
    %v3883 = vcombine.high %v3875, %v3875
    %v3885 = vunpack.c.l.s4 1966171168
    %v3886 = vunpack.c.0.s8 %v3885
    %v3887 = vlaneseq
    %v3888 = vshrl.u32 %v3887, 7
    %v3889 = vsub.s32 %v3886, %v3888
    %v3890 = vrot.slane %v3875, %v3889
    %v3892 = vunpack.c.l.s4 1966171168
    %v3893 = vunpack.c.0.s8 %v3892
    %v3894 = vlaneseq
    %v3895 = vshrl.u32 %v3894, 7
    %v3896 = vsub.s32 %v3893, %v3895
    %v3897 = vrot.slane %v3882, %v3896
    %v3899 = vunpack.c.l.s4 1966171168
    %v3900 = vunpack.c.0.s8 %v3899
    %v3901 = vlaneseq
    %v3902 = vshrl.u32 %v3901, 7
    %v3903 = vsub.s32 %v3900, %v3902
    %v3904 = vrot.slane %v3883, %v3903
    %v3905 = vcombine.high %v3890, %v3890
    %v3906 = vcombine.high %v3904, %v3904
    %v3907 = vld [vmem:[%s8] sm:$0xff]
    %v3908 = vld [vmem:[%s8 + $0x8] sm:$0xff]
    %v3909 = vld [vmem:[%s8 + $0x10] sm:$0xff]
    %v3910 = vld [vmem:[%s8 + $0x18] sm:$0xff]
    %v3911 = vcombine.low %v3851, %v3865
    %v3912 = vcombine.low %v3866, %v3867
    %v3913 = vcombine.low %v3858, %v3890
    %v3914 = vcombine.low %v3904, %v3905
    %v3916 = vunpack.c.l.s4 1966171168
    %v3917 = vunpack.c.0.s8 %v3916
    %v3918 = vlaneseq
    %v3919 = vshrl.u32 %v3918, 7
    %v3920 = vsub.s32 %v3917, %v3919
    %v3921 = vrot.slane %v3911, %v3920
    %v3923 = vunpack.c.l.s4 1966171168
    %v3924 = vunpack.c.0.s8 %v3923
    %v3925 = vlaneseq
    %v3926 = vshrl.u32 %v3925, 7
    %v3927 = vsub.s32 %v3924, %v3926
    %v3928 = vrot.slane %v3912, %v3927
    %v3930 = vunpack.c.l.s4 1966171168
    %v3931 = vunpack.c.0.s8 %v3930
    %v3932 = vlaneseq
    %v3933 = vshrl.u32 %v3932, 7
    %v3934 = vsub.s32 %v3931, %v3933
    %v3935 = vrot.slane %v3913, %v3934
    %v3937 = vunpack.c.l.s4 1966171168
    %v3938 = vunpack.c.0.s8 %v3937
    %v3939 = vlaneseq
    %v3940 = vshrl.u32 %v3939, 7
    %v3941 = vsub.s32 %v3938, %v3940
    %v3942 = vrot.slane %v3914, %v3941
    %v3943 = vcombine.low %v3921, %v3928
    %v3944 = vcombine.low %v3935, %v3942
    %v3946 = vunpack.c.l.s4 1966171168
    %v3947 = vunpack.c.0.s8 %v3946
    %v3948 = vlaneseq
    %v3949 = vshrl.u32 %v3948, 7
    %v3950 = vsub.s32 %v3947, %v3949
    %v3951 = vrot.slane %v3943, %v3950
    %v3953 = vunpack.c.l.s4 1966171168
    %v3954 = vunpack.c.0.s8 %v3953
    %v3955 = vlaneseq
    %v3956 = vshrl.u32 %v3955, 7
    %v3957 = vsub.s32 %v3954, %v3956
    %v3958 = vrot.slane %v3944, %v3957
    %v3959 = vcombine.low %v3951, %v3958
    %v3960 = vcombine.low %v3906, %v3897
    %v3962 = vunpack.c.l.s4 1966171168
    %v3963 = vunpack.c.0.s8 %v3962
    %v3964 = vlaneseq
    %v3965 = vshrl.u32 %v3964, 7
    %v3966 = vsub.s32 %v3963, %v3965
    %v3967 = vrot.slane %v3960, %v3966
    %v3969 = vunpack.c.l.s4 1966171168
    %v3970 = vunpack.c.0.s8 %v3969
    %v3971 = vlaneseq
    %v3972 = vshrl.u32 %v3971, 7
    %v3973 = vsub.s32 %v3970, %v3972
    %v3974 = vrot.slane %v3967, %v3973
    %v3975 = vsel %vm727, %v3959, 0
    %v3977 = vsel %vm727, %v3974, 0
    %3979 = vmatprep.subr.mxu0 0.0
    %3980 = vmatpush1.msra.mxu0 0.0
    %3981 = vmatprep.subr.mxu0 0.0
    %3982 = vmatpush1.msra.mxu0 0.0
    %3983 = vmatprep.subr.mxu0 0.0
    %3984 = vmatpush1.msra.mxu0 0.0
    %3985 = vmatprep.subr.mxu0 0.0
    %3986 = vmatpush1.msra.mxu0 0.0
    %3987 = vmatprep.subr.mxu0 0.0
    %3988 = vmatpush1.msra.mxu0 0.0
    %3989 = vmatprep.subr.mxu0 0.0
    %3990 = vmatpush1.msra.mxu0 0.0
    %3991 = vmatprep.subr.mxu0 0.0
    %3992 = vmatpush1.msra.mxu0 0.0
    %3993 = vmatprep.subr.mxu0 0.0
    %3994 = vmatpush1.msra.mxu0 0.0
    %3995 = vmatprep.subr.mxu0 0.0
    %3996 = vmatpush1.msra.mxu0 0.0
    %3997 = vmatprep.subr.mxu0 0.0
    %3998 = vmatpush1.msra.mxu0 0.0
    %3999 = vmatprep.subr.mxu0 0.0
    %4000 = vmatpush1.msra.mxu0 0.0
    %4001 = vmatprep.subr.mxu0 0.0
    %4002 = vmatpush1.msra.mxu0 0.0
    %4003 = vmatprep.subr.mxu0 0.0
    %4004 = vmatpush1.msra.mxu0 %v3910
    %4005 = vmatprep.subr.mxu0 0.0
    %4006 = vmatpush1.msra.mxu0 %v3909
    %4007 = vmatprep.subr.mxu0 0.0
    %4008 = vmatpush1.msra.mxu0 %v3908
    %4009 = vmatprep.subr.mxu0 0.0
    %4010 = vmatpush1.msra.mxu0 %v3907
    %4011 = vmatprep.subr.mxu0 0.0
    %4012 = vmatpush2.msra.mxu0 0.0
    %4013 = vmatprep.subr.mxu0 0.0
    %4014 = vmatpush2.msra.mxu0 0.0
    %4015 = vmatprep.subr.mxu0 0.0
    %4016 = vmatpush2.msra.mxu0 0.0
    %4017 = vmatprep.subr.mxu0 0.0
    %4018 = vmatpush2.msra.mxu0 0.0
    %4019 = vmatprep.subr.mxu0 0.0
    %4020 = vmatpush2.msra.mxu0 0.0
    %4021 = vmatprep.subr.mxu0 0.0
    %4022 = vmatpush2.msra.mxu0 0.0
    %4023 = vmatprep.subr.mxu0 0.0
    %4024 = vmatpush2.msra.mxu0 0.0
    %4025 = vmatprep.subr.mxu0 0.0
    %4026 = vmatpush2.msra.mxu0 0.0
    %4027 = vmatprep.subr.mxu0 0.0
    %4028 = vmatpush2.msra.mxu0 0.0
    %4029 = vmatprep.subr.mxu0 0.0
    %4030 = vmatpush2.msra.mxu0 0.0
    %4031 = vmatprep.subr.mxu0 0.0
    %4032 = vmatpush2.msra.mxu0 0.0
    %4033 = vmatprep.subr.mxu0 0.0
    %4034 = vmatpush2.msra.mxu0 0.0
    %4035 = vmatprep.subr.mxu0 0.0
    %4036 = vmatpush2.msra.mxu0 0.0
    %4037 = vmatprep.subr.mxu0 0.0
    %4038 = vmatpush2.msra.mxu0 0.0
    %4039 = vmatprep.subr.mxu0 0.0
    %4040 = vmatpush2.msra.mxu0 0.0
    %4041 = vmatprep.subr.mxu0 0.0
    %4042 = vmatpush2.msra.mxu0 0.0
    %4043 = vmatprep.mubr.f32.mxu0 0.0
    %4044 = vmatmul.mubr.f32.gmra.mxu0 %v3975
    %v4045 = vpop.f32.mrf.mxu0
    %v4046 = vadd.f32 0.0, %v4045
    %v4047 = vpop.f32.mrf.mxu0
    %4048 = vmatprep.mubr.f32.mxu0 0.0
    %4049 = vmatmul.mubr.f32.gmra.mxu0 %v3977
    %v4050 = vpop.f32.mrf.mxu0
    %v4051 = vadd.f32 0.0, %v4050
    %v4052 = vpop.f32.mrf.mxu0
    %4053 = vdwg.mxu0
    %v4056 = vcombine.high %v4046, %v4046
    %v4058 = vunpack.c.l.s4 1966171168
    %v4059 = vunpack.c.0.s8 %v4058
    %v4060 = vlaneseq
    %v4061 = vshrl.u32 %v4060, 7
    %v4062 = vsub.s32 %v4059, %v4061
    %v4063 = vrot.slane %v4046, %v4062
    %v4065 = vunpack.c.l.s4 1966171168
    %v4066 = vunpack.c.0.s8 %v4065
    %v4067 = vlaneseq
    %v4068 = vshrl.u32 %v4067, 7
    %v4069 = vsub.s32 %v4066, %v4068
    %v4070 = vrot.slane %v4056, %v4069
    %v4071 = vcombine.high %v4063, %v4063
    %v4072 = vcombine.high %v4070, %v4070
    %v4074 = vunpack.c.l.s4 1966171168
    %v4075 = vunpack.c.0.s8 %v4074
    %v4076 = vlaneseq
    %v4077 = vshrl.u32 %v4076, 7
    %v4078 = vsub.s32 %v4075, %v4077
    %v4079 = vrot.slane %v4063, %v4078
    %v4081 = vunpack.c.l.s4 1966171168
    %v4082 = vunpack.c.0.s8 %v4081
    %v4083 = vlaneseq
    %v4084 = vshrl.u32 %v4083, 7
    %v4085 = vsub.s32 %v4082, %v4084
    %v4086 = vrot.slane %v4070, %v4085
    %v4088 = vunpack.c.l.s4 1966171168
    %v4089 = vunpack.c.0.s8 %v4088
    %v4090 = vlaneseq
    %v4091 = vshrl.u32 %v4090, 7
    %v4092 = vsub.s32 %v4089, %v4091
    %v4093 = vrot.slane %v4071, %v4092
    %v4095 = vunpack.c.l.s4 1966171168
    %v4096 = vunpack.c.0.s8 %v4095
    %v4097 = vlaneseq
    %v4098 = vshrl.u32 %v4097, 7
    %v4099 = vsub.s32 %v4096, %v4098
    %v4100 = vrot.slane %v4072, %v4099
    %v4101 = vcombine.high %v4079, %v4079
    %v4102 = vcombine.high %v4086, %v4086
    %v4103 = vcombine.high %v4093, %v4093
    %v4104 = vcombine.high %v4100, %v4100
    %v4106 = vunpack.c.l.s4 1966171168
    %v4107 = vunpack.c.0.s8 %v4106
    %v4108 = vlaneseq
    %v4109 = vshrl.u32 %v4108, 7
    %v4110 = vsub.s32 %v4107, %v4109
    %v4111 = vrot.slane %v4051, %v4110
    %v4112 = vcombine.high %v4111, %v4111
    %v4114 = vunpack.c.l.s4 1966171168
    %v4115 = vunpack.c.0.s8 %v4114
    %v4116 = vlaneseq
    %v4117 = vshrl.u32 %v4116, 7
    %v4118 = vsub.s32 %v4115, %v4117
    %v4119 = vrot.slane %v4111, %v4118
    %v4121 = vunpack.c.l.s4 1966171168
    %v4122 = vunpack.c.0.s8 %v4121
    %v4123 = vlaneseq
    %v4124 = vshrl.u32 %v4123, 7
    %v4125 = vsub.s32 %v4122, %v4124
    %v4126 = vrot.slane %v4112, %v4125
    %v4137 = vadd.f32 %v595, %v4079
    %v4138 = vadd.f32 %v609, %v4093
    %v4139 = vadd.f32 %v610, %v4101
    %v4140 = vadd.f32 %v611, %v4103
    %v4141 = vadd.f32 %v602, %v4086
    %v4142 = vadd.f32 %v634, %v4100
    %v4143 = vadd.f32 %v648, %v4102
    %v4144 = vadd.f32 %v649, %v4104
    %v4145 = vadd.f32 %v650, %v4119
    %v4146 = vadd.f32 %v641, %v4126
    %v4147 = vlaneseq
    %v4148 = vshrl.u32 %v4147, 7
    %v4149 = vsub.s32 3, %v4148
    %v4150 = vrot.slane %v42, %v4149
    %v4152 = vcombine.high %v4150, %v4150
    %v4154 = vunpack.c.l.s4 1966171168
    %v4155 = vunpack.c.0.s8 %v4154
    %v4156 = vlaneseq
    %v4157 = vshrl.u32 %v4156, 7
    %v4158 = vsub.s32 %v4155, %v4157
    %v4159 = vrot.slane %v4150, %v4158
    %v4161 = vunpack.c.l.s4 1966171168
    %v4162 = vunpack.c.0.s8 %v4161
    %v4163 = vlaneseq
    %v4164 = vshrl.u32 %v4163, 7
    %v4165 = vsub.s32 %v4162, %v4164
    %v4166 = vrot.slane %v4152, %v4165
    %v4167 = vcombine.high %v4159, %v4159
    %v4168 = vcombine.high %v4166, %v4166
    %v4170 = vunpack.c.l.s4 1966171168
    %v4171 = vunpack.c.0.s8 %v4170
    %v4172 = vlaneseq
    %v4173 = vshrl.u32 %v4172, 7
    %v4174 = vsub.s32 %v4171, %v4173
    %v4175 = vrot.slane %v4159, %v4174
    %v4177 = vunpack.c.l.s4 1966171168
    %v4178 = vunpack.c.0.s8 %v4177
    %v4179 = vlaneseq
    %v4180 = vshrl.u32 %v4179, 7
    %v4181 = vsub.s32 %v4178, %v4180
    %v4182 = vrot.slane %v4166, %v4181
    %v4184 = vunpack.c.l.s4 1966171168
    %v4185 = vunpack.c.0.s8 %v4184
    %v4186 = vlaneseq
    %v4187 = vshrl.u32 %v4186, 7
    %v4188 = vsub.s32 %v4185, %v4187
    %v4189 = vrot.slane %v4167, %v4188
    %v4191 = vunpack.c.l.s4 1966171168
    %v4192 = vunpack.c.0.s8 %v4191
    %v4193 = vlaneseq
    %v4194 = vshrl.u32 %v4193, 7
    %v4195 = vsub.s32 %v4192, %v4194
    %v4196 = vrot.slane %v4168, %v4195
    %v4197 = vcombine.high %v4175, %v4175
    %v4198 = vcombine.high %v4182, %v4182
    %v4199 = vcombine.high %v4189, %v4189
    %v4200 = vcombine.high %v4196, %v4196
    %v4209 = vadd.f32 %v4137, %v4175
    %v4210 = vadd.f32 %v4138, %v4189
    %v4211 = vadd.f32 %v4139, %v4197
    %v4212 = vadd.f32 %v4140, %v4199
    %v4213 = vadd.f32 %v4141, %v4182
    %v4214 = vadd.f32 %v4142, %v4196
    %v4215 = vadd.f32 %v4143, %v4198
    %v4216 = vadd.f32 %v4144, %v4200
    %v4217 = vadd.f32 %v4145, %v4175
    %v4218 = vadd.f32 %v4146, %v4189
    %v4229 = vcombine.low %v4209, %v4210
    %v4230 = vcombine.low %v4211, %v4212
    %v4231 = vcombine.low %v4213, %v4214
    %v4232 = vcombine.low %v4215, %v4216
    %v4234 = vunpack.c.l.s4 1966171168
    %v4235 = vunpack.c.0.s8 %v4234
    %v4236 = vlaneseq
    %v4237 = vshrl.u32 %v4236, 7
    %v4238 = vsub.s32 %v4235, %v4237
    %v4239 = vrot.slane %v4229, %v4238
    %v4241 = vunpack.c.l.s4 1966171168
    %v4242 = vunpack.c.0.s8 %v4241
    %v4243 = vlaneseq
    %v4244 = vshrl.u32 %v4243, 7
    %v4245 = vsub.s32 %v4242, %v4244
    %v4246 = vrot.slane %v4230, %v4245
    %v4248 = vunpack.c.l.s4 1966171168
    %v4249 = vunpack.c.0.s8 %v4248
    %v4250 = vlaneseq
    %v4251 = vshrl.u32 %v4250, 7
    %v4252 = vsub.s32 %v4249, %v4251
    %v4253 = vrot.slane %v4231, %v4252
    %v4255 = vunpack.c.l.s4 1966171168
    %v4256 = vunpack.c.0.s8 %v4255
    %v4257 = vlaneseq
    %v4258 = vshrl.u32 %v4257, 7
    %v4259 = vsub.s32 %v4256, %v4258
    %v4260 = vrot.slane %v4232, %v4259
    %v4261 = vcombine.low %v4239, %v4246
    %v4262 = vcombine.low %v4253, %v4260
    %v4264 = vunpack.c.l.s4 1966171168
    %v4265 = vunpack.c.0.s8 %v4264
    %v4266 = vlaneseq
    %v4267 = vshrl.u32 %v4266, 7
    %v4268 = vsub.s32 %v4265, %v4267
    %v4269 = vrot.slane %v4261, %v4268
    %v4271 = vunpack.c.l.s4 1966171168
    %v4272 = vunpack.c.0.s8 %v4271
    %v4273 = vlaneseq
    %v4274 = vshrl.u32 %v4273, 7
    %v4275 = vsub.s32 %v4272, %v4274
    %v4276 = vrot.slane %v4262, %v4275
    %v4277 = vcombine.low %v4269, %v4276
    %v4278 = vcombine.low %v4217, %v4218
    %v4280 = vunpack.c.l.s4 1966171168
    %v4281 = vunpack.c.0.s8 %v4280
    %v4282 = vlaneseq
    %v4283 = vshrl.u32 %v4282, 7
    %v4284 = vsub.s32 %v4281, %v4283
    %v4285 = vrot.slane %v4278, %v4284
    %v4287 = vunpack.c.l.s4 1966171168
    %v4288 = vunpack.c.0.s8 %v4287
    %v4289 = vlaneseq
    %v4290 = vshrl.u32 %v4289, 7
    %v4291 = vsub.s32 %v4288, %v4290
    %v4292 = vrot.slane %v4285, %v4291
    %v4295 = vsel %vm727, %v4277, 0.0
    %4296 = vadd.xlane.f32.xlu0 %v4295
    %v4297 = vpop.xlane.xlu0 %4296
    %v4298 = vsel %vm731, %v4292, 0.0
    %4299 = vadd.xlane.f32.xlu0 %v4298
    %v4300 = vpop.xlane.xlu0 %4299
    %v4301 = vmul.f32 %v4297, %v735
    %v4302 = vmul.f32 %v4300, %v735
    %v4305 = vlaneseq
    %v4306 = vshrl.u32 %v4305, 7
    %v4307 = vsub.s32 0, %v4306
    %v4308 = vrot.slane %v4301, %v4307
    %v4309 = vlaneseq
    %v4310 = vshrl.u32 %v4309, 7
    %v4311 = vsub.s32 1, %v4310
    %v4312 = vrot.slane %v4301, %v4311
    %v4313 = vlaneseq
    %v4314 = vshrl.u32 %v4313, 7
    %v4315 = vsub.s32 2, %v4314
    %v4316 = vrot.slane %v4301, %v4315
    %v4317 = vlaneseq
    %v4318 = vshrl.u32 %v4317, 7
    %v4319 = vsub.s32 3, %v4318
    %v4320 = vrot.slane %v4301, %v4319
    %v4321 = vlaneseq
    %v4322 = vshrl.u32 %v4321, 7
    %v4323 = vsub.s32 4, %v4322
    %v4324 = vrot.slane %v4301, %v4323
    %v4325 = vlaneseq
    %v4326 = vshrl.u32 %v4325, 7
    %v4327 = vsub.s32 5, %v4326
    %v4328 = vrot.slane %v4301, %v4327
    %v4329 = vlaneseq
    %v4330 = vshrl.u32 %v4329, 7
    %v4331 = vsub.s32 6, %v4330
    %v4332 = vrot.slane %v4301, %v4331
    %v4333 = vlaneseq
    %v4334 = vshrl.u32 %v4333, 7
    %v4335 = vsub.s32 7, %v4334
    %v4336 = vrot.slane %v4301, %v4335
    %v4337 = vlaneseq
    %v4338 = vshrl.u32 %v4337, 7
    %v4339 = vsub.s32 0, %v4338
    %v4340 = vrot.slane %v4302, %v4339
    %v4341 = vlaneseq
    %v4342 = vshrl.u32 %v4341, 7
    %v4343 = vsub.s32 1, %v4342
    %v4344 = vrot.slane %v4302, %v4343
    %v4355 = vsub.f32 %v4209, %v4308
    %v4356 = vsub.f32 %v4210, %v4312
    %v4357 = vsub.f32 %v4211, %v4316
    %v4358 = vsub.f32 %v4212, %v4320
    %v4359 = vsub.f32 %v4213, %v4324
    %v4360 = vsub.f32 %v4214, %v4328
    %v4361 = vsub.f32 %v4215, %v4332
    %v4362 = vsub.f32 %v4216, %v4336
    %v4363 = vsub.f32 %v4217, %v4340
    %v4364 = vsub.f32 %v4218, %v4344
    %v4365 = vmul.f32 %v4355, %v4355
    %v4366 = vmul.f32 %v4356, %v4356
    %v4367 = vmul.f32 %v4357, %v4357
    %v4368 = vmul.f32 %v4358, %v4358
    %v4369 = vmul.f32 %v4359, %v4359
    %v4370 = vmul.f32 %v4360, %v4360
    %v4371 = vmul.f32 %v4361, %v4361
    %v4372 = vmul.f32 %v4362, %v4362
    %v4373 = vmul.f32 %v4363, %v4363
    %v4374 = vmul.f32 %v4364, %v4364
    %v4385 = vcombine.low %v4365, %v4366
    %v4386 = vcombine.low %v4367, %v4368
    %v4387 = vcombine.low %v4369, %v4370
    %v4388 = vcombine.low %v4371, %v4372
    %v4390 = vunpack.c.l.s4 1966171168
    %v4391 = vunpack.c.0.s8 %v4390
    %v4392 = vlaneseq
    %v4393 = vshrl.u32 %v4392, 7
    %v4394 = vsub.s32 %v4391, %v4393
    %v4395 = vrot.slane %v4385, %v4394
    %v4397 = vunpack.c.l.s4 1966171168
    %v4398 = vunpack.c.0.s8 %v4397
    %v4399 = vlaneseq
    %v4400 = vshrl.u32 %v4399, 7
    %v4401 = vsub.s32 %v4398, %v4400
    %v4402 = vrot.slane %v4386, %v4401
    %v4404 = vunpack.c.l.s4 1966171168
    %v4405 = vunpack.c.0.s8 %v4404
    %v4406 = vlaneseq
    %v4407 = vshrl.u32 %v4406, 7
    %v4408 = vsub.s32 %v4405, %v4407
    %v4409 = vrot.slane %v4387, %v4408
    %v4411 = vunpack.c.l.s4 1966171168
    %v4412 = vunpack.c.0.s8 %v4411
    %v4413 = vlaneseq
    %v4414 = vshrl.u32 %v4413, 7
    %v4415 = vsub.s32 %v4412, %v4414
    %v4416 = vrot.slane %v4388, %v4415
    %v4417 = vcombine.low %v4395, %v4402
    %v4418 = vcombine.low %v4409, %v4416
    %v4420 = vunpack.c.l.s4 1966171168
    %v4421 = vunpack.c.0.s8 %v4420
    %v4422 = vlaneseq
    %v4423 = vshrl.u32 %v4422, 7
    %v4424 = vsub.s32 %v4421, %v4423
    %v4425 = vrot.slane %v4417, %v4424
    %v4427 = vunpack.c.l.s4 1966171168
    %v4428 = vunpack.c.0.s8 %v4427
    %v4429 = vlaneseq
    %v4430 = vshrl.u32 %v4429, 7
    %v4431 = vsub.s32 %v4428, %v4430
    %v4432 = vrot.slane %v4418, %v4431
    %v4433 = vcombine.low %v4425, %v4432
    %v4434 = vcombine.low %v4373, %v4374
    %v4436 = vunpack.c.l.s4 1966171168
    %v4437 = vunpack.c.0.s8 %v4436
    %v4438 = vlaneseq
    %v4439 = vshrl.u32 %v4438, 7
    %v4440 = vsub.s32 %v4437, %v4439
    %v4441 = vrot.slane %v4434, %v4440
    %v4443 = vunpack.c.l.s4 1966171168
    %v4444 = vunpack.c.0.s8 %v4443
    %v4445 = vlaneseq
    %v4446 = vshrl.u32 %v4445, 7
    %v4447 = vsub.s32 %v4444, %v4446
    %v4448 = vrot.slane %v4441, %v4447
    %v4451 = vsel %vm727, %v4433, 0.0
    %4452 = vadd.xlane.f32.xlu0 %v4451
    %v4453 = vpop.xlane.xlu0 %4452
    %v4454 = vsel %vm731, %v4448, 0.0
    %4455 = vadd.xlane.f32.xlu0 %v4454
    %v4456 = vpop.xlane.xlu0 %4455
    %v4457 = vmul.f32 %v4453, %v735
    %v4458 = vmul.f32 %v4456, %v735
    %v4459 = vadd.f32 %v4457, 1e-05
    %v4460 = vadd.f32 %v4458, 1e-05
    %v4461 = vrsqrt.pop %v4459
    %v4462 = vrsqrt.pop %v4460
    %v4465 = vlaneseq
    %v4466 = vshrl.u32 %v4465, 7
    %v4467 = vsub.s32 0, %v4466
    %v4468 = vrot.slane %v4461, %v4467
    %v4469 = vlaneseq
    %v4470 = vshrl.u32 %v4469, 7
    %v4471 = vsub.s32 1, %v4470
    %v4472 = vrot.slane %v4461, %v4471
    %v4473 = vlaneseq
    %v4474 = vshrl.u32 %v4473, 7
    %v4475 = vsub.s32 2, %v4474
    %v4476 = vrot.slane %v4461, %v4475
    %v4477 = vlaneseq
    %v4478 = vshrl.u32 %v4477, 7
    %v4479 = vsub.s32 3, %v4478
    %v4480 = vrot.slane %v4461, %v4479
    %v4481 = vlaneseq
    %v4482 = vshrl.u32 %v4481, 7
    %v4483 = vsub.s32 4, %v4482
    %v4484 = vrot.slane %v4461, %v4483
    %v4485 = vlaneseq
    %v4486 = vshrl.u32 %v4485, 7
    %v4487 = vsub.s32 5, %v4486
    %v4488 = vrot.slane %v4461, %v4487
    %v4489 = vlaneseq
    %v4490 = vshrl.u32 %v4489, 7
    %v4491 = vsub.s32 6, %v4490
    %v4492 = vrot.slane %v4461, %v4491
    %v4493 = vlaneseq
    %v4494 = vshrl.u32 %v4493, 7
    %v4495 = vsub.s32 7, %v4494
    %v4496 = vrot.slane %v4461, %v4495
    %v4497 = vlaneseq
    %v4498 = vshrl.u32 %v4497, 7
    %v4499 = vsub.s32 0, %v4498
    %v4500 = vrot.slane %v4462, %v4499
    %v4501 = vlaneseq
    %v4502 = vshrl.u32 %v4501, 7
    %v4503 = vsub.s32 1, %v4502
    %v4504 = vrot.slane %v4462, %v4503
    %v4515 = vmul.f32 %v4355, %v4468
    %v4516 = vmul.f32 %v4356, %v4472
    %v4517 = vmul.f32 %v4357, %v4476
    %v4518 = vmul.f32 %v4358, %v4480
    %v4519 = vmul.f32 %v4359, %v4484
    %v4520 = vmul.f32 %v4360, %v4488
    %v4521 = vmul.f32 %v4361, %v4492
    %v4522 = vmul.f32 %v4362, %v4496
    %v4523 = vmul.f32 %v4363, %v4500
    %v4524 = vmul.f32 %v4364, %v4504
    %v4525 = vlaneseq
    %v4526 = vshrl.u32 %v4525, 7
    %v4527 = vsub.s32 4, %v4526
    %v4528 = vrot.slane %v42, %v4527
    %v4530 = vcombine.high %v4528, %v4528
    %v4532 = vunpack.c.l.s4 1966171168
    %v4533 = vunpack.c.0.s8 %v4532
    %v4534 = vlaneseq
    %v4535 = vshrl.u32 %v4534, 7
    %v4536 = vsub.s32 %v4533, %v4535
    %v4537 = vrot.slane %v4528, %v4536
    %v4539 = vunpack.c.l.s4 1966171168
    %v4540 = vunpack.c.0.s8 %v4539
    %v4541 = vlaneseq
    %v4542 = vshrl.u32 %v4541, 7
    %v4543 = vsub.s32 %v4540, %v4542
    %v4544 = vrot.slane %v4530, %v4543
    %v4545 = vcombine.high %v4537, %v4537
    %v4546 = vcombine.high %v4544, %v4544
    %v4548 = vunpack.c.l.s4 1966171168
    %v4549 = vunpack.c.0.s8 %v4548
    %v4550 = vlaneseq
    %v4551 = vshrl.u32 %v4550, 7
    %v4552 = vsub.s32 %v4549, %v4551
    %v4553 = vrot.slane %v4537, %v4552
    %v4555 = vunpack.c.l.s4 1966171168
    %v4556 = vunpack.c.0.s8 %v4555
    %v4557 = vlaneseq
    %v4558 = vshrl.u32 %v4557, 7
    %v4559 = vsub.s32 %v4556, %v4558
    %v4560 = vrot.slane %v4544, %v4559
    %v4562 = vunpack.c.l.s4 1966171168
    %v4563 = vunpack.c.0.s8 %v4562
    %v4564 = vlaneseq
    %v4565 = vshrl.u32 %v4564, 7
    %v4566 = vsub.s32 %v4563, %v4565
    %v4567 = vrot.slane %v4545, %v4566
    %v4569 = vunpack.c.l.s4 1966171168
    %v4570 = vunpack.c.0.s8 %v4569
    %v4571 = vlaneseq
    %v4572 = vshrl.u32 %v4571, 7
    %v4573 = vsub.s32 %v4570, %v4572
    %v4574 = vrot.slane %v4546, %v4573
    %v4575 = vcombine.high %v4553, %v4553
    %v4576 = vcombine.high %v4560, %v4560
    %v4577 = vcombine.high %v4567, %v4567
    %v4578 = vcombine.high %v4574, %v4574
    %v4587 = vmul.f32 %v4515, %v4553
    %v4588 = vmul.f32 %v4516, %v4567
    %v4589 = vmul.f32 %v4517, %v4575
    %v4590 = vmul.f32 %v4518, %v4577
    %v4591 = vmul.f32 %v4519, %v4560
    %v4592 = vmul.f32 %v4520, %v4574
    %v4593 = vmul.f32 %v4521, %v4576
    %v4594 = vmul.f32 %v4522, %v4578
    %v4595 = vmul.f32 %v4523, %v4553
    %v4596 = vmul.f32 %v4524, %v4567
    %v4597 = vlaneseq
    %v4598 = vshrl.u32 %v4597, 7
    %v4599 = vsub.s32 5, %v4598
    %v4600 = vrot.slane %v42, %v4599
    %v4602 = vcombine.high %v4600, %v4600
    %v4604 = vunpack.c.l.s4 1966171168
    %v4605 = vunpack.c.0.s8 %v4604
    %v4606 = vlaneseq
    %v4607 = vshrl.u32 %v4606, 7
    %v4608 = vsub.s32 %v4605, %v4607
    %v4609 = vrot.slane %v4600, %v4608
    %v4611 = vunpack.c.l.s4 1966171168
    %v4612 = vunpack.c.0.s8 %v4611
    %v4613 = vlaneseq
    %v4614 = vshrl.u32 %v4613, 7
    %v4615 = vsub.s32 %v4612, %v4614
    %v4616 = vrot.slane %v4602, %v4615
    %v4617 = vcombine.high %v4609, %v4609
    %v4618 = vcombine.high %v4616, %v4616
    %v4620 = vunpack.c.l.s4 1966171168
    %v4621 = vunpack.c.0.s8 %v4620
    %v4622 = vlaneseq
    %v4623 = vshrl.u32 %v4622, 7
    %v4624 = vsub.s32 %v4621, %v4623
    %v4625 = vrot.slane %v4609, %v4624
    %v4627 = vunpack.c.l.s4 1966171168
    %v4628 = vunpack.c.0.s8 %v4627
    %v4629 = vlaneseq
    %v4630 = vshrl.u32 %v4629, 7
    %v4631 = vsub.s32 %v4628, %v4630
    %v4632 = vrot.slane %v4616, %v4631
    %v4634 = vunpack.c.l.s4 1966171168
    %v4635 = vunpack.c.0.s8 %v4634
    %v4636 = vlaneseq
    %v4637 = vshrl.u32 %v4636, 7
    %v4638 = vsub.s32 %v4635, %v4637
    %v4639 = vrot.slane %v4617, %v4638
    %v4641 = vunpack.c.l.s4 1966171168
    %v4642 = vunpack.c.0.s8 %v4641
    %v4643 = vlaneseq
    %v4644 = vshrl.u32 %v4643, 7
    %v4645 = vsub.s32 %v4642, %v4644
    %v4646 = vrot.slane %v4618, %v4645
    %v4647 = vcombine.high %v4625, %v4625
    %v4648 = vcombine.high %v4632, %v4632
    %v4649 = vcombine.high %v4639, %v4639
    %v4650 = vcombine.high %v4646, %v4646
    %v4659 = vadd.f32 %v4587, %v4625
    %v4660 = vadd.f32 %v4588, %v4639
    %v4661 = vadd.f32 %v4589, %v4647
    %v4662 = vadd.f32 %v4590, %v4649
    %v4663 = vadd.f32 %v4591, %v4632
    %v4664 = vadd.f32 %v4592, %v4646
    %v4665 = vadd.f32 %v4593, %v4648
    %v4666 = vadd.f32 %v4594, %v4650
    %v4667 = vadd.f32 %v4595, %v4625
    %v4668 = vadd.f32 %v4596, %v4639
    %v4669 = vld [vmem:[%s9] sm:$0xff]
    %v4670 = vld [vmem:[%s9 + $0x8] sm:$0xff]
    %v4671 = vld [vmem:[%s9 + $0x10] sm:$0xff]
    %v4672 = vld [vmem:[%s9 + $0x18] sm:$0xff]
    %v4673 = vlaneseq
    %v4674 = vshrl.u32 %v4673, 7
    %v4675 = vsub.s32 1, %v4674
    %v4676 = vrot.slane %v44, %v4675
    %v4687 = vcombine.low %v4659, %v4660
    %v4688 = vcombine.low %v4661, %v4662
    %v4689 = vcombine.low %v4663, %v4664
    %v4690 = vcombine.low %v4665, %v4666
    %v4692 = vunpack.c.l.s4 1966171168
    %v4693 = vunpack.c.0.s8 %v4692
    %v4694 = vlaneseq
    %v4695 = vshrl.u32 %v4694, 7
    %v4696 = vsub.s32 %v4693, %v4695
    %v4697 = vrot.slane %v4687, %v4696
    %v4699 = vunpack.c.l.s4 1966171168
    %v4700 = vunpack.c.0.s8 %v4699
    %v4701 = vlaneseq
    %v4702 = vshrl.u32 %v4701, 7
    %v4703 = vsub.s32 %v4700, %v4702
    %v4704 = vrot.slane %v4688, %v4703
    %v4706 = vunpack.c.l.s4 1966171168
    %v4707 = vunpack.c.0.s8 %v4706
    %v4708 = vlaneseq
    %v4709 = vshrl.u32 %v4708, 7
    %v4710 = vsub.s32 %v4707, %v4709
    %v4711 = vrot.slane %v4689, %v4710
    %v4713 = vunpack.c.l.s4 1966171168
    %v4714 = vunpack.c.0.s8 %v4713
    %v4715 = vlaneseq
    %v4716 = vshrl.u32 %v4715, 7
    %v4717 = vsub.s32 %v4714, %v4716
    %v4718 = vrot.slane %v4690, %v4717
    %v4719 = vcombine.low %v4697, %v4704
    %v4720 = vcombine.low %v4711, %v4718
    %v4722 = vunpack.c.l.s4 1966171168
    %v4723 = vunpack.c.0.s8 %v4722
    %v4724 = vlaneseq
    %v4725 = vshrl.u32 %v4724, 7
    %v4726 = vsub.s32 %v4723, %v4725
    %v4727 = vrot.slane %v4719, %v4726
    %v4729 = vunpack.c.l.s4 1966171168
    %v4730 = vunpack.c.0.s8 %v4729
    %v4731 = vlaneseq
    %v4732 = vshrl.u32 %v4731, 7
    %v4733 = vsub.s32 %v4730, %v4732
    %v4734 = vrot.slane %v4720, %v4733
    %v4735 = vcombine.low %v4727, %v4734
    %v4736 = vcombine.low %v4667, %v4668
    %v4738 = vunpack.c.l.s4 1966171168
    %v4739 = vunpack.c.0.s8 %v4738
    %v4740 = vlaneseq
    %v4741 = vshrl.u32 %v4740, 7
    %v4742 = vsub.s32 %v4739, %v4741
    %v4743 = vrot.slane %v4736, %v4742
    %v4745 = vunpack.c.l.s4 1966171168
    %v4746 = vunpack.c.0.s8 %v4745
    %v4747 = vlaneseq
    %v4748 = vshrl.u32 %v4747, 7
    %v4749 = vsub.s32 %v4746, %v4748
    %v4750 = vrot.slane %v4743, %v4749
    %v4751 = vsel %vm727, %v4735, 0
    %v4753 = vsel %vm727, %v4750, 0
    %4755 = vmatprep.subr.mxu0 0.0
    %4756 = vmatpush1.msra.mxu0 0.0
    %4757 = vmatprep.subr.mxu0 0.0
    %4758 = vmatpush1.msra.mxu0 0.0
    %4759 = vmatprep.subr.mxu0 0.0
    %4760 = vmatpush1.msra.mxu0 0.0
    %4761 = vmatprep.subr.mxu0 0.0
    %4762 = vmatpush1.msra.mxu0 0.0
    %4763 = vmatprep.subr.mxu0 0.0
    %4764 = vmatpush1.msra.mxu0 0.0
    %4765 = vmatprep.subr.mxu0 0.0
    %4766 = vmatpush1.msra.mxu0 0.0
    %4767 = vmatprep.subr.mxu0 0.0
    %4768 = vmatpush1.msra.mxu0 0.0
    %4769 = vmatprep.subr.mxu0 0.0
    %4770 = vmatpush1.msra.mxu0 0.0
    %4771 = vmatprep.subr.mxu0 0.0
    %4772 = vmatpush1.msra.mxu0 0.0
    %4773 = vmatprep.subr.mxu0 0.0
    %4774 = vmatpush1.msra.mxu0 0.0
    %4775 = vmatprep.subr.mxu0 0.0
    %4776 = vmatpush1.msra.mxu0 0.0
    %4777 = vmatprep.subr.mxu0 0.0
    %4778 = vmatpush1.msra.mxu0 0.0
    %4779 = vmatprep.subr.mxu0 0.0
    %4780 = vmatpush1.msra.mxu0 %v4672
    %4781 = vmatprep.subr.mxu0 0.0
    %4782 = vmatpush1.msra.mxu0 %v4671
    %4783 = vmatprep.subr.mxu0 0.0
    %4784 = vmatpush1.msra.mxu0 %v4670
    %4785 = vmatprep.subr.mxu0 0.0
    %4786 = vmatpush1.msra.mxu0 %v4669
    %4787 = vmatprep.subr.mxu0 0.0
    %4788 = vmatpush2.msra.mxu0 0.0
    %4789 = vmatprep.subr.mxu0 0.0
    %4790 = vmatpush2.msra.mxu0 0.0
    %4791 = vmatprep.subr.mxu0 0.0
    %4792 = vmatpush2.msra.mxu0 0.0
    %4793 = vmatprep.subr.mxu0 0.0
    %4794 = vmatpush2.msra.mxu0 0.0
    %4795 = vmatprep.subr.mxu0 0.0
    %4796 = vmatpush2.msra.mxu0 0.0
    %4797 = vmatprep.subr.mxu0 0.0
    %4798 = vmatpush2.msra.mxu0 0.0
    %4799 = vmatprep.subr.mxu0 0.0
    %4800 = vmatpush2.msra.mxu0 0.0
    %4801 = vmatprep.subr.mxu0 0.0
    %4802 = vmatpush2.msra.mxu0 0.0
    %4803 = vmatprep.subr.mxu0 0.0
    %4804 = vmatpush2.msra.mxu0 0.0
    %4805 = vmatprep.subr.mxu0 0.0
    %4806 = vmatpush2.msra.mxu0 0.0
    %4807 = vmatprep.subr.mxu0 0.0
    %4808 = vmatpush2.msra.mxu0 0.0
    %4809 = vmatprep.subr.mxu0 0.0
    %4810 = vmatpush2.msra.mxu0 0.0
    %4811 = vmatprep.subr.mxu0 0.0
    %4812 = vmatpush2.msra.mxu0 0.0
    %4813 = vmatprep.subr.mxu0 0.0
    %4814 = vmatpush2.msra.mxu0 0.0
    %4815 = vmatprep.subr.mxu0 0.0
    %4816 = vmatpush2.msra.mxu0 0.0
    %4817 = vmatprep.subr.mxu0 0.0
    %4818 = vmatpush2.msra.mxu0 0.0
    %4819 = vmatprep.mubr.f32.mxu0 0.0
    %4820 = vmatmul.mubr.f32.gmra.mxu0 %v4751
    %v4821 = vpop.f32.mrf.mxu0
    %v4822 = vadd.f32 %v4676, %v4821
    %v4823 = vpop.f32.mrf.mxu0
    %4824 = vmatprep.mubr.f32.mxu0 0.0
    %4825 = vmatmul.mubr.f32.gmra.mxu0 %v4753
    %v4826 = vpop.f32.mrf.mxu0
    %v4827 = vadd.f32 %v4676, %v4826
    %v4828 = vpop.f32.mrf.mxu0
    %4829 = vdwg.mxu0
    %v4830 = vmul.f32 %v4822, %v4822
    %v4831 = vmul.f32 %v4827, %v4827
    %v4832 = vmul.f32 %v4822, %v4830
    %v4833 = vmul.f32 %v4827, %v4831
    %v4834 = vmul.f32 %v4832, 0.044715
    %v4835 = vmul.f32 %v4833, 0.044715
    %v4836 = vadd.f32 %v4822, %v4834
    %v4837 = vadd.f32 %v4827, %v4835
    %v4838 = vmul.f32 %v4836, 0.7978846
    %v4839 = vmul.f32 %v4837, 0.7978846
    %v4840 = vtanh.pop %v4838
    %v4841 = vtanh.pop %v4839
    %v4842 = vadd.f32 %v4840, 1.0
    %v4843 = vadd.f32 %v4841, 1.0
    %v4844 = vmul.f32 %v4842, 0.5
    %v4845 = vmul.f32 %v4843, 0.5
    %v4846 = vmul.f32 %v4822, %v4844
    %v4847 = vmul.f32 %v4827, %v4845
    %v4848 = vld [vmem:[%s10] sm:$0xff]
    %v4849 = vld [vmem:[%s10 + $0x8] sm:$0xff]
    %v4850 = vld [vmem:[%s10 + $0x10] sm:$0xff]
    %v4851 = vld [vmem:[%s10 + $0x18] sm:$0xff]
    %v4852 = vld [vmem:[%s10 + $0x20] sm:$0xff]
    %v4853 = vld [vmem:[%s10 + $0x28] sm:$0xff]
    %v4854 = vld [vmem:[%s10 + $0x30] sm:$0xff]
    %v4855 = vld [vmem:[%s10 + $0x38] sm:$0xff]
    %vm4856 = vcmask 523264
    %v4858 = vsel %vm4856, %v4846, 0
    %v4861 = vsel %vm4856, %v4847, 0
    %4863 = vmatprep.subr.mxu0 0.0
    %4864 = vmatpush1.msra.mxu0 0.0
    %4865 = vmatprep.subr.mxu0 0.0
    %4866 = vmatpush1.msra.mxu0 0.0
    %4867 = vmatprep.subr.mxu0 0.0
    %4868 = vmatpush1.msra.mxu0 0.0
    %4869 = vmatprep.subr.mxu0 0.0
    %4870 = vmatpush1.msra.mxu0 0.0
    %4871 = vmatprep.subr.mxu0 0.0
    %4872 = vmatpush1.msra.mxu0 0.0
    %4873 = vmatprep.subr.mxu0 0.0
    %4874 = vmatpush1.msra.mxu0 0.0
    %4875 = vmatprep.subr.mxu0 0.0
    %4876 = vmatpush1.msra.mxu0 0.0
    %4877 = vmatprep.subr.mxu0 0.0
    %4878 = vmatpush1.msra.mxu0 0.0
    %4879 = vmatprep.subr.mxu0 0.0
    %4880 = vmatpush1.msra.mxu0 %v4855
    %4881 = vmatprep.subr.mxu0 0.0
    %4882 = vmatpush1.msra.mxu0 %v4854
    %4883 = vmatprep.subr.mxu0 0.0
    %4884 = vmatpush1.msra.mxu0 %v4853
    %4885 = vmatprep.subr.mxu0 0.0
    %4886 = vmatpush1.msra.mxu0 %v4852
    %4887 = vmatprep.subr.mxu0 0.0
    %4888 = vmatpush1.msra.mxu0 %v4851
    %4889 = vmatprep.subr.mxu0 0.0
    %4890 = vmatpush1.msra.mxu0 %v4850
    %4891 = vmatprep.subr.mxu0 0.0
    %4892 = vmatpush1.msra.mxu0 %v4849
    %4893 = vmatprep.subr.mxu0 0.0
    %4894 = vmatpush1.msra.mxu0 %v4848
    %4895 = vmatprep.subr.mxu0 0.0
    %4896 = vmatpush2.msra.mxu0 0.0
    %4897 = vmatprep.subr.mxu0 0.0
    %4898 = vmatpush2.msra.mxu0 0.0
    %4899 = vmatprep.subr.mxu0 0.0
    %4900 = vmatpush2.msra.mxu0 0.0
    %4901 = vmatprep.subr.mxu0 0.0
    %4902 = vmatpush2.msra.mxu0 0.0
    %4903 = vmatprep.subr.mxu0 0.0
    %4904 = vmatpush2.msra.mxu0 0.0
    %4905 = vmatprep.subr.mxu0 0.0
    %4906 = vmatpush2.msra.mxu0 0.0
    %4907 = vmatprep.subr.mxu0 0.0
    %4908 = vmatpush2.msra.mxu0 0.0
    %4909 = vmatprep.subr.mxu0 0.0
    %4910 = vmatpush2.msra.mxu0 0.0
    %4911 = vmatprep.subr.mxu0 0.0
    %4912 = vmatpush2.msra.mxu0 0.0
    %4913 = vmatprep.subr.mxu0 0.0
    %4914 = vmatpush2.msra.mxu0 0.0
    %4915 = vmatprep.subr.mxu0 0.0
    %4916 = vmatpush2.msra.mxu0 0.0
    %4917 = vmatprep.subr.mxu0 0.0
    %4918 = vmatpush2.msra.mxu0 0.0
    %4919 = vmatprep.subr.mxu0 0.0
    %4920 = vmatpush2.msra.mxu0 0.0
    %4921 = vmatprep.subr.mxu0 0.0
    %4922 = vmatpush2.msra.mxu0 0.0
    %4923 = vmatprep.subr.mxu0 0.0
    %4924 = vmatpush2.msra.mxu0 0.0
    %4925 = vmatprep.subr.mxu0 0.0
    %4926 = vmatpush2.msra.mxu0 0.0
    %4927 = vmatprep.mubr.f32.mxu0 0.0
    %4928 = vmatmul.mubr.f32.gmra.mxu0 %v4858
    %v4929 = vpop.f32.mrf.mxu0
    %v4930 = vadd.f32 0.0, %v4929
    %v4931 = vpop.f32.mrf.mxu0
    %4932 = vmatprep.mubr.f32.mxu0 0.0
    %4933 = vmatmul.mubr.f32.gmra.mxu0 %v4861
    %v4934 = vpop.f32.mrf.mxu0
    %v4935 = vpop.f32.mrf.mxu0
    %4936 = vdwg.mxu0
    %v4938 = vcombine.high %v4930, %v4930
    %v4940 = vunpack.c.l.s4 1966171168
    %v4941 = vunpack.c.0.s8 %v4940
    %v4942 = vlaneseq
    %v4943 = vshrl.u32 %v4942, 7
    %v4944 = vsub.s32 %v4941, %v4943
    %v4945 = vrot.slane %v4930, %v4944
    %v4947 = vunpack.c.l.s4 1966171168
    %v4948 = vunpack.c.0.s8 %v4947
    %v4949 = vlaneseq
    %v4950 = vshrl.u32 %v4949, 7
    %v4951 = vsub.s32 %v4948, %v4950
    %v4952 = vrot.slane %v4938, %v4951
    %v4953 = vcombine.high %v4952, %v4952
    %v4955 = vunpack.c.l.s4 1966171168
    %v4956 = vunpack.c.0.s8 %v4955
    %v4957 = vlaneseq
    %v4958 = vshrl.u32 %v4957, 7
    %v4959 = vsub.s32 %v4956, %v4958
    %v4960 = vrot.slane %v4945, %v4959
    %v4962 = vunpack.c.l.s4 1966171168
    %v4963 = vunpack.c.0.s8 %v4962
    %v4964 = vlaneseq
    %v4965 = vshrl.u32 %v4964, 7
    %v4966 = vsub.s32 %v4963, %v4965
    %v4967 = vrot.slane %v4953, %v4966
    %v4970 = vadd.f32 %v4209, %v4960
    %v4971 = vadd.f32 %v4214, %v4967
    %v4972 = vlaneseq
    %v4973 = vshrl.u32 %v4972, 7
    %v4974 = vsub.s32 6, %v4973
    %v4975 = vrot.slane %v42, %v4974
    %v4977 = vcombine.high %v4975, %v4975
    %v4979 = vunpack.c.l.s4 1966171168
    %v4980 = vunpack.c.0.s8 %v4979
    %v4981 = vlaneseq
    %v4982 = vshrl.u32 %v4981, 7
    %v4983 = vsub.s32 %v4980, %v4982
    %v4984 = vrot.slane %v4975, %v4983
    %v4986 = vunpack.c.l.s4 1966171168
    %v4987 = vunpack.c.0.s8 %v4986
    %v4988 = vlaneseq
    %v4989 = vshrl.u32 %v4988, 7
    %v4990 = vsub.s32 %v4987, %v4989
    %v4991 = vrot.slane %v4977, %v4990
    %v4992 = vcombine.high %v4991, %v4991
    %v4994 = vunpack.c.l.s4 1966171168
    %v4995 = vunpack.c.0.s8 %v4994
    %v4996 = vlaneseq
    %v4997 = vshrl.u32 %v4996, 7
    %v4998 = vsub.s32 %v4995, %v4997
    %v4999 = vrot.slane %v4984, %v4998
    %v5001 = vunpack.c.l.s4 1966171168
    %v5002 = vunpack.c.0.s8 %v5001
    %v5003 = vlaneseq
    %v5004 = vshrl.u32 %v5003, 7
    %v5005 = vsub.s32 %v5002, %v5004
    %v5006 = vrot.slane %v4992, %v5005
    %v5009 = vadd.f32 %v4970, %v4999
    %v5010 = vadd.f32 %v4971, %v5006
    %v5013 = vcombine.low %v5009, %v5010
    %v5015 = vunpack.c.l.s4 1966171168
    %v5016 = vunpack.c.0.s8 %v5015
    %v5017 = vlaneseq
    %v5018 = vshrl.u32 %v5017, 7
    %v5019 = vsub.s32 %v5016, %v5018
    %v5020 = vrot.slane %v5013, %v5019
    %v5022 = vunpack.c.l.s4 1966171168
    %v5023 = vunpack.c.0.s8 %v5022
    %v5024 = vlaneseq
    %v5025 = vshrl.u32 %v5024, 7
    %v5026 = vsub.s32 %v5023, %v5025
    %v5027 = vrot.slane %v5020, %v5026
    %v5029 = vsel %vm731, %v5027, 0.0
    %5030 = vadd.xlane.f32.xlu0 %v5029
    %v5031 = vpop.xlane.xlu0 %5030
    %v5032 = vmul.f32 %v5031, %v735
    %v5034 = vlaneseq
    %v5035 = vshrl.u32 %v5034, 7
    %v5036 = vsub.s32 0, %v5035
    %v5037 = vrot.slane %v5032, %v5036
    %v5038 = vlaneseq
    %v5039 = vshrl.u32 %v5038, 7
    %v5040 = vsub.s32 1, %v5039
    %v5041 = vrot.slane %v5032, %v5040
    %v5044 = vsub.f32 %v5009, %v5037
    %v5045 = vsub.f32 %v5010, %v5041
    %v5046 = vmul.f32 %v5044, %v5044
    %v5047 = vmul.f32 %v5045, %v5045
    %v5050 = vcombine.low %v5046, %v5047
    %v5052 = vunpack.c.l.s4 1966171168
    %v5053 = vunpack.c.0.s8 %v5052
    %v5054 = vlaneseq
    %v5055 = vshrl.u32 %v5054, 7
    %v5056 = vsub.s32 %v5053, %v5055
    %v5057 = vrot.slane %v5050, %v5056
    %v5059 = vunpack.c.l.s4 1966171168
    %v5060 = vunpack.c.0.s8 %v5059
    %v5061 = vlaneseq
    %v5062 = vshrl.u32 %v5061, 7
    %v5063 = vsub.s32 %v5060, %v5062
    %v5064 = vrot.slane %v5057, %v5063
    %v5066 = vsel %vm731, %v5064, 0.0
    %5067 = vadd.xlane.f32.xlu0 %v5066
    %v5068 = vpop.xlane.xlu0 %5067
    %v5069 = vmul.f32 %v5068, %v735
    %v5070 = vadd.f32 %v5069, 1e-05
    %v5071 = vrsqrt.pop %v5070
    %v5073 = vlaneseq
    %v5074 = vshrl.u32 %v5073, 7
    %v5075 = vsub.s32 0, %v5074
    %v5076 = vrot.slane %v5071, %v5075
    %v5077 = vlaneseq
    %v5078 = vshrl.u32 %v5077, 7
    %v5079 = vsub.s32 1, %v5078
    %v5080 = vrot.slane %v5071, %v5079
    %v5083 = vmul.f32 %v5044, %v5076
    %v5084 = vmul.f32 %v5045, %v5080
    %v5085 = vlaneseq
    %v5086 = vshrl.u32 %v5085, 7
    %v5087 = vsub.s32 7, %v5086
    %v5088 = vrot.slane %v42, %v5087
    %v5091 = vunpack.c.l.s4 1966171168
    %v5092 = vunpack.c.0.s8 %v5091
    %v5093 = vlaneseq
    %v5094 = vshrl.u32 %v5093, 7
    %v5095 = vsub.s32 %v5092, %v5094
    %v5096 = vrot.slane %v5088, %v5095
    %v5097 = vcombine.high %v5096, %v5096
    %v5099 = vunpack.c.l.s4 1966171168
    %v5100 = vunpack.c.0.s8 %v5099
    %v5101 = vlaneseq
    %v5102 = vshrl.u32 %v5101, 7
    %v5103 = vsub.s32 %v5100, %v5102
    %v5104 = vrot.slane %v5096, %v5103
    %v5106 = vunpack.c.l.s4 1966171168
    %v5107 = vunpack.c.0.s8 %v5106
    %v5108 = vlaneseq
    %v5109 = vshrl.u32 %v5108, 7
    %v5110 = vsub.s32 %v5107, %v5109
    %v5111 = vrot.slane %v5097, %v5110
    %v5114 = vmul.f32 %v5083, %v5104
    %v5115 = vmul.f32 %v5084, %v5111
    %v5116 = vlaneseq
    %v5117 = vshrl.u32 %v5116, 7
    %v5118 = vsub.s32 0, %v5117
    %v5119 = vrot.slane %v43, %v5118
    %v5122 = vunpack.c.l.s4 1966171168
    %v5123 = vunpack.c.0.s8 %v5122
    %v5124 = vlaneseq
    %v5125 = vshrl.u32 %v5124, 7
    %v5126 = vsub.s32 %v5123, %v5125
    %v5127 = vrot.slane %v5119, %v5126
    %v5128 = vcombine.high %v5127, %v5127
    %v5130 = vunpack.c.l.s4 1966171168
    %v5131 = vunpack.c.0.s8 %v5130
    %v5132 = vlaneseq
    %v5133 = vshrl.u32 %v5132, 7
    %v5134 = vsub.s32 %v5131, %v5133
    %v5135 = vrot.slane %v5127, %v5134
    %v5137 = vunpack.c.l.s4 1966171168
    %v5138 = vunpack.c.0.s8 %v5137
    %v5139 = vlaneseq
    %v5140 = vshrl.u32 %v5139, 7
    %v5141 = vsub.s32 %v5138, %v5140
    %v5142 = vrot.slane %v5128, %v5141
    %v5145 = vadd.f32 %v5114, %v5135
    %v5146 = vadd.f32 %v5115, %v5142
    %v5147 = vld [vmem:[%s11] sm:$0xff]
    %v5148 = vld [vmem:[%s11 + $0x8] sm:$0xff]
    %v5149 = vld [vmem:[%s11 + $0x10] sm:$0xff]
    %v5150 = vld [vmem:[%s11 + $0x18] sm:$0xff]
    %v5151 = vlaneseq
    %v5152 = vshrl.u32 %v5151, 7
    %v5153 = vsub.s32 2, %v5152
    %v5154 = vrot.slane %v44, %v5153
    %v5157 = vcombine.low %v5145, %v5146
    %v5159 = vunpack.c.l.s4 1966171168
    %v5160 = vunpack.c.0.s8 %v5159
    %v5161 = vlaneseq
    %v5162 = vshrl.u32 %v5161, 7
    %v5163 = vsub.s32 %v5160, %v5162
    %v5164 = vrot.slane %v5157, %v5163
    %v5166 = vunpack.c.l.s4 1966171168
    %v5167 = vunpack.c.0.s8 %v5166
    %v5168 = vlaneseq
    %v5169 = vshrl.u32 %v5168, 7
    %v5170 = vsub.s32 %v5167, %v5169
    %v5171 = vrot.slane %v5164, %v5170
    %v5172 = vsel %vm727, %v5171, 0
    %5174 = vmatprep.subr.mxu0 0.0
    %5175 = vmatpush1.msra.mxu0 0.0
    %5176 = vmatprep.subr.mxu0 0.0
    %5177 = vmatpush1.msra.mxu0 0.0
    %5178 = vmatprep.subr.mxu0 0.0
    %5179 = vmatpush1.msra.mxu0 0.0
    %5180 = vmatprep.subr.mxu0 0.0
    %5181 = vmatpush1.msra.mxu0 0.0
    %5182 = vmatprep.subr.mxu0 0.0
    %5183 = vmatpush1.msra.mxu0 0.0
    %5184 = vmatprep.subr.mxu0 0.0
    %5185 = vmatpush1.msra.mxu0 0.0
    %5186 = vmatprep.subr.mxu0 0.0
    %5187 = vmatpush1.msra.mxu0 0.0
    %5188 = vmatprep.subr.mxu0 0.0
    %5189 = vmatpush1.msra.mxu0 0.0
    %5190 = vmatprep.subr.mxu0 0.0
    %5191 = vmatpush1.msra.mxu0 0.0
    %5192 = vmatprep.subr.mxu0 0.0
    %5193 = vmatpush1.msra.mxu0 0.0
    %5194 = vmatprep.subr.mxu0 0.0
    %5195 = vmatpush1.msra.mxu0 0.0
    %5196 = vmatprep.subr.mxu0 0.0
    %5197 = vmatpush1.msra.mxu0 0.0
    %5198 = vmatprep.subr.mxu0 0.0
    %5199 = vmatpush1.msra.mxu0 %v5150
    %5200 = vmatprep.subr.mxu0 0.0
    %5201 = vmatpush1.msra.mxu0 %v5149
    %5202 = vmatprep.subr.mxu0 0.0
    %5203 = vmatpush1.msra.mxu0 %v5148
    %5204 = vmatprep.subr.mxu0 0.0
    %5205 = vmatpush1.msra.mxu0 %v5147
    %5206 = vmatprep.subr.mxu0 0.0
    %5207 = vmatpush2.msra.mxu0 0.0
    %5208 = vmatprep.subr.mxu0 0.0
    %5209 = vmatpush2.msra.mxu0 0.0
    %5210 = vmatprep.subr.mxu0 0.0
    %5211 = vmatpush2.msra.mxu0 0.0
    %5212 = vmatprep.subr.mxu0 0.0
    %5213 = vmatpush2.msra.mxu0 0.0
    %5214 = vmatprep.subr.mxu0 0.0
    %5215 = vmatpush2.msra.mxu0 0.0
    %5216 = vmatprep.subr.mxu0 0.0
    %5217 = vmatpush2.msra.mxu0 0.0
    %5218 = vmatprep.subr.mxu0 0.0
    %5219 = vmatpush2.msra.mxu0 0.0
    %5220 = vmatprep.subr.mxu0 0.0
    %5221 = vmatpush2.msra.mxu0 0.0
    %5222 = vmatprep.subr.mxu0 0.0
    %5223 = vmatpush2.msra.mxu0 0.0
    %5224 = vmatprep.subr.mxu0 0.0
    %5225 = vmatpush2.msra.mxu0 0.0
    %5226 = vmatprep.subr.mxu0 0.0
    %5227 = vmatpush2.msra.mxu0 0.0
    %5228 = vmatprep.subr.mxu0 0.0
    %5229 = vmatpush2.msra.mxu0 0.0
    %5230 = vmatprep.subr.mxu0 0.0
    %5231 = vmatpush2.msra.mxu0 0.0
    %5232 = vmatprep.subr.mxu0 0.0
    %5233 = vmatpush2.msra.mxu0 0.0
    %5234 = vmatprep.subr.mxu0 0.0
    %5235 = vmatpush2.msra.mxu0 0.0
    %5236 = vmatprep.subr.mxu0 0.0
    %5237 = vmatpush2.msra.mxu0 0.0
    %5238 = vmatprep.mubr.f32.mxu0 0.0
    %5239 = vmatmul.mubr.f32.gmra.mxu0 %v5172
    %v5240 = vpop.f32.mrf.mxu0
    %v5241 = vadd.f32 %v5154, %v5240
    %v5242 = vpop.f32.mrf.mxu0
    %5243 = vdwg.mxu0
    %vm5244 = vcmask 58368
    %v5245 = vsel %vm5244, %v5241, -inf
    %5246 = vmax.xlane.f32.xlu0 %v5245
    %v5247 = vpop.xlane.xlu0 %5246
    %v5248 = vsub.f32 %v5241, %v5247
    %v5249 = vmul.f32 %v5248, 1.442695
    %v5250 = vpow.pop %v5249
    %v5251 = vsel %vm5244, %v5250, 0.0
    %5252 = vadd.xlane.f32.xlu0 %v5251
    %v5253 = vpop.xlane.xlu0 %5252
    %v5254 = vlog2.pop %v5253
    %v5255 = vmul.f32 %v5254, 0.6931472
    %v5256 = vadd.f32 %v5255, %v5247
    %v5257 = vld [vmem:[%s1] sm:$0x3]
    %v5258 = vmul.f32 %v5257, %v5241
    %v5259 = vsel %vm5244, %v5258, 0.0
    %5260 = vadd.xlane.f32.xlu0 %v5259
    %v5261 = vpop.xlane.xlu0 %5260
    %v5262 = vsub.f32 %v5256, %v5261
    %v5263 = vld [vmem:[%s2] sm:$0x3]
    %v5264 = vmul.f32 %v5262, %v5263
    %p5265 = scmp.eq.s32.totalorder 0, 0
    // Predicated region
    $region50: #{train_step_loss.1} parent=1 // pred_check
      %p5266 = pneg %p5265
    $region51: #{train_step_loss.1} parent=1 // pred_check_branch
      %5268 = sbr.rel (%p5266) target = $region53
    $region52: #{train_step_loss.1} parent=1 // pred_region
      %vm5269 = vcmask 0
      %5270 = vst.msk [vmem:[#allocation2] sm:$0x1] %vm5269, 0.0
    $region53: #{train_step_loss.1} parent=1 // pred_fallthru
      _
    %v5271 = vld [vmem:[#allocation2] sm:$0x1]
    %vm5272 = vcmask 1024
    %v5273 = vsel %vm5272, %v5264, 0.0
    %5274 = vadd.xlane.f32.xlu0 %v5273
    %v5275 = vpop.xlane.xlu0 %5274
    %v5276 = vrot.slane %v5275, 4
    %v5277 = vadd.f32 %v5275, %v5276
    %v5278 = vrot.slane %v5277, 2
    %v5279 = vadd.f32 %v5277, %v5278
    %v5280 = vrot.slane %v5279, 1
    %v5281 = vadd.f32 %v5279, %v5280
    %s5282 = vtos %v5281
    %v5283 = vstv %s5282
    %v5284 = vadd.f32 %v5271, %v5283
    %vm5285 = vcmask 0
    %5286 = vst.msk [vmem:[#allocation2] sm:$0x1] %vm5285, %v5284
    // Predicated region
    $region54: #{train_step_loss.1} parent=1 // pred_check
      _
    $region55: #{train_step_loss.1} parent=1 // pred_check_branch
      %5288 = sbr.rel (0) target = $region57
    $region56: #{train_step_loss.1} parent=1 // pred_region
      %s5290 = ssub.s32 16, 16
      %5291 = vsyncadd [#allocation3], %s5290
      %s5293 = sshll.u32 [#allocation2], 4
      %s5294 = int_to_ptr.vmem [resolvable:$true] %s5293
      %5296 = dma.vmem_to_hbm [thread:$0]  %s5294, 16, %s12, [#allocation3]
    $region57: #{train_step_loss.1} parent=1 // pred_fallthru
      _
    // Predicated region
    $region58: #{train_step_loss.1} parent=1 // pred_check
      _
    $region59: #{train_step_loss.1} parent=1 // pred_check_branch
      %5298 = sbr.rel (0) target = $region61
    $region60: #{train_step_loss.1} parent=1 // pred_region
      %5299 = dma.done [#allocation3], 16
    $region61: #{train_step_loss.1} parent=1 // pred_fallthru
      _
    %5300 = vsyncpa [#allocation3], 1

</llo_original>
